<compile_context>
chip_gen: v5e
topology: v5e:2x2
jax: 0.10.0
libtpu: 0.0.40
codegen_flags: <defaults>
</compile_context>

<pallas_src>
import jax
import jax.numpy as jnp
from jax.experimental import pallas as pl
from jax.experimental.pallas import tpu as pltpu


def _round_up(n, m):
    return ((n + m - 1) // m) * m


def _device_kind():
    try:
        return jax.devices()[0].device_kind.lower()
    except Exception:
        return ""


def _auto_softplus_bf16():
    # bf16 EUP/VPU exist on v6e and newer; v5e and older would upcast bf16
    # transcendentals anyway (and are MXU-bound), so keep f32 there.
    kind = _device_kind()
    return not any(tag in kind for tag in ("v2", "v3", "v4", "v5"))


def _auto_ensure_two_tiles():
    # v7x shards the "parallel" grid axis across 2 TensorCores; make sure a
    # mid-size batch produces >= 2 grid steps so neither core idles.
    kind = _device_kind()
    return ("v7" in kind) or ("7x" in kind)


def _softplus(x):
    # Matches torch.nn.Softplus(beta=1, threshold=20):
    # returns x when x > 20, else log(1 + exp(x)); numerically stable.
    xs = jnp.minimum(x, 20.0)
    if x.dtype == jnp.float32:
        sp = jnp.log1p(jnp.exp(xs))
    else:
        # bf16 path: plain log(1 + exp) — log1p buys nothing at bf16 precision
        # and this keeps the lowering on the plain exp/log EUP ops.
        sp = jnp.log(1.0 + jnp.exp(xs))
    return jnp.where(x > 20.0, x, sp)


def _make_mlp_kernel(softplus_bf16):
    def kernel(x_ref,
               w1_ref, b1_ref,
               w2_ref, b2_ref,
               w3_ref, b3_ref,
               w4_ref, b4_ref,
               o_ref):
        # Layer 1: Linear(4 -> Hp).  bf16 operands so the tiny K=4 pass is a
        # single native MXU pass (f32 would be emulated via multiple bf16
        # passes); f32 accumulation + f32 bias.
        h = jnp.dot(x_ref[...].astype(jnp.bfloat16), w1_ref[...],
                    preferred_element_type=jnp.float32) + b1_ref[...]

        # Layers 2 & 3: Linear(Hp -> Hp) + Softplus.  bf16 operands / f32 MXU
        # accumulation; bias-add in f32; softplus in bf16 on v6e/v7x (EUP was
        # the saturating unit in f32), in f32 on v5e.
        for w_ref, b_ref in ((w2_ref, b2_ref), (w3_ref, b3_ref)):
            z = jnp.dot(h.astype(jnp.bfloat16), w_ref[...],
                        preferred_element_type=jnp.float32) + b_ref[...]
            h = _softplus(z.astype(jnp.bfloat16) if softplus_bf16 else z)

        # Layer 4: Linear(Hp -> 1) as a VPU multiply + lane reduction
        # (avoids an N=1 MXU pass serialized behind layer 3's drain).
        o_ref[...] = (jnp.sum(h.astype(jnp.float32) * w4_ref[...],
                              axis=-1, keepdims=True)
                      + b4_ref[...]).astype(o_ref.dtype)

    return kernel


def l_mlp_forward(x, packed_params, *, tile_b=512,
                  softplus_bf16=None, ensure_two_tiles=None):
    """x: [B, 4] float32 -> [B, 1] float32."""
    if softplus_bf16 is None:
        softplus_bf16 = _auto_softplus_bf16()
    if ensure_two_tiles is None:
        ensure_two_tiles = _auto_ensure_two_tiles()

    w1, b1, w2, b2, w3, b3, w4, b4 = packed_params
    B, D_in = x.shape
    Hp = w2.shape[0]

    # Batch tiling: multiple of 8 (f32 sublane); pad the tail tile.
    b8 = _round_up(B, 8)
    tile_b = _round_up(min(tile_b, b8), 8)
    if ensure_two_tiles and b8 >= 16 and _round_up(B, tile_b) // tile_b < 2:
        # v7x: split so both TensorCores get a grid step under "parallel".
        tile_b = _round_up(pl.cdiv(b8, 2), 8)
    assert tile_b % 8 == 0
    b_pad = _round_up(B, tile_b)
    if b_pad != B:
        x = jnp.pad(x, ((0, b_pad - B), (0, 0)))
    n_tiles = b_pad // tile_b

    params_flat = (w1, b1, w2, b2, w3, b3, w4, b4)
    # Constant index_map -> weights/biases stay resident in VMEM across steps.
    weight_spec = lambda a: pl.BlockSpec(a.shape, lambda i: (0, 0))

    flops = 2 * b_pad * (D_in * Hp + 2 * Hp * Hp + Hp)
    transcendentals = 2 * 2 * b_pad * Hp           # exp + log, two softplus layers
    bytes_accessed = (int(x.size) * x.dtype.itemsize + b_pad * 4
                      + sum(int(p.size) * p.dtype.itemsize for p in params_flat))

    # Footprint-derived scoped-VMEM limit: ~3.4 MB of double-buffered resident
    # weights + activation temporaries that scale with tile_b.  Capped under
    # the v7x 64 MiB/TC budget.
    vmem_limit = int(min(56 << 20, (8 << 20) + 16 * tile_b * Hp * 4))

    out = pl.pallas_call(
        _make_mlp_kernel(softplus_bf16),
        out_shape=jax.ShapeDtypeStruct((b_pad, 1), jnp.float32),
        grid=(n_tiles,),
        in_specs=[pl.BlockSpec((tile_b, D_in), lambda i: (i, 0))]
                 + [weight_spec(p) for p in params_flat],
        out_specs=pl.BlockSpec((tile_b, 1), lambda i: (i, 0)),
        compiler_params=pltpu.CompilerParams(
            dimension_semantics=("parallel",),
            vmem_limit_bytes=vmem_limit),
        cost_estimate=pl.CostEstimate(
            flops=int(flops),
            transcendentals=int(transcendentals),
            bytes_accessed=int(bytes_accessed)),
    )(x, *params_flat)
    return out[:B]


def init_params(key, hidden=600):
    """f32 params mimicking PyTorch Linear default init U[-1/sqrt(fan_in), +].
    Weights stored as (in_features, out_features); biases as (1, out)."""
    dims = [(4, hidden), (hidden, hidden), (hidden, hidden), (hidden, 1)]
    params = []
    for fan_in, fan_out in dims:
        kw, kb, key = jax.random.split(key, 3)
        bound = 1.0 / (fan_in ** 0.5)
        w = jax.random.uniform(kw, (fan_in, fan_out), jnp.float32, -bound, bound)
        b = jax.random.uniform(kb, (1, fan_out), jnp.float32, -bound, bound)
        params.append((w, b))
    return params


def pack_params(params):
    """Host-side layout plumbing: pad hidden 600->640 (lane-aligned), cast the
    matmul weights to bf16 (f32 biases / f32 accumulation), store w4 as a
    (1, Hp) f32 row for the lane reduction."""
    (w1, b1), (w2, b2), (w3, b3), (w4, b4) = params
    H = w2.shape[0]
    Hp = _round_up(H, 128)
    pc = lambda a: jnp.pad(a, ((0, 0), (0, Hp - a.shape[1])))             # pad cols
    prc = lambda a: jnp.pad(a, ((0, Hp - a.shape[0]), (0, Hp - a.shape[1])))
    return (pc(w1).astype(jnp.bfloat16), pc(b1),
            prc(w2).astype(jnp.bfloat16), pc(b2),
            prc(w3).astype(jnp.bfloat16), pc(b3),
            pc(w4.T),                    # (1, Hp) f32 row
            b4.reshape(1, 1))


def _reference_f32(x, params):
    (w1, b1), (w2, b2), (w3, b3), (w4, b4) = params
    h = x @ w1 + b1
    h = _softplus(h @ w2 + b2)
    h = _softplus(h @ w3 + b3)
    return h @ w4 + b4


def _reference_mirror(x, params, softplus_bf16):
    # Mirrors the kernel's numerics: bf16 operands / f32 accumulation for all
    # matmuls, optional bf16 softplus, f32 lane-reduction for the last layer.
    (w1, b1), (w2, b2), (w3, b3), (w4, b4) = params
    h = jnp.dot(x.astype(jnp.bfloat16), w1.astype(jnp.bfloat16),
                preferred_element_type=jnp.float32) + b1
    for w, b in ((w2, b2), (w3, b3)):
        z = jnp.dot(h.astype(jnp.bfloat16), w.astype(jnp.bfloat16),
                    preferred_element_type=jnp.float32) + b
        h = _softplus(z.astype(jnp.bfloat16) if softplus_bf16 else z)
    return jnp.sum(h.astype(jnp.float32) * w4.T, axis=-1, keepdims=True) + b4


if __name__ == "__main__":
    key = jax.random.PRNGKey(0)
    kx, kp = jax.random.split(key)
    params = init_params(kp)
    packed = pack_params(params)

    # Cases exercise: single tile with auto flags; multi-tile bf16-softplus
    # path with tail padding; f32-softplus path with the v7x tile-halving rule.
    cases = (
        (8,   dict()),
        (200, dict(tile_b=128, softplus_bf16=True,  ensure_two_tiles=False)),
        (200, dict(tile_b=512, softplus_bf16=False, ensure_two_tiles=True)),
    )
    for B, kw in cases:
        x = jax.random.normal(jax.random.fold_in(kx, B), (B, 4), jnp.float32)
        out = jax.block_until_ready(l_mlp_forward(x, packed, **kw))
        assert out.shape == (B, 1), out.shape

        sp_bf16 = kw.get("softplus_bf16")
        if sp_bf16 is None:
            sp_bf16 = _auto_softplus_bf16()
        ref = _reference_mirror(x, params, sp_bf16)   # same math as the kernel
        assert jnp.allclose(out, ref, atol=3e-2, rtol=1e-2), (
            float(jnp.max(jnp.abs(out - ref))))
        ref32 = _reference_f32(x, params)             # original f32 module
        assert jnp.allclose(out, ref32, atol=5e-2, rtol=5e-2), (
            float(jnp.max(jnp.abs(out - ref32))))

    print("KERNEL_OK")
</pallas_src>

<mosaic_0001>
module attributes {stable_mosaic.version = 11 : i64} {
  func.func @kernel(%arg0: i32, %arg1: memref<8x4xf32, #tpu.memory_space<vmem>>, %arg2: memref<4x640xbf16, #tpu.memory_space<vmem>>, %arg3: memref<1x640xf32, #tpu.memory_space<vmem>>, %arg4: memref<640x640xbf16, #tpu.memory_space<vmem>>, %arg5: memref<1x640xf32, #tpu.memory_space<vmem>>, %arg6: memref<640x640xbf16, #tpu.memory_space<vmem>>, %arg7: memref<1x640xf32, #tpu.memory_space<vmem>>, %arg8: memref<1x640xf32, #tpu.memory_space<vmem>>, %arg9: memref<1x1xf32, #tpu.memory_space<vmem>>, %arg10: memref<8x1xf32, #tpu.memory_space<vmem>>) attributes {dimension_semantics = [#tpu.dimension_semantics<parallel>], iteration_bounds = array<i64: 1>, scalar_prefetch = 0 : i64, scratch_operands = 0 : i64, tpu.core_type = #tpu.core_type<tc>, window_params = [{transform_indices = @transform_0, window_bounds = array<i64: 8, 4>}, {pipeline_mode = #tpu.pipeline_mode<synchronous>, transform_indices = @transform_1, window_bounds = array<i64: 4, 640>}, {pipeline_mode = #tpu.pipeline_mode<synchronous>, transform_indices = @transform_2, window_bounds = array<i64: 1, 640>}, {pipeline_mode = #tpu.pipeline_mode<synchronous>, transform_indices = @transform_3, window_bounds = array<i64: 640, 640>}, {pipeline_mode = #tpu.pipeline_mode<synchronous>, transform_indices = @transform_4, window_bounds = array<i64: 1, 640>}, {pipeline_mode = #tpu.pipeline_mode<synchronous>, transform_indices = @transform_5, window_bounds = array<i64: 640, 640>}, {pipeline_mode = #tpu.pipeline_mode<synchronous>, transform_indices = @transform_6, window_bounds = array<i64: 1, 640>}, {pipeline_mode = #tpu.pipeline_mode<synchronous>, transform_indices = @transform_7, window_bounds = array<i64: 1, 640>}, {pipeline_mode = #tpu.pipeline_mode<synchronous>, transform_indices = @transform_8, window_bounds = array<i64: 1, 1>}, {transform_indices = @transform_9, window_bounds = array<i64: 8, 1>}]} {
    %c0 = arith.constant 0 : index
    %c0_0 = arith.constant 0 : index
    %0 = vector.load %arg1[%c0, %c0_0] : memref<8x4xf32, #tpu.memory_space<vmem>>, vector<8x4xf32>
    %1 = arith.truncf %0 : vector<8x4xf32> to vector<8x4xbf16>
    %c0_1 = arith.constant 0 : index
    %c0_2 = arith.constant 0 : index
    %2 = vector.load %arg2[%c0_1, %c0_2] : memref<4x640xbf16, #tpu.memory_space<vmem>>, vector<4x640xbf16>
    %cst = arith.constant dense<0.000000e+00> : vector<8x640xf32>
    %3 = tpu.matmul %1, %2, %cst {dimension_numbers = #tpu.dot_dimension_numbers<[1], [0], [0], [1], [0, 0, 1, 1], [], []>} : vector<8x4xbf16>, vector<4x640xbf16>, vector<8x640xf32> -> vector<8x640xf32>
    %c0_3 = arith.constant 0 : index
    %c0_4 = arith.constant 0 : index
    %4 = vector.load %arg3[%c0_3, %c0_4] : memref<1x640xf32, #tpu.memory_space<vmem>>, vector<1x640xf32>
    %5 = vector.broadcast %4 : vector<1x640xf32> to vector<8x640xf32>
    %6 = arith.addf %3, %5 : vector<8x640xf32>
    %7 = arith.truncf %6 : vector<8x640xf32> to vector<8x640xbf16>
    %c0_5 = arith.constant 0 : index
    %c0_6 = arith.constant 0 : index
    %8 = vector.load %arg4[%c0_5, %c0_6] : memref<640x640xbf16, #tpu.memory_space<vmem>>, vector<640x640xbf16>
    %cst_7 = arith.constant dense<0.000000e+00> : vector<8x640xf32>
    %9 = tpu.matmul %7, %8, %cst_7 {dimension_numbers = #tpu.dot_dimension_numbers<[1], [0], [0], [1], [0, 0, 1, 1], [], []>} : vector<8x640xbf16>, vector<640x640xbf16>, vector<8x640xf32> -> vector<8x640xf32>
    %c0_8 = arith.constant 0 : index
    %c0_9 = arith.constant 0 : index
    %10 = vector.load %arg5[%c0_8, %c0_9] : memref<1x640xf32, #tpu.memory_space<vmem>>, vector<1x640xf32>
    %11 = vector.broadcast %10 : vector<1x640xf32> to vector<8x640xf32>
    %12 = arith.addf %9, %11 : vector<8x640xf32>
    %13 = arith.truncf %12 : vector<8x640xf32> to vector<8x640xbf16>
    %cst_10 = arith.constant 2.000000e+01 : bf16
    %14 = vector.broadcast %cst_10 : bf16 to vector<8x640xbf16>
    %15 = arith.minimumf %13, %14 : vector<8x640xbf16>
    %16 = math.exp %15 : vector<8x640xbf16>
    %cst_11 = arith.constant 1.000000e+00 : bf16
    %17 = vector.broadcast %cst_11 : bf16 to vector<8x640xbf16>
    %18 = arith.addf %17, %16 : vector<8x640xbf16>
    %19 = math.log %18 : vector<8x640xbf16>
    %cst_12 = arith.constant 2.000000e+01 : bf16
    %20 = vector.broadcast %cst_12 : bf16 to vector<8x640xbf16>
    %21 = arith.cmpf ogt, %13, %20 : vector<8x640xbf16>
    %22 = arith.select %21, %13, %19 : vector<8x640xi1>, vector<8x640xbf16>
    %c0_13 = arith.constant 0 : index
    %c0_14 = arith.constant 0 : index
    %23 = vector.load %arg6[%c0_13, %c0_14] : memref<640x640xbf16, #tpu.memory_space<vmem>>, vector<640x640xbf16>
    %cst_15 = arith.constant dense<0.000000e+00> : vector<8x640xf32>
    %24 = tpu.matmul %22, %23, %cst_15 {dimension_numbers = #tpu.dot_dimension_numbers<[1], [0], [0], [1], [0, 0, 1, 1], [], []>} : vector<8x640xbf16>, vector<640x640xbf16>, vector<8x640xf32> -> vector<8x640xf32>
    %c0_16 = arith.constant 0 : index
    %c0_17 = arith.constant 0 : index
    %25 = vector.load %arg7[%c0_16, %c0_17] : memref<1x640xf32, #tpu.memory_space<vmem>>, vector<1x640xf32>
    %26 = vector.broadcast %25 : vector<1x640xf32> to vector<8x640xf32>
    %27 = arith.addf %24, %26 : vector<8x640xf32>
    %28 = arith.truncf %27 : vector<8x640xf32> to vector<8x640xbf16>
    %cst_18 = arith.constant 2.000000e+01 : bf16
    %29 = vector.broadcast %cst_18 : bf16 to vector<8x640xbf16>
    %30 = arith.minimumf %28, %29 : vector<8x640xbf16>
    %31 = math.exp %30 : vector<8x640xbf16>
    %cst_19 = arith.constant 1.000000e+00 : bf16
    %32 = vector.broadcast %cst_19 : bf16 to vector<8x640xbf16>
    %33 = arith.addf %32, %31 : vector<8x640xbf16>
    %34 = math.log %33 : vector<8x640xbf16>
    %cst_20 = arith.constant 2.000000e+01 : bf16
    %35 = vector.broadcast %cst_20 : bf16 to vector<8x640xbf16>
    %36 = arith.cmpf ogt, %28, %35 : vector<8x640xbf16>
    %37 = arith.select %36, %28, %34 : vector<8x640xi1>, vector<8x640xbf16>
    %38 = arith.extf %37 : vector<8x640xbf16> to vector<8x640xf32>
    %c0_21 = arith.constant 0 : index
    %c0_22 = arith.constant 0 : index
    %39 = vector.load %arg8[%c0_21, %c0_22] : memref<1x640xf32, #tpu.memory_space<vmem>>, vector<1x640xf32>
    %40 = vector.broadcast %39 : vector<1x640xf32> to vector<8x640xf32>
    %41 = arith.mulf %38, %40 : vector<8x640xf32>
    %cst_23 = arith.constant dense<0.000000e+00> : vector<8xf32>
    %42 = vector.multi_reduction <add>, %41, %cst_23 [1] : vector<8x640xf32> to vector<8xf32>
    %43 = vector.shape_cast %42 : vector<8xf32> to vector<8x1xf32>
    %c0_24 = arith.constant 0 : index
    %c0_25 = arith.constant 0 : index
    %44 = vector.load %arg9[%c0_24, %c0_25] : memref<1x1xf32, #tpu.memory_space<vmem>>, vector<1x1xf32>
    %45 = vector.broadcast %44 : vector<1x1xf32> to vector<8x1xf32>
    %46 = arith.addf %43, %45 : vector<8x1xf32>
    %c0_26 = arith.constant 0 : index
    %c0_27 = arith.constant 0 : index
    %47 = vector.load %arg10[%c0_26, %c0_27] : memref<8x1xf32, #tpu.memory_space<vmem>>, vector<8x1xf32>
    tpu.vector_store %arg10[%c0_26, %c0_27], %46 {strides = array<i32>} : memref<8x1xf32, #tpu.memory_space<vmem>>, vector<8x1xf32>,
    return
  }
  func.func @transform_0(%arg0: i32) -> (i32, i32) {
    %c0_i32 = arith.constant 0 : i32
    %c0_i32_0 = arith.constant 0 : i32
    return %arg0, %c0_i32 : i32, i32
  }
  func.func @transform_1(%arg0: i32) -> (i32, i32) {
    %c0_i32 = arith.constant 0 : i32
    %c0_i32_0 = arith.constant 0 : i32
    %c0_i32_1 = arith.constant 0 : i32
    return %c0_i32, %c0_i32_0 : i32, i32
  }
  func.func @transform_2(%arg0: i32) -> (i32, i32) {
    %c0_i32 = arith.constant 0 : i32
    %c0_i32_0 = arith.constant 0 : i32
    %c0_i32_1 = arith.constant 0 : i32
    return %c0_i32, %c0_i32_0 : i32, i32
  }
  func.func @transform_3(%arg0: i32) -> (i32, i32) {
    %c0_i32 = arith.constant 0 : i32
    %c0_i32_0 = arith.constant 0 : i32
    %c0_i32_1 = arith.constant 0 : i32
    return %c0_i32, %c0_i32_0 : i32, i32
  }
  func.func @transform_4(%arg0: i32) -> (i32, i32) {
    %c0_i32 = arith.constant 0 : i32
    %c0_i32_0 = arith.constant 0 : i32
    %c0_i32_1 = arith.constant 0 : i32
    return %c0_i32, %c0_i32_0 : i32, i32
  }
  func.func @transform_5(%arg0: i32) -> (i32, i32) {
    %c0_i32 = arith.constant 0 : i32
    %c0_i32_0 = arith.constant 0 : i32
    %c0_i32_1 = arith.constant 0 : i32
    return %c0_i32, %c0_i32_0 : i32, i32
  }
  func.func @transform_6(%arg0: i32) -> (i32, i32) {
    %c0_i32 = arith.constant 0 : i32
    %c0_i32_0 = arith.constant 0 : i32
    %c0_i32_1 = arith.constant 0 : i32
    return %c0_i32, %c0_i32_0 : i32, i32
  }
  func.func @transform_7(%arg0: i32) -> (i32, i32) {
    %c0_i32 = arith.constant 0 : i32
    %c0_i32_0 = arith.constant 0 : i32
    %c0_i32_1 = arith.constant 0 : i32
    return %c0_i32, %c0_i32_0 : i32, i32
  }
  func.func @transform_8(%arg0: i32) -> (i32, i32) {
    %c0_i32 = arith.constant 0 : i32
    %c0_i32_0 = arith.constant 0 : i32
    %c0_i32_1 = arith.constant 0 : i32
    return %c0_i32, %c0_i32_0 : i32, i32
  }
  func.func @transform_9(%arg0: i32) -> (i32, i32) {
    %c0_i32 = arith.constant 0 : i32
    %c0_i32_0 = arith.constant 0 : i32
    return %arg0, %c0_i32 : i32, i32
  }
}

</mosaic_0001>

<llo_original>
// kernel: tpu_custom_call.1
$region0: #{tpu_custom_call.1}
  #allocation0 [shape = 'u32[]', space=smem, size = 0x4, offset = 0x4, fixed_abs, tag = 'smem constant byte address 0x4 - core index']
  #allocation1 [shape = 'u32[72,128]{1,0:T(1,128)}', space=vmem, size = 0x9000, scoped, tag = 'internal scratch']
  #allocation2 [shape = 'f32[1,1]{1,0:T(1,128)S(1)}', space=vmem, size = 0x200, scoped, tag = 'scoped memory for tpu_custom_call.1']
  %s0 = inlined_call_operand.vmem [shape: f32[8,4], index: 0, kind: input, shape index: {}]
  %s1 = inlined_call_operand.vmem [shape: bf16[4,640], index: 1, kind: input, shape index: {}]
  %s2 = inlined_call_operand.vmem [shape: f32[1,640], index: 2, kind: input, shape index: {}]
  %s3 = inlined_call_operand.hbm [shape: bf16[640,640], index: 3, kind: input, shape index: {}]
  %s4 = inlined_call_operand.hbm [shape: f32[1,640], index: 4, kind: input, shape index: {}]
  %s5 = inlined_call_operand.hbm [shape: bf16[640,640], index: 5, kind: input, shape index: {}]
  %s6 = inlined_call_operand.hbm [shape: f32[1,640], index: 6, kind: input, shape index: {}]
  %s7 = inlined_call_operand.vmem [shape: f32[1,640], index: 7, kind: input, shape index: {}]
  %s8 = inlined_call_operand.<no memory space> [shape: f32[1,1], index: 8, kind: input, shape index: {}]
  %s9 = inlined_call_operand.vmem [shape: f32[8,1], index: 9, kind: output, shape index: {}]
  %s10 = sld [smem:[#allocation0]]
  $region62: #{tpu_custom_call.1} parent=0
    _
  %s12 = ssub.s32 1, %s10
  %s13 = scalar_select 0, %s12, %s10
  %v14 = vstv %s8
  %15 = vst [vmem:[#allocation2] sm:$0x1] %v14
  $region1: #{tpu_custom_call.1} parent=0
    #allocation3 [shape = 'u8[819200]{0}', space=vmem, size = 0xc8000, scoped, tag = 'input window, operand 3, single buffered']
    #allocation4 [shape = 's32[1]{0}', space=sflag, size = 0x4, scoped, tag = 'scoped memory for tpu_custom_call.1']
    #allocation5 [shape = 'u8[2560]{0}', space=vmem, size = 0xc00, scoped, tag = 'input window, operand 4, single buffered']
    #allocation6 [shape = 's32[1]{0}', space=sflag, size = 0x4, scoped, tag = 'scoped memory for tpu_custom_call.1']
    #allocation7 [shape = 'u8[819200]{0}', space=vmem, size = 0xc8000, scoped, tag = 'input window, operand 5, single buffered']
    #allocation8 [shape = 'u8[2560]{0}', space=vmem, size = 0xc00, scoped, tag = 'input window, operand 6, single buffered']
    #allocation9 [shape = 's32[1]{0}', space=sflag, size = 0x4, scoped, tag = 'scoped memory for tpu_custom_call.1']
    %16 = vsyncpa [#allocation4], 0
    %17 = vsyncpa [#allocation6], 0
    %18 = vsyncpa [#allocation9], 0
    // Predicated region
    $region2: #{tpu_custom_call.1} parent=1 // pred_check
      _
    $region3: #{tpu_custom_call.1} parent=1 // pred_check_branch
      %20 = sbr.rel (0) target = $region5
    $region4: #{tpu_custom_call.1} parent=1 // pred_region
      _
    $region5: #{tpu_custom_call.1} parent=1 // pred_fallthru
      _
    // Predicated region
    $region6: #{tpu_custom_call.1} parent=1 // pred_check
      _
    $region7: #{tpu_custom_call.1} parent=1 // pred_check_branch
      %22 = sbr.rel (0) target = $region9
    $region8: #{tpu_custom_call.1} parent=1 // pred_region
      _
    $region9: #{tpu_custom_call.1} parent=1 // pred_fallthru
      _
    // Predicated region
    $region10: #{tpu_custom_call.1} parent=1 // pred_check
      _
    $region11: #{tpu_custom_call.1} parent=1 // pred_check_branch
      %24 = sbr.rel (0) target = $region13
    $region12: #{tpu_custom_call.1} parent=1 // pred_region
      _
    $region13: #{tpu_custom_call.1} parent=1 // pred_fallthru
      _
    // Predicated region
    $region14: #{tpu_custom_call.1} parent=1 // pred_check
      _
    $region15: #{tpu_custom_call.1} parent=1 // pred_check_branch
      %26 = sbr.rel (0) target = $region17
    $region16: #{tpu_custom_call.1} parent=1 // pred_region
      %28 = vsyncadd [#allocation4], 0
      %s29 = sshll.u32 %s3, 4
      %s30 = int_to_ptr.hbm [resolvable:$true] %s29
      %s31 = sshll.u32 [#allocation3], 4
      %s32 = int_to_ptr.vmem [resolvable:$true] %s31
      %37 = dma.hbm_to_vmem [thread:$0]  %s30, 25600, %s32, [#allocation4], 320, 320, 20
    $region17: #{tpu_custom_call.1} parent=1 // pred_fallthru
      _
    // Predicated region
    $region18: #{tpu_custom_call.1} parent=1 // pred_check
      _
    $region19: #{tpu_custom_call.1} parent=1 // pred_check_branch
      %39 = sbr.rel (0) target = $region21
    $region20: #{tpu_custom_call.1} parent=1 // pred_region
      %41 = vsyncadd [#allocation6], 0
      %s43 = sshll.u32 %s4, 4
      %s44 = int_to_ptr.hbm [resolvable:$true] %s43
      %s45 = sshll.u32 [#allocation5], 4
      %s46 = int_to_ptr.vmem [resolvable:$true] %s45
      %48 = dma.hbm_to_vmem [thread:$0]  %s44, 80, %s46, [#allocation6]
    $region21: #{tpu_custom_call.1} parent=1 // pred_fallthru
      _
    // Predicated region
    $region22: #{tpu_custom_call.1} parent=1 // pred_check
      _
    $region23: #{tpu_custom_call.1} parent=1 // pred_check_branch
      %50 = sbr.rel (0) target = $region25
    $region24: #{tpu_custom_call.1} parent=1 // pred_region
      %52 = vsyncadd [#allocation6], 0
      %s53 = sshll.u32 %s5, 4
      %s54 = int_to_ptr.hbm [resolvable:$true] %s53
      %s55 = sshll.u32 [#allocation7], 4
      %s56 = int_to_ptr.vmem [resolvable:$true] %s55
      %61 = dma.hbm_to_vmem [thread:$0]  %s54, 25600, %s56, [#allocation6], 320, 320, 20
    $region25: #{tpu_custom_call.1} parent=1 // pred_fallthru
      _
    // Predicated region
    $region26: #{tpu_custom_call.1} parent=1 // pred_check
      _
    $region27: #{tpu_custom_call.1} parent=1 // pred_check_branch
      %63 = sbr.rel (0) target = $region29
    $region28: #{tpu_custom_call.1} parent=1 // pred_region
      %65 = vsyncadd [#allocation9], 0
      %s67 = sshll.u32 %s6, 4
      %s68 = int_to_ptr.hbm [resolvable:$true] %s67
      %s69 = sshll.u32 [#allocation8], 4
      %s70 = int_to_ptr.vmem [resolvable:$true] %s69
      %72 = dma.hbm_to_vmem [thread:$0]  %s68, 80, %s70, [#allocation9]
    $region29: #{tpu_custom_call.1} parent=1 // pred_fallthru
      _
    // Predicated region
    $region30: #{tpu_custom_call.1} parent=1 // pred_check
      _
    $region31: #{tpu_custom_call.1} parent=1 // pred_check_branch
      %74 = sbr.rel (0) target = $region33
    $region32: #{tpu_custom_call.1} parent=1 // pred_region
      _
    $region33: #{tpu_custom_call.1} parent=1 // pred_fallthru
      _
    // Predicated region
    $region34: #{tpu_custom_call.1} parent=1 // pred_check
      _
    $region35: #{tpu_custom_call.1} parent=1 // pred_check_branch
      %76 = sbr.rel (0) target = $region37
    $region36: #{tpu_custom_call.1} parent=1 // pred_region
      _
    $region37: #{tpu_custom_call.1} parent=1 // pred_fallthru
      _
    // Predicated region
    $region38: #{tpu_custom_call.1} parent=1 // pred_check
      _
    $region39: #{tpu_custom_call.1} parent=1 // pred_check_branch
      %78 = sbr.rel (0) target = $region41
    $region40: #{tpu_custom_call.1} parent=1 // pred_region
      %80 = dma.done [#allocation4], 25600
    $region41: #{tpu_custom_call.1} parent=1 // pred_fallthru
      _
    // Predicated region
    $region42: #{tpu_custom_call.1} parent=1 // pred_check
      _
    $region43: #{tpu_custom_call.1} parent=1 // pred_check_branch
      %82 = sbr.rel (0) target = $region45
    $region44: #{tpu_custom_call.1} parent=1 // pred_region
      %84 = dma.done [#allocation6], 80
    $region45: #{tpu_custom_call.1} parent=1 // pred_fallthru
      _
    // Predicated region
    $region46: #{tpu_custom_call.1} parent=1 // pred_check
      _
    $region47: #{tpu_custom_call.1} parent=1 // pred_check_branch
      %86 = sbr.rel (0) target = $region49
    $region48: #{tpu_custom_call.1} parent=1 // pred_region
      %88 = dma.done [#allocation6], 25600
    $region49: #{tpu_custom_call.1} parent=1 // pred_fallthru
      _
    // Predicated region
    $region50: #{tpu_custom_call.1} parent=1 // pred_check
      _
    $region51: #{tpu_custom_call.1} parent=1 // pred_check_branch
      %90 = sbr.rel (0) target = $region53
    $region52: #{tpu_custom_call.1} parent=1 // pred_region
      %92 = dma.done [#allocation9], 80
    $region53: #{tpu_custom_call.1} parent=1 // pred_fallthru
      _
    %v94 = vld [vmem:[%s0] sm:$0xff]
    %v95 = vpack.c.bf16 %v94, %v94
    %v96 = vld [vmem:[%s1] sm:$0xff]
    %v97 = vld [vmem:[%s1 + $0x8] sm:$0x3]
    %v98 = vld [vmem:[%s2] sm:$0x1f]
    %v100 = vperm.slane %v98, 0
    %v101 = vperm.slane %v98, 1
    %v102 = vperm.slane %v98, 2
    %v103 = vperm.slane %v98, 3
    %v104 = vperm.slane %v98, 4
    %111 = vst [vmem:[#allocation1] ss:$4 sm:$0xff] %v96
    %s113 = scalar_lea.vmem [#allocation1], 32
    %114 = vst [vmem:[%s113] ss:$4 sm:$0xff] %v97
    %v115 = vld.sshfl [vmem:[#allocation1] sm:$0xff pattern:$0x73625140]
    %v116 = vld.sshfl [vmem:[#allocation1 + $0x8] sm:$0xff pattern:$0x73625140]
    %v117 = vld.sshfl [vmem:[#allocation1 + $0x10] sm:$0xff pattern:$0x73625140]
    %v118 = vld.sshfl [vmem:[#allocation1 + $0x18] sm:$0xff pattern:$0x73625140]
    %v119 = vld.sshfl [vmem:[#allocation1 + $0x20] sm:$0xff pattern:$0x73625140]
    %vm120 = vcmask 31744
    %v122 = vsel %vm120, %v95, 0
    %vm124 = vcmask 1041408
    %v125 = vsel %vm124, %v115, 0
    %v127 = vsel %vm124, %v116, 0
    %v129 = vsel %vm124, %v117, 0
    %v131 = vsel %vm124, %v118, 0
    %v133 = vsel %vm124, %v119, 0
    %135 = vmatpush.bf16.msra.mxu0 0
    %136 = vmatpush.bf16.msra.mxu0 0
    %137 = vmatpush.bf16.msra.mxu0 0
    %138 = vmatpush.bf16.msra.mxu0 0
    %139 = vmatpush.bf16.msra.mxu0 0
    %140 = vmatpush.bf16.msra.mxu0 0
    %141 = vmatpush.bf16.msra.mxu0 0
    %142 = vmatpush.bf16.msra.mxu0 %v125
    %143 = vmatmul.bf16.gmra.mxu0 %v122
    %v144 = vpop.f32.mrf.mxu0
    %v145 = vadd.f32 %v100, %v144
    %v146 = vpop.f32.mrf.mxu0
    %147 = vdwg.mxu0
    %148 = vmatpush.bf16.msra.mxu0 0
    %149 = vmatpush.bf16.msra.mxu0 0
    %150 = vmatpush.bf16.msra.mxu0 0
    %151 = vmatpush.bf16.msra.mxu0 0
    %152 = vmatpush.bf16.msra.mxu0 0
    %153 = vmatpush.bf16.msra.mxu0 0
    %154 = vmatpush.bf16.msra.mxu0 0
    %155 = vmatpush.bf16.msra.mxu0 %v127
    %156 = vmatmul.bf16.gmra.mxu0 %v122
    %v157 = vpop.f32.mrf.mxu0
    %v158 = vadd.f32 %v101, %v157
    %v159 = vpop.f32.mrf.mxu0
    %160 = vdwg.mxu0
    %161 = vmatpush.bf16.msra.mxu0 0
    %162 = vmatpush.bf16.msra.mxu0 0
    %163 = vmatpush.bf16.msra.mxu0 0
    %164 = vmatpush.bf16.msra.mxu0 0
    %165 = vmatpush.bf16.msra.mxu0 0
    %166 = vmatpush.bf16.msra.mxu0 0
    %167 = vmatpush.bf16.msra.mxu0 0
    %168 = vmatpush.bf16.msra.mxu0 %v129
    %169 = vmatmul.bf16.gmra.mxu0 %v122
    %v170 = vpop.f32.mrf.mxu0
    %v171 = vadd.f32 %v102, %v170
    %v172 = vpop.f32.mrf.mxu0
    %173 = vdwg.mxu0
    %174 = vmatpush.bf16.msra.mxu0 0
    %175 = vmatpush.bf16.msra.mxu0 0
    %176 = vmatpush.bf16.msra.mxu0 0
    %177 = vmatpush.bf16.msra.mxu0 0
    %178 = vmatpush.bf16.msra.mxu0 0
    %179 = vmatpush.bf16.msra.mxu0 0
    %180 = vmatpush.bf16.msra.mxu0 0
    %181 = vmatpush.bf16.msra.mxu0 %v131
    %182 = vmatmul.bf16.gmra.mxu0 %v122
    %v183 = vpop.f32.mrf.mxu0
    %v184 = vadd.f32 %v103, %v183
    %v185 = vpop.f32.mrf.mxu0
    %186 = vdwg.mxu0
    %187 = vmatpush.bf16.msra.mxu0 0
    %188 = vmatpush.bf16.msra.mxu0 0
    %189 = vmatpush.bf16.msra.mxu0 0
    %190 = vmatpush.bf16.msra.mxu0 0
    %191 = vmatpush.bf16.msra.mxu0 0
    %192 = vmatpush.bf16.msra.mxu0 0
    %193 = vmatpush.bf16.msra.mxu0 0
    %194 = vmatpush.bf16.msra.mxu0 %v133
    %195 = vmatmul.bf16.gmra.mxu0 %v122
    %v196 = vpop.f32.mrf.mxu0
    %v197 = vadd.f32 %v104, %v196
    %v198 = vpop.f32.mrf.mxu0
    %199 = vdwg.mxu0
    %v200 = vpack.c.bf16 %v145, %v145
    %v201 = vpack.c.bf16 %v158, %v158
    %v202 = vpack.c.bf16 %v171, %v171
    %v203 = vpack.c.bf16 %v184, %v184
    %v204 = vpack.c.bf16 %v197, %v197
    %v205 = vld [vmem:[#allocation3] sm:$0xff]
    %v206 = vld [vmem:[#allocation3 + $0x8] sm:$0xff]
    %v207 = vld [vmem:[#allocation3 + $0x10] sm:$0xf]
    %v208 = vld [vmem:[#allocation3 + $0x14] sm:$0xff]
    %v209 = vld [vmem:[#allocation3 + $0x1c] sm:$0xff]
    %v210 = vld [vmem:[#allocation3 + $0x24] sm:$0xf]
    %v211 = vld [vmem:[#allocation3 + $0x28] sm:$0xff]
    %v212 = vld [vmem:[#allocation3 + $0x30] sm:$0xff]
    %v213 = vld [vmem:[#allocation3 + $0x38] sm:$0xf]
    %v214 = vld [vmem:[#allocation3 + $0x3c] sm:$0xff]
    %v215 = vld [vmem:[#allocation3 + $0x44] sm:$0xff]
    %v216 = vld [vmem:[#allocation3 + $0x4c] sm:$0xf]
    %v217 = vld [vmem:[#allocation3 + $0x50] sm:$0xff]
    %v218 = vld [vmem:[#allocation3 + $0x58] sm:$0xff]
    %v219 = vld [vmem:[#allocation3 + $0x60] sm:$0xf]
    %v220 = vld [vmem:[#allocation3 + $0x64] sm:$0xff]
    %v221 = vld [vmem:[#allocation3 + $0x6c] sm:$0xff]
    %v222 = vld [vmem:[#allocation3 + $0x74] sm:$0xf]
    %v223 = vld [vmem:[#allocation3 + $0x78] sm:$0xff]
    %v224 = vld [vmem:[#allocation3 + $0x80] sm:$0xff]
    %v225 = vld [vmem:[#allocation3 + $0x88] sm:$0xf]
    %v226 = vld [vmem:[#allocation3 + $0x8c] sm:$0xff]
    %v227 = vld [vmem:[#allocation3 + $0x94] sm:$0xff]
    %v228 = vld [vmem:[#allocation3 + $0x9c] sm:$0xf]
    %v229 = vld [vmem:[#allocation3 + $0xa0] sm:$0xff]
    %v230 = vld [vmem:[#allocation3 + $0xa8] sm:$0xff]
    %v231 = vld [vmem:[#allocation3 + $0xb0] sm:$0xf]
    %v232 = vld [vmem:[#allocation3 + $0xb4] sm:$0xff]
    %v233 = vld [vmem:[#allocation3 + $0xbc] sm:$0xff]
    %v234 = vld [vmem:[#allocation3 + $0xc4] sm:$0xf]
    %v235 = vld [vmem:[#allocation3 + $0xc8] sm:$0xff]
    %v236 = vld [vmem:[#allocation3 + $0xd0] sm:$0xff]
    %v237 = vld [vmem:[#allocation3 + $0xd8] sm:$0xf]
    %v238 = vld [vmem:[#allocation3 + $0xdc] sm:$0xff]
    %v239 = vld [vmem:[#allocation3 + $0xe4] sm:$0xff]
    %v240 = vld [vmem:[#allocation3 + $0xec] sm:$0xf]
    %v241 = vld [vmem:[#allocation3 + $0xf0] sm:$0xff]
    %v242 = vld [vmem:[#allocation3 + $0xf8] sm:$0xff]
    %v243 = vld [vmem:[#allocation3 + $0x100] sm:$0xf]
    %v244 = vld [vmem:[#allocation3 + $0x104] sm:$0xff]
    %v245 = vld [vmem:[#allocation3 + $0x10c] sm:$0xff]
    %v246 = vld [vmem:[#allocation3 + $0x114] sm:$0xf]
    %v247 = vld [vmem:[#allocation3 + $0x118] sm:$0xff]
    %v248 = vld [vmem:[#allocation3 + $0x120] sm:$0xff]
    %v249 = vld [vmem:[#allocation3 + $0x128] sm:$0xf]
    %v250 = vld [vmem:[#allocation3 + $0x12c] sm:$0xff]
    %v251 = vld [vmem:[#allocation3 + $0x134] sm:$0xff]
    %v252 = vld [vmem:[#allocation3 + $0x13c] sm:$0xf]
    %v253 = vld [vmem:[#allocation3 + $0x140] sm:$0xff]
    %v254 = vld [vmem:[#allocation3 + $0x148] sm:$0xff]
    %v255 = vld [vmem:[#allocation3 + $0x150] sm:$0xf]
    %v256 = vld [vmem:[#allocation3 + $0x154] sm:$0xff]
    %v257 = vld [vmem:[#allocation3 + $0x15c] sm:$0xff]
    %v258 = vld [vmem:[#allocation3 + $0x164] sm:$0xf]
    %v259 = vld [vmem:[#allocation3 + $0x168] sm:$0xff]
    %v260 = vld [vmem:[#allocation3 + $0x170] sm:$0xff]
    %v261 = vld [vmem:[#allocation3 + $0x178] sm:$0xf]
    %v262 = vld [vmem:[#allocation3 + $0x17c] sm:$0xff]
    %v263 = vld [vmem:[#allocation3 + $0x184] sm:$0xff]
    %v264 = vld [vmem:[#allocation3 + $0x18c] sm:$0xf]
    %v265 = vld [vmem:[#allocation3 + $0x190] sm:$0xff]
    %v266 = vld [vmem:[#allocation3 + $0x198] sm:$0xff]
    %v267 = vld [vmem:[#allocation3 + $0x1a0] sm:$0xf]
    %v268 = vld [vmem:[#allocation3 + $0x1a4] sm:$0xff]
    %v269 = vld [vmem:[#allocation3 + $0x1ac] sm:$0xff]
    %v270 = vld [vmem:[#allocation3 + $0x1b4] sm:$0xf]
    %v271 = vld [vmem:[#allocation3 + $0x1b8] sm:$0xff]
    %v272 = vld [vmem:[#allocation3 + $0x1c0] sm:$0xff]
    %v273 = vld [vmem:[#allocation3 + $0x1c8] sm:$0xf]
    %v274 = vld [vmem:[#allocation3 + $0x1cc] sm:$0xff]
    %v275 = vld [vmem:[#allocation3 + $0x1d4] sm:$0xff]
    %v276 = vld [vmem:[#allocation3 + $0x1dc] sm:$0xf]
    %v277 = vld [vmem:[#allocation3 + $0x1e0] sm:$0xff]
    %v278 = vld [vmem:[#allocation3 + $0x1e8] sm:$0xff]
    %v279 = vld [vmem:[#allocation3 + $0x1f0] sm:$0xf]
    %v280 = vld [vmem:[#allocation3 + $0x1f4] sm:$0xff]
    %v281 = vld [vmem:[#allocation3 + $0x1fc] sm:$0xff]
    %v282 = vld [vmem:[#allocation3 + $0x204] sm:$0xf]
    %v283 = vld [vmem:[#allocation3 + $0x208] sm:$0xff]
    %v284 = vld [vmem:[#allocation3 + $0x210] sm:$0xff]
    %v285 = vld [vmem:[#allocation3 + $0x218] sm:$0xf]
    %v286 = vld [vmem:[#allocation3 + $0x21c] sm:$0xff]
    %v287 = vld [vmem:[#allocation3 + $0x224] sm:$0xff]
    %v288 = vld [vmem:[#allocation3 + $0x22c] sm:$0xf]
    %v289 = vld [vmem:[#allocation3 + $0x230] sm:$0xff]
    %v290 = vld [vmem:[#allocation3 + $0x238] sm:$0xff]
    %v291 = vld [vmem:[#allocation3 + $0x240] sm:$0xf]
    %v292 = vld [vmem:[#allocation3 + $0x244] sm:$0xff]
    %v293 = vld [vmem:[#allocation3 + $0x24c] sm:$0xff]
    %v294 = vld [vmem:[#allocation3 + $0x254] sm:$0xf]
    %v295 = vld [vmem:[#allocation3 + $0x258] sm:$0xff]
    %v296 = vld [vmem:[#allocation3 + $0x260] sm:$0xff]
    %v297 = vld [vmem:[#allocation3 + $0x268] sm:$0xf]
    %v298 = vld [vmem:[#allocation3 + $0x26c] sm:$0xff]
    %v299 = vld [vmem:[#allocation3 + $0x274] sm:$0xff]
    %v300 = vld [vmem:[#allocation3 + $0x27c] sm:$0xf]
    %v301 = vld [vmem:[#allocation3 + $0x280] sm:$0xff]
    %v302 = vld [vmem:[#allocation3 + $0x288] sm:$0xff]
    %v303 = vld [vmem:[#allocation3 + $0x290] sm:$0xf]
    %v304 = vld [vmem:[#allocation3 + $0x294] sm:$0xff]
    %v305 = vld [vmem:[#allocation3 + $0x29c] sm:$0xff]
    %v306 = vld [vmem:[#allocation3 + $0x2a4] sm:$0xf]
    %v307 = vld [vmem:[#allocation3 + $0x2a8] sm:$0xff]
    %v308 = vld [vmem:[#allocation3 + $0x2b0] sm:$0xff]
    %v309 = vld [vmem:[#allocation3 + $0x2b8] sm:$0xf]
    %v310 = vld [vmem:[#allocation3 + $0x2bc] sm:$0xff]
    %v311 = vld [vmem:[#allocation3 + $0x2c4] sm:$0xff]
    %v312 = vld [vmem:[#allocation3 + $0x2cc] sm:$0xf]
    %v313 = vld [vmem:[#allocation3 + $0x2d0] sm:$0xff]
    %v314 = vld [vmem:[#allocation3 + $0x2d8] sm:$0xff]
    %v315 = vld [vmem:[#allocation3 + $0x2e0] sm:$0xf]
    %v316 = vld [vmem:[#allocation3 + $0x2e4] sm:$0xff]
    %v317 = vld [vmem:[#allocation3 + $0x2ec] sm:$0xff]
    %v318 = vld [vmem:[#allocation3 + $0x2f4] sm:$0xf]
    %v319 = vld [vmem:[#allocation3 + $0x2f8] sm:$0xff]
    %v320 = vld [vmem:[#allocation3 + $0x300] sm:$0xff]
    %v321 = vld [vmem:[#allocation3 + $0x308] sm:$0xf]
    %v322 = vld [vmem:[#allocation3 + $0x30c] sm:$0xff]
    %v323 = vld [vmem:[#allocation3 + $0x314] sm:$0xff]
    %v324 = vld [vmem:[#allocation3 + $0x31c] sm:$0xf]
    %v325 = vld [vmem:[#allocation3 + $0x320] sm:$0xff]
    %v326 = vld [vmem:[#allocation3 + $0x328] sm:$0xff]
    %v327 = vld [vmem:[#allocation3 + $0x330] sm:$0xf]
    %v328 = vld [vmem:[#allocation3 + $0x334] sm:$0xff]
    %v329 = vld [vmem:[#allocation3 + $0x33c] sm:$0xff]
    %v330 = vld [vmem:[#allocation3 + $0x344] sm:$0xf]
    %v331 = vld [vmem:[#allocation3 + $0x348] sm:$0xff]
    %v332 = vld [vmem:[#allocation3 + $0x350] sm:$0xff]
    %v333 = vld [vmem:[#allocation3 + $0x358] sm:$0xf]
    %v334 = vld [vmem:[#allocation3 + $0x35c] sm:$0xff]
    %v335 = vld [vmem:[#allocation3 + $0x364] sm:$0xff]
    %v336 = vld [vmem:[#allocation3 + $0x36c] sm:$0xf]
    %v337 = vld [vmem:[#allocation3 + $0x370] sm:$0xff]
    %v338 = vld [vmem:[#allocation3 + $0x378] sm:$0xff]
    %v339 = vld [vmem:[#allocation3 + $0x380] sm:$0xf]
    %v340 = vld [vmem:[#allocation3 + $0x384] sm:$0xff]
    %v341 = vld [vmem:[#allocation3 + $0x38c] sm:$0xff]
    %v342 = vld [vmem:[#allocation3 + $0x394] sm:$0xf]
    %v343 = vld [vmem:[#allocation3 + $0x398] sm:$0xff]
    %v344 = vld [vmem:[#allocation3 + $0x3a0] sm:$0xff]
    %v345 = vld [vmem:[#allocation3 + $0x3a8] sm:$0xf]
    %v346 = vld [vmem:[#allocation3 + $0x3ac] sm:$0xff]
    %v347 = vld [vmem:[#allocation3 + $0x3b4] sm:$0xff]
    %v348 = vld [vmem:[#allocation3 + $0x3bc] sm:$0xf]
    %v349 = vld [vmem:[#allocation3 + $0x3c0] sm:$0xff]
    %v350 = vld [vmem:[#allocation3 + $0x3c8] sm:$0xff]
    %v351 = vld [vmem:[#allocation3 + $0x3d0] sm:$0xf]
    %v352 = vld [vmem:[#allocation3 + $0x3d4] sm:$0xff]
    %v353 = vld [vmem:[#allocation3 + $0x3dc] sm:$0xff]
    %v354 = vld [vmem:[#allocation3 + $0x3e4] sm:$0xf]
    %v355 = vld [vmem:[#allocation3 + $0x3e8] sm:$0xff]
    %v356 = vld [vmem:[#allocation3 + $0x3f0] sm:$0xff]
    %v357 = vld [vmem:[#allocation3 + $0x3f8] sm:$0xf]
    %v358 = vld [vmem:[#allocation3 + $0x3fc] sm:$0xff]
    %v359 = vld [vmem:[#allocation3 + $0x404] sm:$0xff]
    %v360 = vld [vmem:[#allocation3 + $0x40c] sm:$0xf]
    %v361 = vld [vmem:[#allocation3 + $0x410] sm:$0xff]
    %v362 = vld [vmem:[#allocation3 + $0x418] sm:$0xff]
    %v363 = vld [vmem:[#allocation3 + $0x420] sm:$0xf]
    %v364 = vld [vmem:[#allocation3 + $0x424] sm:$0xff]
    %v365 = vld [vmem:[#allocation3 + $0x42c] sm:$0xff]
    %v366 = vld [vmem:[#allocation3 + $0x434] sm:$0xf]
    %v367 = vld [vmem:[#allocation3 + $0x438] sm:$0xff]
    %v368 = vld [vmem:[#allocation3 + $0x440] sm:$0xff]
    %v369 = vld [vmem:[#allocation3 + $0x448] sm:$0xf]
    %v370 = vld [vmem:[#allocation3 + $0x44c] sm:$0xff]
    %v371 = vld [vmem:[#allocation3 + $0x454] sm:$0xff]
    %v372 = vld [vmem:[#allocation3 + $0x45c] sm:$0xf]
    %v373 = vld [vmem:[#allocation3 + $0x460] sm:$0xff]
    %v374 = vld [vmem:[#allocation3 + $0x468] sm:$0xff]
    %v375 = vld [vmem:[#allocation3 + $0x470] sm:$0xf]
    %v376 = vld [vmem:[#allocation3 + $0x474] sm:$0xff]
    %v377 = vld [vmem:[#allocation3 + $0x47c] sm:$0xff]
    %v378 = vld [vmem:[#allocation3 + $0x484] sm:$0xf]
    %v379 = vld [vmem:[#allocation3 + $0x488] sm:$0xff]
    %v380 = vld [vmem:[#allocation3 + $0x490] sm:$0xff]
    %v381 = vld [vmem:[#allocation3 + $0x498] sm:$0xf]
    %v382 = vld [vmem:[#allocation3 + $0x49c] sm:$0xff]
    %v383 = vld [vmem:[#allocation3 + $0x4a4] sm:$0xff]
    %v384 = vld [vmem:[#allocation3 + $0x4ac] sm:$0xf]
    %v385 = vld [vmem:[#allocation3 + $0x4b0] sm:$0xff]
    %v386 = vld [vmem:[#allocation3 + $0x4b8] sm:$0xff]
    %v387 = vld [vmem:[#allocation3 + $0x4c0] sm:$0xf]
    %v388 = vld [vmem:[#allocation3 + $0x4c4] sm:$0xff]
    %v389 = vld [vmem:[#allocation3 + $0x4cc] sm:$0xff]
    %v390 = vld [vmem:[#allocation3 + $0x4d4] sm:$0xf]
    %v391 = vld [vmem:[#allocation3 + $0x4d8] sm:$0xff]
    %v392 = vld [vmem:[#allocation3 + $0x4e0] sm:$0xff]
    %v393 = vld [vmem:[#allocation3 + $0x4e8] sm:$0xf]
    %v394 = vld [vmem:[#allocation3 + $0x4ec] sm:$0xff]
    %v395 = vld [vmem:[#allocation3 + $0x4f4] sm:$0xff]
    %v396 = vld [vmem:[#allocation3 + $0x4fc] sm:$0xf]
    %v397 = vld [vmem:[#allocation3 + $0x500] sm:$0xff]
    %v398 = vld [vmem:[#allocation3 + $0x508] sm:$0xff]
    %v399 = vld [vmem:[#allocation3 + $0x510] sm:$0xf]
    %v400 = vld [vmem:[#allocation3 + $0x514] sm:$0xff]
    %v401 = vld [vmem:[#allocation3 + $0x51c] sm:$0xff]
    %v402 = vld [vmem:[#allocation3 + $0x524] sm:$0xf]
    %v403 = vld [vmem:[#allocation3 + $0x528] sm:$0xff]
    %v404 = vld [vmem:[#allocation3 + $0x530] sm:$0xff]
    %v405 = vld [vmem:[#allocation3 + $0x538] sm:$0xf]
    %v406 = vld [vmem:[#allocation3 + $0x53c] sm:$0xff]
    %v407 = vld [vmem:[#allocation3 + $0x544] sm:$0xff]
    %v408 = vld [vmem:[#allocation3 + $0x54c] sm:$0xf]
    %v409 = vld [vmem:[#allocation3 + $0x550] sm:$0xff]
    %v410 = vld [vmem:[#allocation3 + $0x558] sm:$0xff]
    %v411 = vld [vmem:[#allocation3 + $0x560] sm:$0xf]
    %v412 = vld [vmem:[#allocation3 + $0x564] sm:$0xff]
    %v413 = vld [vmem:[#allocation3 + $0x56c] sm:$0xff]
    %v414 = vld [vmem:[#allocation3 + $0x574] sm:$0xf]
    %v415 = vld [vmem:[#allocation3 + $0x578] sm:$0xff]
    %v416 = vld [vmem:[#allocation3 + $0x580] sm:$0xff]
    %v417 = vld [vmem:[#allocation3 + $0x588] sm:$0xf]
    %v418 = vld [vmem:[#allocation3 + $0x58c] sm:$0xff]
    %v419 = vld [vmem:[#allocation3 + $0x594] sm:$0xff]
    %v420 = vld [vmem:[#allocation3 + $0x59c] sm:$0xf]
    %v421 = vld [vmem:[#allocation3 + $0x5a0] sm:$0xff]
    %v422 = vld [vmem:[#allocation3 + $0x5a8] sm:$0xff]
    %v423 = vld [vmem:[#allocation3 + $0x5b0] sm:$0xf]
    %v424 = vld [vmem:[#allocation3 + $0x5b4] sm:$0xff]
    %v425 = vld [vmem:[#allocation3 + $0x5bc] sm:$0xff]
    %v426 = vld [vmem:[#allocation3 + $0x5c4] sm:$0xf]
    %v427 = vld [vmem:[#allocation3 + $0x5c8] sm:$0xff]
    %v428 = vld [vmem:[#allocation3 + $0x5d0] sm:$0xff]
    %v429 = vld [vmem:[#allocation3 + $0x5d8] sm:$0xf]
    %v430 = vld [vmem:[#allocation3 + $0x5dc] sm:$0xff]
    %v431 = vld [vmem:[#allocation3 + $0x5e4] sm:$0xff]
    %v432 = vld [vmem:[#allocation3 + $0x5ec] sm:$0xf]
    %v433 = vld [vmem:[#allocation3 + $0x5f0] sm:$0xff]
    %v434 = vld [vmem:[#allocation3 + $0x5f8] sm:$0xff]
    %v435 = vld [vmem:[#allocation3 + $0x600] sm:$0xf]
    %v436 = vld [vmem:[#allocation3 + $0x604] sm:$0xff]
    %v437 = vld [vmem:[#allocation3 + $0x60c] sm:$0xff]
    %v438 = vld [vmem:[#allocation3 + $0x614] sm:$0xf]
    %v439 = vld [vmem:[#allocation3 + $0x618] sm:$0xff]
    %v440 = vld [vmem:[#allocation3 + $0x620] sm:$0xff]
    %v441 = vld [vmem:[#allocation3 + $0x628] sm:$0xf]
    %v442 = vld [vmem:[#allocation3 + $0x62c] sm:$0xff]
    %v443 = vld [vmem:[#allocation3 + $0x634] sm:$0xff]
    %v444 = vld [vmem:[#allocation3 + $0x63c] sm:$0xf]
    %v445 = vld [vmem:[#allocation5] sm:$0x1f]
    %v447 = vperm.slane %v445, 0
    %v448 = vperm.slane %v445, 1
    %v449 = vperm.slane %v445, 2
    %v450 = vperm.slane %v445, 3
    %v451 = vperm.slane %v445, 4
    %v697 = vunpack.c.l.b16 %v205
    %v698 = vunpack.c.h.b16 %v205
    %v699 = vunpack.c.l.b16 %v206
    %v700 = vunpack.c.h.b16 %v206
    %v701 = vunpack.c.l.b16 %v207
    %v702 = vunpack.c.l.b16 %v208
    %v703 = vunpack.c.h.b16 %v208
    %v704 = vunpack.c.l.b16 %v209
    %v705 = vunpack.c.h.b16 %v209
    %v706 = vunpack.c.l.b16 %v210
    %v707 = vunpack.c.l.b16 %v211
    %v708 = vunpack.c.h.b16 %v211
    %v709 = vunpack.c.l.b16 %v212
    %v710 = vunpack.c.h.b16 %v212
    %v711 = vunpack.c.l.b16 %v213
    %v712 = vunpack.c.l.b16 %v214
    %v713 = vunpack.c.h.b16 %v214
    %v714 = vunpack.c.l.b16 %v215
    %v715 = vunpack.c.h.b16 %v215
    %v716 = vunpack.c.l.b16 %v216
    %v717 = vunpack.c.l.b16 %v217
    %v718 = vunpack.c.h.b16 %v217
    %v719 = vunpack.c.l.b16 %v218
    %v720 = vunpack.c.h.b16 %v218
    %v721 = vunpack.c.l.b16 %v219
    %v722 = vunpack.c.l.b16 %v220
    %v723 = vunpack.c.h.b16 %v220
    %v724 = vunpack.c.l.b16 %v221
    %v725 = vunpack.c.h.b16 %v221
    %v726 = vunpack.c.l.b16 %v222
    %v727 = vunpack.c.l.b16 %v223
    %v728 = vunpack.c.h.b16 %v223
    %v729 = vunpack.c.l.b16 %v224
    %v730 = vunpack.c.h.b16 %v224
    %v731 = vunpack.c.l.b16 %v225
    %v732 = vunpack.c.l.b16 %v226
    %v733 = vunpack.c.h.b16 %v226
    %v734 = vunpack.c.l.b16 %v227
    %v735 = vunpack.c.h.b16 %v227
    %v736 = vunpack.c.l.b16 %v228
    %v737 = vunpack.c.l.b16 %v229
    %v738 = vunpack.c.h.b16 %v229
    %v739 = vunpack.c.l.b16 %v230
    %v740 = vunpack.c.h.b16 %v230
    %v741 = vunpack.c.l.b16 %v231
    %v742 = vunpack.c.l.b16 %v232
    %v743 = vunpack.c.h.b16 %v232
    %v744 = vunpack.c.l.b16 %v233
    %v745 = vunpack.c.h.b16 %v233
    %v746 = vunpack.c.l.b16 %v234
    %v747 = vunpack.c.l.b16 %v235
    %v748 = vunpack.c.h.b16 %v235
    %v749 = vunpack.c.l.b16 %v236
    %v750 = vunpack.c.h.b16 %v236
    %v751 = vunpack.c.l.b16 %v237
    %v752 = vunpack.c.l.b16 %v238
    %v753 = vunpack.c.h.b16 %v238
    %v754 = vunpack.c.l.b16 %v239
    %v755 = vunpack.c.h.b16 %v239
    %v756 = vunpack.c.l.b16 %v240
    %v757 = vunpack.c.l.b16 %v241
    %v758 = vunpack.c.h.b16 %v241
    %v759 = vunpack.c.l.b16 %v242
    %v760 = vunpack.c.h.b16 %v242
    %v761 = vunpack.c.l.b16 %v243
    %v762 = vunpack.c.l.b16 %v244
    %v763 = vunpack.c.h.b16 %v244
    %v764 = vunpack.c.l.b16 %v245
    %v765 = vunpack.c.h.b16 %v245
    %v766 = vunpack.c.l.b16 %v246
    %v767 = vunpack.c.l.b16 %v247
    %v768 = vunpack.c.h.b16 %v247
    %v769 = vunpack.c.l.b16 %v248
    %v770 = vunpack.c.h.b16 %v248
    %v771 = vunpack.c.l.b16 %v249
    %v772 = vunpack.c.l.b16 %v250
    %v773 = vunpack.c.h.b16 %v250
    %v774 = vunpack.c.l.b16 %v251
    %v775 = vunpack.c.h.b16 %v251
    %v776 = vunpack.c.l.b16 %v252
    %v777 = vunpack.c.l.b16 %v253
    %v778 = vunpack.c.h.b16 %v253
    %v779 = vunpack.c.l.b16 %v254
    %v780 = vunpack.c.h.b16 %v254
    %v781 = vunpack.c.l.b16 %v255
    %v782 = vunpack.c.l.b16 %v256
    %v783 = vunpack.c.h.b16 %v256
    %v784 = vunpack.c.l.b16 %v257
    %v785 = vunpack.c.h.b16 %v257
    %v786 = vunpack.c.l.b16 %v258
    %v787 = vunpack.c.l.b16 %v259
    %v788 = vunpack.c.h.b16 %v259
    %v789 = vunpack.c.l.b16 %v260
    %v790 = vunpack.c.h.b16 %v260
    %v791 = vunpack.c.l.b16 %v261
    %v792 = vunpack.c.l.b16 %v262
    %v793 = vunpack.c.h.b16 %v262
    %v794 = vunpack.c.l.b16 %v263
    %v795 = vunpack.c.h.b16 %v263
    %v796 = vunpack.c.l.b16 %v264
    %v797 = vunpack.c.l.b16 %v265
    %v798 = vunpack.c.h.b16 %v265
    %v799 = vunpack.c.l.b16 %v266
    %v800 = vunpack.c.h.b16 %v266
    %v801 = vunpack.c.l.b16 %v267
    %v802 = vunpack.c.l.b16 %v268
    %v803 = vunpack.c.h.b16 %v268
    %v804 = vunpack.c.l.b16 %v269
    %v805 = vunpack.c.h.b16 %v269
    %v806 = vunpack.c.l.b16 %v270
    %v807 = vunpack.c.l.b16 %v271
    %v808 = vunpack.c.h.b16 %v271
    %v809 = vunpack.c.l.b16 %v272
    %v810 = vunpack.c.h.b16 %v272
    %v811 = vunpack.c.l.b16 %v273
    %v812 = vunpack.c.l.b16 %v274
    %v813 = vunpack.c.h.b16 %v274
    %v814 = vunpack.c.l.b16 %v275
    %v815 = vunpack.c.h.b16 %v275
    %v816 = vunpack.c.l.b16 %v276
    %v817 = vunpack.c.l.b16 %v277
    %v818 = vunpack.c.h.b16 %v277
    %v819 = vunpack.c.l.b16 %v278
    %v820 = vunpack.c.h.b16 %v278
    %v821 = vunpack.c.l.b16 %v279
    %v822 = vunpack.c.l.b16 %v280
    %v823 = vunpack.c.h.b16 %v280
    %v824 = vunpack.c.l.b16 %v281
    %v825 = vunpack.c.h.b16 %v281
    %v826 = vunpack.c.l.b16 %v282
    %v827 = vunpack.c.l.b16 %v283
    %v828 = vunpack.c.h.b16 %v283
    %v829 = vunpack.c.l.b16 %v284
    %v830 = vunpack.c.h.b16 %v284
    %v831 = vunpack.c.l.b16 %v285
    %v832 = vunpack.c.l.b16 %v286
    %v833 = vunpack.c.h.b16 %v286
    %v834 = vunpack.c.l.b16 %v287
    %v835 = vunpack.c.h.b16 %v287
    %v836 = vunpack.c.l.b16 %v288
    %v837 = vunpack.c.l.b16 %v289
    %v838 = vunpack.c.h.b16 %v289
    %v839 = vunpack.c.l.b16 %v290
    %v840 = vunpack.c.h.b16 %v290
    %v841 = vunpack.c.l.b16 %v291
    %v842 = vunpack.c.l.b16 %v292
    %v843 = vunpack.c.h.b16 %v292
    %v844 = vunpack.c.l.b16 %v293
    %v845 = vunpack.c.h.b16 %v293
    %v846 = vunpack.c.l.b16 %v294
    %v847 = vunpack.c.l.b16 %v295
    %v848 = vunpack.c.h.b16 %v295
    %v849 = vunpack.c.l.b16 %v296
    %v850 = vunpack.c.h.b16 %v296
    %v851 = vunpack.c.l.b16 %v297
    %v852 = vunpack.c.l.b16 %v298
    %v853 = vunpack.c.h.b16 %v298
    %v854 = vunpack.c.l.b16 %v299
    %v855 = vunpack.c.h.b16 %v299
    %v856 = vunpack.c.l.b16 %v300
    %v857 = vunpack.c.l.b16 %v301
    %v858 = vunpack.c.h.b16 %v301
    %v859 = vunpack.c.l.b16 %v302
    %v860 = vunpack.c.h.b16 %v302
    %v861 = vunpack.c.l.b16 %v303
    %v862 = vunpack.c.l.b16 %v304
    %v863 = vunpack.c.h.b16 %v304
    %v864 = vunpack.c.l.b16 %v305
    %v865 = vunpack.c.h.b16 %v305
    %v866 = vunpack.c.l.b16 %v306
    %v867 = vunpack.c.l.b16 %v307
    %v868 = vunpack.c.h.b16 %v307
    %v869 = vunpack.c.l.b16 %v308
    %v870 = vunpack.c.h.b16 %v308
    %v871 = vunpack.c.l.b16 %v309
    %v872 = vunpack.c.l.b16 %v310
    %v873 = vunpack.c.h.b16 %v310
    %v874 = vunpack.c.l.b16 %v311
    %v875 = vunpack.c.h.b16 %v311
    %v876 = vunpack.c.l.b16 %v312
    %v877 = vunpack.c.l.b16 %v313
    %v878 = vunpack.c.h.b16 %v313
    %v879 = vunpack.c.l.b16 %v314
    %v880 = vunpack.c.h.b16 %v314
    %v881 = vunpack.c.l.b16 %v315
    %v882 = vunpack.c.l.b16 %v316
    %v883 = vunpack.c.h.b16 %v316
    %v884 = vunpack.c.l.b16 %v317
    %v885 = vunpack.c.h.b16 %v317
    %v886 = vunpack.c.l.b16 %v318
    %v887 = vunpack.c.l.b16 %v319
    %v888 = vunpack.c.h.b16 %v319
    %v889 = vunpack.c.l.b16 %v320
    %v890 = vunpack.c.h.b16 %v320
    %v891 = vunpack.c.l.b16 %v321
    %v892 = vunpack.c.l.b16 %v322
    %v893 = vunpack.c.h.b16 %v322
    %v894 = vunpack.c.l.b16 %v323
    %v895 = vunpack.c.h.b16 %v323
    %v896 = vunpack.c.l.b16 %v324
    %v897 = vunpack.c.l.b16 %v325
    %v898 = vunpack.c.h.b16 %v325
    %v899 = vunpack.c.l.b16 %v326
    %v900 = vunpack.c.h.b16 %v326
    %v901 = vunpack.c.l.b16 %v327
    %v902 = vunpack.c.l.b16 %v328
    %v903 = vunpack.c.h.b16 %v328
    %v904 = vunpack.c.l.b16 %v329
    %v905 = vunpack.c.h.b16 %v329
    %v906 = vunpack.c.l.b16 %v330
    %v907 = vunpack.c.l.b16 %v331
    %v908 = vunpack.c.h.b16 %v331
    %v909 = vunpack.c.l.b16 %v332
    %v910 = vunpack.c.h.b16 %v332
    %v911 = vunpack.c.l.b16 %v333
    %v912 = vunpack.c.l.b16 %v334
    %v913 = vunpack.c.h.b16 %v334
    %v914 = vunpack.c.l.b16 %v335
    %v915 = vunpack.c.h.b16 %v335
    %v916 = vunpack.c.l.b16 %v336
    %v917 = vunpack.c.l.b16 %v337
    %v918 = vunpack.c.h.b16 %v337
    %v919 = vunpack.c.l.b16 %v338
    %v920 = vunpack.c.h.b16 %v338
    %v921 = vunpack.c.l.b16 %v339
    %v922 = vunpack.c.l.b16 %v340
    %v923 = vunpack.c.h.b16 %v340
    %v924 = vunpack.c.l.b16 %v341
    %v925 = vunpack.c.h.b16 %v341
    %v926 = vunpack.c.l.b16 %v342
    %v927 = vunpack.c.l.b16 %v343
    %v928 = vunpack.c.h.b16 %v343
    %v929 = vunpack.c.l.b16 %v344
    %v930 = vunpack.c.h.b16 %v344
    %v931 = vunpack.c.l.b16 %v345
    %v932 = vunpack.c.l.b16 %v346
    %v933 = vunpack.c.h.b16 %v346
    %v934 = vunpack.c.l.b16 %v347
    %v935 = vunpack.c.h.b16 %v347
    %v936 = vunpack.c.l.b16 %v348
    %v937 = vunpack.c.l.b16 %v349
    %v938 = vunpack.c.h.b16 %v349
    %v939 = vunpack.c.l.b16 %v350
    %v940 = vunpack.c.h.b16 %v350
    %v941 = vunpack.c.l.b16 %v351
    %v942 = vunpack.c.l.b16 %v352
    %v943 = vunpack.c.h.b16 %v352
    %v944 = vunpack.c.l.b16 %v353
    %v945 = vunpack.c.h.b16 %v353
    %v946 = vunpack.c.l.b16 %v354
    %v947 = vunpack.c.l.b16 %v355
    %v948 = vunpack.c.h.b16 %v355
    %v949 = vunpack.c.l.b16 %v356
    %v950 = vunpack.c.h.b16 %v356
    %v951 = vunpack.c.l.b16 %v357
    %v952 = vunpack.c.l.b16 %v358
    %v953 = vunpack.c.h.b16 %v358
    %v954 = vunpack.c.l.b16 %v359
    %v955 = vunpack.c.h.b16 %v359
    %v956 = vunpack.c.l.b16 %v360
    %v957 = vunpack.c.l.b16 %v361
    %v958 = vunpack.c.h.b16 %v361
    %v959 = vunpack.c.l.b16 %v362
    %v960 = vunpack.c.h.b16 %v362
    %v961 = vunpack.c.l.b16 %v363
    %v962 = vunpack.c.l.b16 %v364
    %v963 = vunpack.c.h.b16 %v364
    %v964 = vunpack.c.l.b16 %v365
    %v965 = vunpack.c.h.b16 %v365
    %v966 = vunpack.c.l.b16 %v366
    %v967 = vunpack.c.l.b16 %v367
    %v968 = vunpack.c.h.b16 %v367
    %v969 = vunpack.c.l.b16 %v368
    %v970 = vunpack.c.h.b16 %v368
    %v971 = vunpack.c.l.b16 %v369
    %v972 = vunpack.c.l.b16 %v370
    %v973 = vunpack.c.h.b16 %v370
    %v974 = vunpack.c.l.b16 %v371
    %v975 = vunpack.c.h.b16 %v371
    %v976 = vunpack.c.l.b16 %v372
    %v977 = vunpack.c.l.b16 %v373
    %v978 = vunpack.c.h.b16 %v373
    %v979 = vunpack.c.l.b16 %v374
    %v980 = vunpack.c.h.b16 %v374
    %v981 = vunpack.c.l.b16 %v375
    %v982 = vunpack.c.l.b16 %v376
    %v983 = vunpack.c.h.b16 %v376
    %v984 = vunpack.c.l.b16 %v377
    %v985 = vunpack.c.h.b16 %v377
    %v986 = vunpack.c.l.b16 %v378
    %v987 = vunpack.c.l.b16 %v379
    %v988 = vunpack.c.h.b16 %v379
    %v989 = vunpack.c.l.b16 %v380
    %v990 = vunpack.c.h.b16 %v380
    %v991 = vunpack.c.l.b16 %v381
    %v992 = vunpack.c.l.b16 %v382
    %v993 = vunpack.c.h.b16 %v382
    %v994 = vunpack.c.l.b16 %v383
    %v995 = vunpack.c.h.b16 %v383
    %v996 = vunpack.c.l.b16 %v384
    %v997 = vunpack.c.l.b16 %v385
    %v998 = vunpack.c.h.b16 %v385
    %v999 = vunpack.c.l.b16 %v386
    %v1000 = vunpack.c.h.b16 %v386
    %v1001 = vunpack.c.l.b16 %v387
    %v1002 = vunpack.c.l.b16 %v388
    %v1003 = vunpack.c.h.b16 %v388
    %v1004 = vunpack.c.l.b16 %v389
    %v1005 = vunpack.c.h.b16 %v389
    %v1006 = vunpack.c.l.b16 %v390
    %v1007 = vunpack.c.l.b16 %v391
    %v1008 = vunpack.c.h.b16 %v391
    %v1009 = vunpack.c.l.b16 %v392
    %v1010 = vunpack.c.h.b16 %v392
    %v1011 = vunpack.c.l.b16 %v393
    %v1012 = vunpack.c.l.b16 %v394
    %v1013 = vunpack.c.h.b16 %v394
    %v1014 = vunpack.c.l.b16 %v395
    %v1015 = vunpack.c.h.b16 %v395
    %v1016 = vunpack.c.l.b16 %v396
    %v1017 = vunpack.c.l.b16 %v397
    %v1018 = vunpack.c.h.b16 %v397
    %v1019 = vunpack.c.l.b16 %v398
    %v1020 = vunpack.c.h.b16 %v398
    %v1021 = vunpack.c.l.b16 %v399
    %v1022 = vunpack.c.l.b16 %v400
    %v1023 = vunpack.c.h.b16 %v400
    %v1024 = vunpack.c.l.b16 %v401
    %v1025 = vunpack.c.h.b16 %v401
    %v1026 = vunpack.c.l.b16 %v402
    %v1027 = vunpack.c.l.b16 %v403
    %v1028 = vunpack.c.h.b16 %v403
    %v1029 = vunpack.c.l.b16 %v404
    %v1030 = vunpack.c.h.b16 %v404
    %v1031 = vunpack.c.l.b16 %v405
    %v1032 = vunpack.c.l.b16 %v406
    %v1033 = vunpack.c.h.b16 %v406
    %v1034 = vunpack.c.l.b16 %v407
    %v1035 = vunpack.c.h.b16 %v407
    %v1036 = vunpack.c.l.b16 %v408
    %v1037 = vunpack.c.l.b16 %v409
    %v1038 = vunpack.c.h.b16 %v409
    %v1039 = vunpack.c.l.b16 %v410
    %v1040 = vunpack.c.h.b16 %v410
    %v1041 = vunpack.c.l.b16 %v411
    %v1042 = vunpack.c.l.b16 %v412
    %v1043 = vunpack.c.h.b16 %v412
    %v1044 = vunpack.c.l.b16 %v413
    %v1045 = vunpack.c.h.b16 %v413
    %v1046 = vunpack.c.l.b16 %v414
    %v1047 = vunpack.c.l.b16 %v415
    %v1048 = vunpack.c.h.b16 %v415
    %v1049 = vunpack.c.l.b16 %v416
    %v1050 = vunpack.c.h.b16 %v416
    %v1051 = vunpack.c.l.b16 %v417
    %v1052 = vunpack.c.l.b16 %v418
    %v1053 = vunpack.c.h.b16 %v418
    %v1054 = vunpack.c.l.b16 %v419
    %v1055 = vunpack.c.h.b16 %v419
    %v1056 = vunpack.c.l.b16 %v420
    %v1057 = vunpack.c.l.b16 %v421
    %v1058 = vunpack.c.h.b16 %v421
    %v1059 = vunpack.c.l.b16 %v422
    %v1060 = vunpack.c.h.b16 %v422
    %v1061 = vunpack.c.l.b16 %v423
    %v1062 = vunpack.c.l.b16 %v424
    %v1063 = vunpack.c.h.b16 %v424
    %v1064 = vunpack.c.l.b16 %v425
    %v1065 = vunpack.c.h.b16 %v425
    %v1066 = vunpack.c.l.b16 %v426
    %v1067 = vunpack.c.l.b16 %v427
    %v1068 = vunpack.c.h.b16 %v427
    %v1069 = vunpack.c.l.b16 %v428
    %v1070 = vunpack.c.h.b16 %v428
    %v1071 = vunpack.c.l.b16 %v429
    %v1072 = vunpack.c.l.b16 %v430
    %v1073 = vunpack.c.h.b16 %v430
    %v1074 = vunpack.c.l.b16 %v431
    %v1075 = vunpack.c.h.b16 %v431
    %v1076 = vunpack.c.l.b16 %v432
    %v1077 = vunpack.c.l.b16 %v433
    %v1078 = vunpack.c.h.b16 %v433
    %v1079 = vunpack.c.l.b16 %v434
    %v1080 = vunpack.c.h.b16 %v434
    %v1081 = vunpack.c.l.b16 %v435
    %v1082 = vunpack.c.l.b16 %v436
    %v1083 = vunpack.c.h.b16 %v436
    %v1084 = vunpack.c.l.b16 %v437
    %v1085 = vunpack.c.h.b16 %v437
    %v1086 = vunpack.c.l.b16 %v438
    %v1087 = vunpack.c.l.b16 %v439
    %v1088 = vunpack.c.h.b16 %v439
    %v1089 = vunpack.c.l.b16 %v440
    %v1090 = vunpack.c.h.b16 %v440
    %v1091 = vunpack.c.l.b16 %v441
    %v1092 = vunpack.c.l.b16 %v442
    %v1093 = vunpack.c.h.b16 %v442
    %v1094 = vunpack.c.l.b16 %v443
    %v1095 = vunpack.c.h.b16 %v443
    %v1096 = vunpack.c.l.b16 %v444
    %v1097 = vpack.c.b16 %v702, %v697
    %v1098 = vpack.c.b16 %v703, %v698
    %v1099 = vpack.c.b16 %v704, %v699
    %v1100 = vpack.c.b16 %v705, %v700
    %v1101 = vpack.c.b16 %v706, %v701
    %v1102 = vpack.c.b16 %v712, %v707
    %v1103 = vpack.c.b16 %v713, %v708
    %v1104 = vpack.c.b16 %v714, %v709
    %v1105 = vpack.c.b16 %v715, %v710
    %v1106 = vpack.c.b16 %v716, %v711
    %v1107 = vpack.c.b16 %v722, %v717
    %v1108 = vpack.c.b16 %v723, %v718
    %v1109 = vpack.c.b16 %v724, %v719
    %v1110 = vpack.c.b16 %v725, %v720
    %v1111 = vpack.c.b16 %v726, %v721
    %v1112 = vpack.c.b16 %v732, %v727
    %v1113 = vpack.c.b16 %v733, %v728
    %v1114 = vpack.c.b16 %v734, %v729
    %v1115 = vpack.c.b16 %v735, %v730
    %v1116 = vpack.c.b16 %v736, %v731
    %v1117 = vpack.c.b16 %v742, %v737
    %v1118 = vpack.c.b16 %v743, %v738
    %v1119 = vpack.c.b16 %v744, %v739
    %v1120 = vpack.c.b16 %v745, %v740
    %v1121 = vpack.c.b16 %v746, %v741
    %v1122 = vpack.c.b16 %v752, %v747
    %v1123 = vpack.c.b16 %v753, %v748
    %v1124 = vpack.c.b16 %v754, %v749
    %v1125 = vpack.c.b16 %v755, %v750
    %v1126 = vpack.c.b16 %v756, %v751
    %v1127 = vpack.c.b16 %v762, %v757
    %v1128 = vpack.c.b16 %v763, %v758
    %v1129 = vpack.c.b16 %v764, %v759
    %v1130 = vpack.c.b16 %v765, %v760
    %v1131 = vpack.c.b16 %v766, %v761
    %v1132 = vpack.c.b16 %v772, %v767
    %v1133 = vpack.c.b16 %v773, %v768
    %v1134 = vpack.c.b16 %v774, %v769
    %v1135 = vpack.c.b16 %v775, %v770
    %v1136 = vpack.c.b16 %v776, %v771
    %v1137 = vpack.c.b16 %v782, %v777
    %v1138 = vpack.c.b16 %v783, %v778
    %v1139 = vpack.c.b16 %v784, %v779
    %v1140 = vpack.c.b16 %v785, %v780
    %v1141 = vpack.c.b16 %v786, %v781
    %v1142 = vpack.c.b16 %v792, %v787
    %v1143 = vpack.c.b16 %v793, %v788
    %v1144 = vpack.c.b16 %v794, %v789
    %v1145 = vpack.c.b16 %v795, %v790
    %v1146 = vpack.c.b16 %v796, %v791
    %v1147 = vpack.c.b16 %v802, %v797
    %v1148 = vpack.c.b16 %v803, %v798
    %v1149 = vpack.c.b16 %v804, %v799
    %v1150 = vpack.c.b16 %v805, %v800
    %v1151 = vpack.c.b16 %v806, %v801
    %v1152 = vpack.c.b16 %v812, %v807
    %v1153 = vpack.c.b16 %v813, %v808
    %v1154 = vpack.c.b16 %v814, %v809
    %v1155 = vpack.c.b16 %v815, %v810
    %v1156 = vpack.c.b16 %v816, %v811
    %v1157 = vpack.c.b16 %v822, %v817
    %v1158 = vpack.c.b16 %v823, %v818
    %v1159 = vpack.c.b16 %v824, %v819
    %v1160 = vpack.c.b16 %v825, %v820
    %v1161 = vpack.c.b16 %v826, %v821
    %v1162 = vpack.c.b16 %v832, %v827
    %v1163 = vpack.c.b16 %v833, %v828
    %v1164 = vpack.c.b16 %v834, %v829
    %v1165 = vpack.c.b16 %v835, %v830
    %v1166 = vpack.c.b16 %v836, %v831
    %v1167 = vpack.c.b16 %v842, %v837
    %v1168 = vpack.c.b16 %v843, %v838
    %v1169 = vpack.c.b16 %v844, %v839
    %v1170 = vpack.c.b16 %v845, %v840
    %v1171 = vpack.c.b16 %v846, %v841
    %v1172 = vpack.c.b16 %v852, %v847
    %v1173 = vpack.c.b16 %v853, %v848
    %v1174 = vpack.c.b16 %v854, %v849
    %v1175 = vpack.c.b16 %v855, %v850
    %v1176 = vpack.c.b16 %v856, %v851
    %v1177 = vpack.c.b16 %v862, %v857
    %v1178 = vpack.c.b16 %v863, %v858
    %v1179 = vpack.c.b16 %v864, %v859
    %v1180 = vpack.c.b16 %v865, %v860
    %v1181 = vpack.c.b16 %v866, %v861
    %v1182 = vpack.c.b16 %v872, %v867
    %v1183 = vpack.c.b16 %v873, %v868
    %v1184 = vpack.c.b16 %v874, %v869
    %v1185 = vpack.c.b16 %v875, %v870
    %v1186 = vpack.c.b16 %v876, %v871
    %v1187 = vpack.c.b16 %v882, %v877
    %v1188 = vpack.c.b16 %v883, %v878
    %v1189 = vpack.c.b16 %v884, %v879
    %v1190 = vpack.c.b16 %v885, %v880
    %v1191 = vpack.c.b16 %v886, %v881
    %v1192 = vpack.c.b16 %v892, %v887
    %v1193 = vpack.c.b16 %v893, %v888
    %v1194 = vpack.c.b16 %v894, %v889
    %v1195 = vpack.c.b16 %v895, %v890
    %v1196 = vpack.c.b16 %v896, %v891
    %v1197 = vpack.c.b16 %v902, %v897
    %v1198 = vpack.c.b16 %v903, %v898
    %v1199 = vpack.c.b16 %v904, %v899
    %v1200 = vpack.c.b16 %v905, %v900
    %v1201 = vpack.c.b16 %v906, %v901
    %v1202 = vpack.c.b16 %v912, %v907
    %v1203 = vpack.c.b16 %v913, %v908
    %v1204 = vpack.c.b16 %v914, %v909
    %v1205 = vpack.c.b16 %v915, %v910
    %v1206 = vpack.c.b16 %v916, %v911
    %v1207 = vpack.c.b16 %v922, %v917
    %v1208 = vpack.c.b16 %v923, %v918
    %v1209 = vpack.c.b16 %v924, %v919
    %v1210 = vpack.c.b16 %v925, %v920
    %v1211 = vpack.c.b16 %v926, %v921
    %v1212 = vpack.c.b16 %v932, %v927
    %v1213 = vpack.c.b16 %v933, %v928
    %v1214 = vpack.c.b16 %v934, %v929
    %v1215 = vpack.c.b16 %v935, %v930
    %v1216 = vpack.c.b16 %v936, %v931
    %v1217 = vpack.c.b16 %v942, %v937
    %v1218 = vpack.c.b16 %v943, %v938
    %v1219 = vpack.c.b16 %v944, %v939
    %v1220 = vpack.c.b16 %v945, %v940
    %v1221 = vpack.c.b16 %v946, %v941
    %v1222 = vpack.c.b16 %v952, %v947
    %v1223 = vpack.c.b16 %v953, %v948
    %v1224 = vpack.c.b16 %v954, %v949
    %v1225 = vpack.c.b16 %v955, %v950
    %v1226 = vpack.c.b16 %v956, %v951
    %v1227 = vpack.c.b16 %v962, %v957
    %v1228 = vpack.c.b16 %v963, %v958
    %v1229 = vpack.c.b16 %v964, %v959
    %v1230 = vpack.c.b16 %v965, %v960
    %v1231 = vpack.c.b16 %v966, %v961
    %v1232 = vpack.c.b16 %v972, %v967
    %v1233 = vpack.c.b16 %v973, %v968
    %v1234 = vpack.c.b16 %v974, %v969
    %v1235 = vpack.c.b16 %v975, %v970
    %v1236 = vpack.c.b16 %v976, %v971
    %v1237 = vpack.c.b16 %v982, %v977
    %v1238 = vpack.c.b16 %v983, %v978
    %v1239 = vpack.c.b16 %v984, %v979
    %v1240 = vpack.c.b16 %v985, %v980
    %v1241 = vpack.c.b16 %v986, %v981
    %v1242 = vpack.c.b16 %v992, %v987
    %v1243 = vpack.c.b16 %v993, %v988
    %v1244 = vpack.c.b16 %v994, %v989
    %v1245 = vpack.c.b16 %v995, %v990
    %v1246 = vpack.c.b16 %v996, %v991
    %v1247 = vpack.c.b16 %v1002, %v997
    %v1248 = vpack.c.b16 %v1003, %v998
    %v1249 = vpack.c.b16 %v1004, %v999
    %v1250 = vpack.c.b16 %v1005, %v1000
    %v1251 = vpack.c.b16 %v1006, %v1001
    %v1252 = vpack.c.b16 %v1012, %v1007
    %v1253 = vpack.c.b16 %v1013, %v1008
    %v1254 = vpack.c.b16 %v1014, %v1009
    %v1255 = vpack.c.b16 %v1015, %v1010
    %v1256 = vpack.c.b16 %v1016, %v1011
    %v1257 = vpack.c.b16 %v1022, %v1017
    %v1258 = vpack.c.b16 %v1023, %v1018
    %v1259 = vpack.c.b16 %v1024, %v1019
    %v1260 = vpack.c.b16 %v1025, %v1020
    %v1261 = vpack.c.b16 %v1026, %v1021
    %v1262 = vpack.c.b16 %v1032, %v1027
    %v1263 = vpack.c.b16 %v1033, %v1028
    %v1264 = vpack.c.b16 %v1034, %v1029
    %v1265 = vpack.c.b16 %v1035, %v1030
    %v1266 = vpack.c.b16 %v1036, %v1031
    %v1267 = vpack.c.b16 %v1042, %v1037
    %v1268 = vpack.c.b16 %v1043, %v1038
    %v1269 = vpack.c.b16 %v1044, %v1039
    %v1270 = vpack.c.b16 %v1045, %v1040
    %v1271 = vpack.c.b16 %v1046, %v1041
    %v1272 = vpack.c.b16 %v1052, %v1047
    %v1273 = vpack.c.b16 %v1053, %v1048
    %v1274 = vpack.c.b16 %v1054, %v1049
    %v1275 = vpack.c.b16 %v1055, %v1050
    %v1276 = vpack.c.b16 %v1056, %v1051
    %v1277 = vpack.c.b16 %v1062, %v1057
    %v1278 = vpack.c.b16 %v1063, %v1058
    %v1279 = vpack.c.b16 %v1064, %v1059
    %v1280 = vpack.c.b16 %v1065, %v1060
    %v1281 = vpack.c.b16 %v1066, %v1061
    %v1282 = vpack.c.b16 %v1072, %v1067
    %v1283 = vpack.c.b16 %v1073, %v1068
    %v1284 = vpack.c.b16 %v1074, %v1069
    %v1285 = vpack.c.b16 %v1075, %v1070
    %v1286 = vpack.c.b16 %v1076, %v1071
    %v1287 = vpack.c.b16 %v1082, %v1077
    %v1288 = vpack.c.b16 %v1083, %v1078
    %v1289 = vpack.c.b16 %v1084, %v1079
    %v1290 = vpack.c.b16 %v1085, %v1080
    %v1291 = vpack.c.b16 %v1086, %v1081
    %v1292 = vpack.c.b16 %v1092, %v1087
    %v1293 = vpack.c.b16 %v1093, %v1088
    %v1294 = vpack.c.b16 %v1094, %v1089
    %v1295 = vpack.c.b16 %v1095, %v1090
    %v1296 = vpack.c.b16 %v1096, %v1091
    %1497 = vmatpush.bf16.msra.mxu0 %v1132
    %1498 = vmatpush.bf16.msra.mxu0 %v1127
    %1499 = vmatpush.bf16.msra.mxu0 %v1122
    %1500 = vmatpush.bf16.msra.mxu0 %v1117
    %1501 = vmatpush.bf16.msra.mxu0 %v1112
    %1502 = vmatpush.bf16.msra.mxu0 %v1107
    %1503 = vmatpush.bf16.msra.mxu0 %v1102
    %1504 = vmatpush.bf16.msra.mxu0 %v1097
    %1505 = vmatmul.bf16.gmra.mxu0 %v200
    %v1506 = vpop.f32.mrf.mxu0
    %v1507 = vadd.f32 %v447, %v1506
    %v1508 = vpop.f32.mrf.mxu0
    %1509 = vdwg.mxu0
    %1510 = vmatpush.bf16.msra.mxu0 %v1172
    %1511 = vmatpush.bf16.msra.mxu0 %v1167
    %1512 = vmatpush.bf16.msra.mxu0 %v1162
    %1513 = vmatpush.bf16.msra.mxu0 %v1157
    %1514 = vmatpush.bf16.msra.mxu0 %v1152
    %1515 = vmatpush.bf16.msra.mxu0 %v1147
    %1516 = vmatpush.bf16.msra.mxu0 %v1142
    %1517 = vmatpush.bf16.msra.mxu0 %v1137
    %1518 = vmatmul.bf16.gmra.mxu0 %v201
    %v1519 = vpop.f32.mrf.mxu0
    %v1520 = vadd.f32 %v1507, %v1519
    %v1521 = vpop.f32.mrf.mxu0
    %1522 = vdwg.mxu0
    %1523 = vmatpush.bf16.msra.mxu0 %v1212
    %1524 = vmatpush.bf16.msra.mxu0 %v1207
    %1525 = vmatpush.bf16.msra.mxu0 %v1202
    %1526 = vmatpush.bf16.msra.mxu0 %v1197
    %1527 = vmatpush.bf16.msra.mxu0 %v1192
    %1528 = vmatpush.bf16.msra.mxu0 %v1187
    %1529 = vmatpush.bf16.msra.mxu0 %v1182
    %1530 = vmatpush.bf16.msra.mxu0 %v1177
    %1531 = vmatmul.bf16.gmra.mxu0 %v202
    %v1532 = vpop.f32.mrf.mxu0
    %v1533 = vadd.f32 %v1520, %v1532
    %v1534 = vpop.f32.mrf.mxu0
    %1535 = vdwg.mxu0
    %1536 = vmatpush.bf16.msra.mxu0 %v1252
    %1537 = vmatpush.bf16.msra.mxu0 %v1247
    %1538 = vmatpush.bf16.msra.mxu0 %v1242
    %1539 = vmatpush.bf16.msra.mxu0 %v1237
    %1540 = vmatpush.bf16.msra.mxu0 %v1232
    %1541 = vmatpush.bf16.msra.mxu0 %v1227
    %1542 = vmatpush.bf16.msra.mxu0 %v1222
    %1543 = vmatpush.bf16.msra.mxu0 %v1217
    %1544 = vmatmul.bf16.gmra.mxu0 %v203
    %v1545 = vpop.f32.mrf.mxu0
    %v1546 = vadd.f32 %v1533, %v1545
    %v1547 = vpop.f32.mrf.mxu0
    %1548 = vdwg.mxu0
    %1549 = vmatpush.bf16.msra.mxu0 %v1292
    %1550 = vmatpush.bf16.msra.mxu0 %v1287
    %1551 = vmatpush.bf16.msra.mxu0 %v1282
    %1552 = vmatpush.bf16.msra.mxu0 %v1277
    %1553 = vmatpush.bf16.msra.mxu0 %v1272
    %1554 = vmatpush.bf16.msra.mxu0 %v1267
    %1555 = vmatpush.bf16.msra.mxu0 %v1262
    %1556 = vmatpush.bf16.msra.mxu0 %v1257
    %1557 = vmatmul.bf16.gmra.mxu0 %v204
    %v1558 = vpop.f32.mrf.mxu0
    %v1559 = vadd.f32 %v1546, %v1558
    %v1560 = vpop.f32.mrf.mxu0
    %1561 = vdwg.mxu0
    %1562 = vmatpush.bf16.msra.mxu0 %v1133
    %1563 = vmatpush.bf16.msra.mxu0 %v1128
    %1564 = vmatpush.bf16.msra.mxu0 %v1123
    %1565 = vmatpush.bf16.msra.mxu0 %v1118
    %1566 = vmatpush.bf16.msra.mxu0 %v1113
    %1567 = vmatpush.bf16.msra.mxu0 %v1108
    %1568 = vmatpush.bf16.msra.mxu0 %v1103
    %1569 = vmatpush.bf16.msra.mxu0 %v1098
    %1570 = vmatmul.bf16.gmra.mxu0 %v200
    %v1571 = vpop.f32.mrf.mxu0
    %v1572 = vadd.f32 %v448, %v1571
    %v1573 = vpop.f32.mrf.mxu0
    %1574 = vdwg.mxu0
    %1575 = vmatpush.bf16.msra.mxu0 %v1173
    %1576 = vmatpush.bf16.msra.mxu0 %v1168
    %1577 = vmatpush.bf16.msra.mxu0 %v1163
    %1578 = vmatpush.bf16.msra.mxu0 %v1158
    %1579 = vmatpush.bf16.msra.mxu0 %v1153
    %1580 = vmatpush.bf16.msra.mxu0 %v1148
    %1581 = vmatpush.bf16.msra.mxu0 %v1143
    %1582 = vmatpush.bf16.msra.mxu0 %v1138
    %1583 = vmatmul.bf16.gmra.mxu0 %v201
    %v1584 = vpop.f32.mrf.mxu0
    %v1585 = vadd.f32 %v1572, %v1584
    %v1586 = vpop.f32.mrf.mxu0
    %1587 = vdwg.mxu0
    %1588 = vmatpush.bf16.msra.mxu0 %v1213
    %1589 = vmatpush.bf16.msra.mxu0 %v1208
    %1590 = vmatpush.bf16.msra.mxu0 %v1203
    %1591 = vmatpush.bf16.msra.mxu0 %v1198
    %1592 = vmatpush.bf16.msra.mxu0 %v1193
    %1593 = vmatpush.bf16.msra.mxu0 %v1188
    %1594 = vmatpush.bf16.msra.mxu0 %v1183
    %1595 = vmatpush.bf16.msra.mxu0 %v1178
    %1596 = vmatmul.bf16.gmra.mxu0 %v202
    %v1597 = vpop.f32.mrf.mxu0
    %v1598 = vadd.f32 %v1585, %v1597
    %v1599 = vpop.f32.mrf.mxu0
    %1600 = vdwg.mxu0
    %1601 = vmatpush.bf16.msra.mxu0 %v1253
    %1602 = vmatpush.bf16.msra.mxu0 %v1248
    %1603 = vmatpush.bf16.msra.mxu0 %v1243
    %1604 = vmatpush.bf16.msra.mxu0 %v1238
    %1605 = vmatpush.bf16.msra.mxu0 %v1233
    %1606 = vmatpush.bf16.msra.mxu0 %v1228
    %1607 = vmatpush.bf16.msra.mxu0 %v1223
    %1608 = vmatpush.bf16.msra.mxu0 %v1218
    %1609 = vmatmul.bf16.gmra.mxu0 %v203
    %v1610 = vpop.f32.mrf.mxu0
    %v1611 = vadd.f32 %v1598, %v1610
    %v1612 = vpop.f32.mrf.mxu0
    %1613 = vdwg.mxu0
    %1614 = vmatpush.bf16.msra.mxu0 %v1293
    %1615 = vmatpush.bf16.msra.mxu0 %v1288
    %1616 = vmatpush.bf16.msra.mxu0 %v1283
    %1617 = vmatpush.bf16.msra.mxu0 %v1278
    %1618 = vmatpush.bf16.msra.mxu0 %v1273
    %1619 = vmatpush.bf16.msra.mxu0 %v1268
    %1620 = vmatpush.bf16.msra.mxu0 %v1263
    %1621 = vmatpush.bf16.msra.mxu0 %v1258
    %1622 = vmatmul.bf16.gmra.mxu0 %v204
    %v1623 = vpop.f32.mrf.mxu0
    %v1624 = vadd.f32 %v1611, %v1623
    %v1625 = vpop.f32.mrf.mxu0
    %1626 = vdwg.mxu0
    %1627 = vmatpush.bf16.msra.mxu0 %v1134
    %1628 = vmatpush.bf16.msra.mxu0 %v1129
    %1629 = vmatpush.bf16.msra.mxu0 %v1124
    %1630 = vmatpush.bf16.msra.mxu0 %v1119
    %1631 = vmatpush.bf16.msra.mxu0 %v1114
    %1632 = vmatpush.bf16.msra.mxu0 %v1109
    %1633 = vmatpush.bf16.msra.mxu0 %v1104
    %1634 = vmatpush.bf16.msra.mxu0 %v1099
    %1635 = vmatmul.bf16.gmra.mxu0 %v200
    %v1636 = vpop.f32.mrf.mxu0
    %v1637 = vadd.f32 %v449, %v1636
    %v1638 = vpop.f32.mrf.mxu0
    %1639 = vdwg.mxu0
    %1640 = vmatpush.bf16.msra.mxu0 %v1174
    %1641 = vmatpush.bf16.msra.mxu0 %v1169
    %1642 = vmatpush.bf16.msra.mxu0 %v1164
    %1643 = vmatpush.bf16.msra.mxu0 %v1159
    %1644 = vmatpush.bf16.msra.mxu0 %v1154
    %1645 = vmatpush.bf16.msra.mxu0 %v1149
    %1646 = vmatpush.bf16.msra.mxu0 %v1144
    %1647 = vmatpush.bf16.msra.mxu0 %v1139
    %1648 = vmatmul.bf16.gmra.mxu0 %v201
    %v1649 = vpop.f32.mrf.mxu0
    %v1650 = vadd.f32 %v1637, %v1649
    %v1651 = vpop.f32.mrf.mxu0
    %1652 = vdwg.mxu0
    %1653 = vmatpush.bf16.msra.mxu0 %v1214
    %1654 = vmatpush.bf16.msra.mxu0 %v1209
    %1655 = vmatpush.bf16.msra.mxu0 %v1204
    %1656 = vmatpush.bf16.msra.mxu0 %v1199
    %1657 = vmatpush.bf16.msra.mxu0 %v1194
    %1658 = vmatpush.bf16.msra.mxu0 %v1189
    %1659 = vmatpush.bf16.msra.mxu0 %v1184
    %1660 = vmatpush.bf16.msra.mxu0 %v1179
    %1661 = vmatmul.bf16.gmra.mxu0 %v202
    %v1662 = vpop.f32.mrf.mxu0
    %v1663 = vadd.f32 %v1650, %v1662
    %v1664 = vpop.f32.mrf.mxu0
    %1665 = vdwg.mxu0
    %1666 = vmatpush.bf16.msra.mxu0 %v1254
    %1667 = vmatpush.bf16.msra.mxu0 %v1249
    %1668 = vmatpush.bf16.msra.mxu0 %v1244
    %1669 = vmatpush.bf16.msra.mxu0 %v1239
    %1670 = vmatpush.bf16.msra.mxu0 %v1234
    %1671 = vmatpush.bf16.msra.mxu0 %v1229
    %1672 = vmatpush.bf16.msra.mxu0 %v1224
    %1673 = vmatpush.bf16.msra.mxu0 %v1219
    %1674 = vmatmul.bf16.gmra.mxu0 %v203
    %v1675 = vpop.f32.mrf.mxu0
    %v1676 = vadd.f32 %v1663, %v1675
    %v1677 = vpop.f32.mrf.mxu0
    %1678 = vdwg.mxu0
    %1679 = vmatpush.bf16.msra.mxu0 %v1294
    %1680 = vmatpush.bf16.msra.mxu0 %v1289
    %1681 = vmatpush.bf16.msra.mxu0 %v1284
    %1682 = vmatpush.bf16.msra.mxu0 %v1279
    %1683 = vmatpush.bf16.msra.mxu0 %v1274
    %1684 = vmatpush.bf16.msra.mxu0 %v1269
    %1685 = vmatpush.bf16.msra.mxu0 %v1264
    %1686 = vmatpush.bf16.msra.mxu0 %v1259
    %1687 = vmatmul.bf16.gmra.mxu0 %v204
    %v1688 = vpop.f32.mrf.mxu0
    %v1689 = vadd.f32 %v1676, %v1688
    %v1690 = vpop.f32.mrf.mxu0
    %1691 = vdwg.mxu0
    %1692 = vmatpush.bf16.msra.mxu0 %v1135
    %1693 = vmatpush.bf16.msra.mxu0 %v1130
    %1694 = vmatpush.bf16.msra.mxu0 %v1125
    %1695 = vmatpush.bf16.msra.mxu0 %v1120
    %1696 = vmatpush.bf16.msra.mxu0 %v1115
    %1697 = vmatpush.bf16.msra.mxu0 %v1110
    %1698 = vmatpush.bf16.msra.mxu0 %v1105
    %1699 = vmatpush.bf16.msra.mxu0 %v1100
    %1700 = vmatmul.bf16.gmra.mxu0 %v200
    %v1701 = vpop.f32.mrf.mxu0
    %v1702 = vadd.f32 %v450, %v1701
    %v1703 = vpop.f32.mrf.mxu0
    %1704 = vdwg.mxu0
    %1705 = vmatpush.bf16.msra.mxu0 %v1175
    %1706 = vmatpush.bf16.msra.mxu0 %v1170
    %1707 = vmatpush.bf16.msra.mxu0 %v1165
    %1708 = vmatpush.bf16.msra.mxu0 %v1160
    %1709 = vmatpush.bf16.msra.mxu0 %v1155
    %1710 = vmatpush.bf16.msra.mxu0 %v1150
    %1711 = vmatpush.bf16.msra.mxu0 %v1145
    %1712 = vmatpush.bf16.msra.mxu0 %v1140
    %1713 = vmatmul.bf16.gmra.mxu0 %v201
    %v1714 = vpop.f32.mrf.mxu0
    %v1715 = vadd.f32 %v1702, %v1714
    %v1716 = vpop.f32.mrf.mxu0
    %1717 = vdwg.mxu0
    %1718 = vmatpush.bf16.msra.mxu0 %v1215
    %1719 = vmatpush.bf16.msra.mxu0 %v1210
    %1720 = vmatpush.bf16.msra.mxu0 %v1205
    %1721 = vmatpush.bf16.msra.mxu0 %v1200
    %1722 = vmatpush.bf16.msra.mxu0 %v1195
    %1723 = vmatpush.bf16.msra.mxu0 %v1190
    %1724 = vmatpush.bf16.msra.mxu0 %v1185
    %1725 = vmatpush.bf16.msra.mxu0 %v1180
    %1726 = vmatmul.bf16.gmra.mxu0 %v202
    %v1727 = vpop.f32.mrf.mxu0
    %v1728 = vadd.f32 %v1715, %v1727
    %v1729 = vpop.f32.mrf.mxu0
    %1730 = vdwg.mxu0
    %1731 = vmatpush.bf16.msra.mxu0 %v1255
    %1732 = vmatpush.bf16.msra.mxu0 %v1250
    %1733 = vmatpush.bf16.msra.mxu0 %v1245
    %1734 = vmatpush.bf16.msra.mxu0 %v1240
    %1735 = vmatpush.bf16.msra.mxu0 %v1235
    %1736 = vmatpush.bf16.msra.mxu0 %v1230
    %1737 = vmatpush.bf16.msra.mxu0 %v1225
    %1738 = vmatpush.bf16.msra.mxu0 %v1220
    %1739 = vmatmul.bf16.gmra.mxu0 %v203
    %v1740 = vpop.f32.mrf.mxu0
    %v1741 = vadd.f32 %v1728, %v1740
    %v1742 = vpop.f32.mrf.mxu0
    %1743 = vdwg.mxu0
    %1744 = vmatpush.bf16.msra.mxu0 %v1295
    %1745 = vmatpush.bf16.msra.mxu0 %v1290
    %1746 = vmatpush.bf16.msra.mxu0 %v1285
    %1747 = vmatpush.bf16.msra.mxu0 %v1280
    %1748 = vmatpush.bf16.msra.mxu0 %v1275
    %1749 = vmatpush.bf16.msra.mxu0 %v1270
    %1750 = vmatpush.bf16.msra.mxu0 %v1265
    %1751 = vmatpush.bf16.msra.mxu0 %v1260
    %1752 = vmatmul.bf16.gmra.mxu0 %v204
    %v1753 = vpop.f32.mrf.mxu0
    %v1754 = vadd.f32 %v1741, %v1753
    %v1755 = vpop.f32.mrf.mxu0
    %1756 = vdwg.mxu0
    %1757 = vmatpush.bf16.msra.mxu0 %v1136
    %1758 = vmatpush.bf16.msra.mxu0 %v1131
    %1759 = vmatpush.bf16.msra.mxu0 %v1126
    %1760 = vmatpush.bf16.msra.mxu0 %v1121
    %1761 = vmatpush.bf16.msra.mxu0 %v1116
    %1762 = vmatpush.bf16.msra.mxu0 %v1111
    %1763 = vmatpush.bf16.msra.mxu0 %v1106
    %1764 = vmatpush.bf16.msra.mxu0 %v1101
    %1765 = vmatmul.bf16.gmra.mxu0 %v200
    %v1766 = vpop.f32.mrf.mxu0
    %v1767 = vadd.f32 %v451, %v1766
    %v1768 = vpop.f32.mrf.mxu0
    %1769 = vdwg.mxu0
    %1770 = vmatpush.bf16.msra.mxu0 %v1176
    %1771 = vmatpush.bf16.msra.mxu0 %v1171
    %1772 = vmatpush.bf16.msra.mxu0 %v1166
    %1773 = vmatpush.bf16.msra.mxu0 %v1161
    %1774 = vmatpush.bf16.msra.mxu0 %v1156
    %1775 = vmatpush.bf16.msra.mxu0 %v1151
    %1776 = vmatpush.bf16.msra.mxu0 %v1146
    %1777 = vmatpush.bf16.msra.mxu0 %v1141
    %1778 = vmatmul.bf16.gmra.mxu0 %v201
    %v1779 = vpop.f32.mrf.mxu0
    %v1780 = vadd.f32 %v1767, %v1779
    %v1781 = vpop.f32.mrf.mxu0
    %1782 = vdwg.mxu0
    %1783 = vmatpush.bf16.msra.mxu0 %v1216
    %1784 = vmatpush.bf16.msra.mxu0 %v1211
    %1785 = vmatpush.bf16.msra.mxu0 %v1206
    %1786 = vmatpush.bf16.msra.mxu0 %v1201
    %1787 = vmatpush.bf16.msra.mxu0 %v1196
    %1788 = vmatpush.bf16.msra.mxu0 %v1191
    %1789 = vmatpush.bf16.msra.mxu0 %v1186
    %1790 = vmatpush.bf16.msra.mxu0 %v1181
    %1791 = vmatmul.bf16.gmra.mxu0 %v202
    %v1792 = vpop.f32.mrf.mxu0
    %v1793 = vadd.f32 %v1780, %v1792
    %v1794 = vpop.f32.mrf.mxu0
    %1795 = vdwg.mxu0
    %1796 = vmatpush.bf16.msra.mxu0 %v1256
    %1797 = vmatpush.bf16.msra.mxu0 %v1251
    %1798 = vmatpush.bf16.msra.mxu0 %v1246
    %1799 = vmatpush.bf16.msra.mxu0 %v1241
    %1800 = vmatpush.bf16.msra.mxu0 %v1236
    %1801 = vmatpush.bf16.msra.mxu0 %v1231
    %1802 = vmatpush.bf16.msra.mxu0 %v1226
    %1803 = vmatpush.bf16.msra.mxu0 %v1221
    %1804 = vmatmul.bf16.gmra.mxu0 %v203
    %v1805 = vpop.f32.mrf.mxu0
    %v1806 = vadd.f32 %v1793, %v1805
    %v1807 = vpop.f32.mrf.mxu0
    %1808 = vdwg.mxu0
    %1809 = vmatpush.bf16.msra.mxu0 %v1296
    %1810 = vmatpush.bf16.msra.mxu0 %v1291
    %1811 = vmatpush.bf16.msra.mxu0 %v1286
    %1812 = vmatpush.bf16.msra.mxu0 %v1281
    %1813 = vmatpush.bf16.msra.mxu0 %v1276
    %1814 = vmatpush.bf16.msra.mxu0 %v1271
    %1815 = vmatpush.bf16.msra.mxu0 %v1266
    %1816 = vmatpush.bf16.msra.mxu0 %v1261
    %1817 = vmatmul.bf16.gmra.mxu0 %v204
    %v1818 = vpop.f32.mrf.mxu0
    %v1819 = vadd.f32 %v1806, %v1818
    %v1820 = vpop.f32.mrf.mxu0
    %1821 = vdwg.mxu0
    %v1822 = vpack.c.bf16 %v1624, %v1559
    %v1823 = vpack.c.bf16 %v1754, %v1689
    %v1824 = vpack.c.bf16 %v1819, %v1819
    %v1825 = vunpack.c.l.bf16 %v1822
    %v1826 = vunpack.c.h.bf16 %v1822
    %v1827 = vunpack.c.l.bf16 %v1823
    %v1828 = vunpack.c.h.bf16 %v1823
    %v1829 = vunpack.c.l.bf16 %v1824
    %v1830 = vmin.f32 %v1825, 20.0
    %v1831 = vmin.f32 %v1826, 20.0
    %v1832 = vmin.f32 %v1827, 20.0
    %v1833 = vmin.f32 %v1828, 20.0
    %v1834 = vmin.f32 %v1829, 20.0
    %v1835 = vpack.c.bf16 %v1831, %v1830
    %v1836 = vpack.c.bf16 %v1833, %v1832
    %v1837 = vpack.c.bf16 %v1834, %v1834
    %v1838 = vunpack.c.l.bf16 %v1835
    %v1839 = vunpack.c.h.bf16 %v1835
    %v1840 = vunpack.c.l.bf16 %v1836
    %v1841 = vunpack.c.h.bf16 %v1836
    %v1842 = vunpack.c.l.bf16 %v1837
    %v1843 = vmul.f32 %v1838, 1.442695
    %v1844 = vpow.pop %v1843
    %v1845 = vmul.f32 %v1839, 1.442695
    %v1846 = vpow.pop %v1845
    %v1847 = vmul.f32 %v1840, 1.442695
    %v1848 = vpow.pop %v1847
    %v1849 = vmul.f32 %v1841, 1.442695
    %v1850 = vpow.pop %v1849
    %v1851 = vmul.f32 %v1842, 1.442695
    %v1852 = vpow.pop %v1851
    %v1853 = vpack.c.bf16 %v1846, %v1844
    %v1854 = vpack.c.bf16 %v1850, %v1848
    %v1855 = vpack.c.bf16 %v1852, %v1852
    %v1856 = vunpack.c.l.bf16 %v1853
    %v1857 = vunpack.c.h.bf16 %v1853
    %v1858 = vunpack.c.l.bf16 %v1854
    %v1859 = vunpack.c.h.bf16 %v1854
    %v1860 = vunpack.c.l.bf16 %v1855
    %v1861 = vadd.f32 %v1856, 1.0
    %v1862 = vadd.f32 %v1857, 1.0
    %v1863 = vadd.f32 %v1858, 1.0
    %v1864 = vadd.f32 %v1859, 1.0
    %v1865 = vadd.f32 %v1860, 1.0
    %v1866 = vpack.c.bf16 %v1862, %v1861
    %v1867 = vpack.c.bf16 %v1864, %v1863
    %v1868 = vpack.c.bf16 %v1865, %v1865
    %v1869 = vunpack.c.l.bf16 %v1866
    %v1870 = vunpack.c.h.bf16 %v1866
    %v1871 = vunpack.c.l.bf16 %v1867
    %v1872 = vunpack.c.h.bf16 %v1867
    %v1873 = vunpack.c.l.bf16 %v1868
    %v1874 = vlog2.pop %v1869
    %v1875 = vmul.f32 %v1874, 0.6931472
    %v1876 = vlog2.pop %v1870
    %v1877 = vmul.f32 %v1876, 0.6931472
    %v1878 = vlog2.pop %v1871
    %v1879 = vmul.f32 %v1878, 0.6931472
    %v1880 = vlog2.pop %v1872
    %v1881 = vmul.f32 %v1880, 0.6931472
    %v1882 = vlog2.pop %v1873
    %v1883 = vmul.f32 %v1882, 0.6931472
    %v1884 = vpack.c.bf16 %v1877, %v1875
    %v1885 = vpack.c.bf16 %v1881, %v1879
    %v1886 = vpack.c.bf16 %v1883, %v1883
    %vm1887 = vcmp.gt.f32.partialorder %v1825, 20.0
    %vm1888 = vcmp.gt.f32.partialorder %v1826, 20.0
    %vm1889 = vcmp.gt.f32.partialorder %v1827, 20.0
    %vm1890 = vcmp.gt.f32.partialorder %v1828, 20.0
    %vm1891 = vcmp.gt.f32.partialorder %v1829, 20.0
    %vm1892 = vmpackc.low %vm1888, %vm1887
    %vm1893 = vmpackc.low %vm1890, %vm1889
    %vm1894 = vmpackc.low %vm1891, %vm1891
    %v1895 = vsel %vm1892, %v1822, %v1884
    %v1896 = vsel %vm1893, %v1823, %v1885
    %v1897 = vsel %vm1894, %v1824, %v1886
    %v1898 = vld [vmem:[#allocation7] sm:$0xff]
    %v1899 = vld [vmem:[#allocation7 + $0x8] sm:$0xff]
    %v1900 = vld [vmem:[#allocation7 + $0x10] sm:$0xf]
    %v1901 = vld [vmem:[#allocation7 + $0x14] sm:$0xff]
    %v1902 = vld [vmem:[#allocation7 + $0x1c] sm:$0xff]
    %v1903 = vld [vmem:[#allocation7 + $0x24] sm:$0xf]
    %v1904 = vld [vmem:[#allocation7 + $0x28] sm:$0xff]
    %v1905 = vld [vmem:[#allocation7 + $0x30] sm:$0xff]
    %v1906 = vld [vmem:[#allocation7 + $0x38] sm:$0xf]
    %v1907 = vld [vmem:[#allocation7 + $0x3c] sm:$0xff]
    %v1908 = vld [vmem:[#allocation7 + $0x44] sm:$0xff]
    %v1909 = vld [vmem:[#allocation7 + $0x4c] sm:$0xf]
    %v1910 = vld [vmem:[#allocation7 + $0x50] sm:$0xff]
    %v1911 = vld [vmem:[#allocation7 + $0x58] sm:$0xff]
    %v1912 = vld [vmem:[#allocation7 + $0x60] sm:$0xf]
    %v1913 = vld [vmem:[#allocation7 + $0x64] sm:$0xff]
    %v1914 = vld [vmem:[#allocation7 + $0x6c] sm:$0xff]
    %v1915 = vld [vmem:[#allocation7 + $0x74] sm:$0xf]
    %v1916 = vld [vmem:[#allocation7 + $0x78] sm:$0xff]
    %v1917 = vld [vmem:[#allocation7 + $0x80] sm:$0xff]
    %v1918 = vld [vmem:[#allocation7 + $0x88] sm:$0xf]
    %v1919 = vld [vmem:[#allocation7 + $0x8c] sm:$0xff]
    %v1920 = vld [vmem:[#allocation7 + $0x94] sm:$0xff]
    %v1921 = vld [vmem:[#allocation7 + $0x9c] sm:$0xf]
    %v1922 = vld [vmem:[#allocation7 + $0xa0] sm:$0xff]
    %v1923 = vld [vmem:[#allocation7 + $0xa8] sm:$0xff]
    %v1924 = vld [vmem:[#allocation7 + $0xb0] sm:$0xf]
    %v1925 = vld [vmem:[#allocation7 + $0xb4] sm:$0xff]
    %v1926 = vld [vmem:[#allocation7 + $0xbc] sm:$0xff]
    %v1927 = vld [vmem:[#allocation7 + $0xc4] sm:$0xf]
    %v1928 = vld [vmem:[#allocation7 + $0xc8] sm:$0xff]
    %v1929 = vld [vmem:[#allocation7 + $0xd0] sm:$0xff]
    %v1930 = vld [vmem:[#allocation7 + $0xd8] sm:$0xf]
    %v1931 = vld [vmem:[#allocation7 + $0xdc] sm:$0xff]
    %v1932 = vld [vmem:[#allocation7 + $0xe4] sm:$0xff]
    %v1933 = vld [vmem:[#allocation7 + $0xec] sm:$0xf]
    %v1934 = vld [vmem:[#allocation7 + $0xf0] sm:$0xff]
    %v1935 = vld [vmem:[#allocation7 + $0xf8] sm:$0xff]
    %v1936 = vld [vmem:[#allocation7 + $0x100] sm:$0xf]
    %v1937 = vld [vmem:[#allocation7 + $0x104] sm:$0xff]
    %v1938 = vld [vmem:[#allocation7 + $0x10c] sm:$0xff]
    %v1939 = vld [vmem:[#allocation7 + $0x114] sm:$0xf]
    %v1940 = vld [vmem:[#allocation7 + $0x118] sm:$0xff]
    %v1941 = vld [vmem:[#allocation7 + $0x120] sm:$0xff]
    %v1942 = vld [vmem:[#allocation7 + $0x128] sm:$0xf]
    %v1943 = vld [vmem:[#allocation7 + $0x12c] sm:$0xff]
    %v1944 = vld [vmem:[#allocation7 + $0x134] sm:$0xff]
    %v1945 = vld [vmem:[#allocation7 + $0x13c] sm:$0xf]
    %v1946 = vld [vmem:[#allocation7 + $0x140] sm:$0xff]
    %v1947 = vld [vmem:[#allocation7 + $0x148] sm:$0xff]
    %v1948 = vld [vmem:[#allocation7 + $0x150] sm:$0xf]
    %v1949 = vld [vmem:[#allocation7 + $0x154] sm:$0xff]
    %v1950 = vld [vmem:[#allocation7 + $0x15c] sm:$0xff]
    %v1951 = vld [vmem:[#allocation7 + $0x164] sm:$0xf]
    %v1952 = vld [vmem:[#allocation7 + $0x168] sm:$0xff]
    %v1953 = vld [vmem:[#allocation7 + $0x170] sm:$0xff]
    %v1954 = vld [vmem:[#allocation7 + $0x178] sm:$0xf]
    %v1955 = vld [vmem:[#allocation7 + $0x17c] sm:$0xff]
    %v1956 = vld [vmem:[#allocation7 + $0x184] sm:$0xff]
    %v1957 = vld [vmem:[#allocation7 + $0x18c] sm:$0xf]
    %v1958 = vld [vmem:[#allocation7 + $0x190] sm:$0xff]
    %v1959 = vld [vmem:[#allocation7 + $0x198] sm:$0xff]
    %v1960 = vld [vmem:[#allocation7 + $0x1a0] sm:$0xf]
    %v1961 = vld [vmem:[#allocation7 + $0x1a4] sm:$0xff]
    %v1962 = vld [vmem:[#allocation7 + $0x1ac] sm:$0xff]
    %v1963 = vld [vmem:[#allocation7 + $0x1b4] sm:$0xf]
    %v1964 = vld [vmem:[#allocation7 + $0x1b8] sm:$0xff]
    %v1965 = vld [vmem:[#allocation7 + $0x1c0] sm:$0xff]
    %v1966 = vld [vmem:[#allocation7 + $0x1c8] sm:$0xf]
    %v1967 = vld [vmem:[#allocation7 + $0x1cc] sm:$0xff]
    %v1968 = vld [vmem:[#allocation7 + $0x1d4] sm:$0xff]
    %v1969 = vld [vmem:[#allocation7 + $0x1dc] sm:$0xf]
    %v1970 = vld [vmem:[#allocation7 + $0x1e0] sm:$0xff]
    %v1971 = vld [vmem:[#allocation7 + $0x1e8] sm:$0xff]
    %v1972 = vld [vmem:[#allocation7 + $0x1f0] sm:$0xf]
    %v1973 = vld [vmem:[#allocation7 + $0x1f4] sm:$0xff]
    %v1974 = vld [vmem:[#allocation7 + $0x1fc] sm:$0xff]
    %v1975 = vld [vmem:[#allocation7 + $0x204] sm:$0xf]
    %v1976 = vld [vmem:[#allocation7 + $0x208] sm:$0xff]
    %v1977 = vld [vmem:[#allocation7 + $0x210] sm:$0xff]
    %v1978 = vld [vmem:[#allocation7 + $0x218] sm:$0xf]
    %v1979 = vld [vmem:[#allocation7 + $0x21c] sm:$0xff]
    %v1980 = vld [vmem:[#allocation7 + $0x224] sm:$0xff]
    %v1981 = vld [vmem:[#allocation7 + $0x22c] sm:$0xf]
    %v1982 = vld [vmem:[#allocation7 + $0x230] sm:$0xff]
    %v1983 = vld [vmem:[#allocation7 + $0x238] sm:$0xff]
    %v1984 = vld [vmem:[#allocation7 + $0x240] sm:$0xf]
    %v1985 = vld [vmem:[#allocation7 + $0x244] sm:$0xff]
    %v1986 = vld [vmem:[#allocation7 + $0x24c] sm:$0xff]
    %v1987 = vld [vmem:[#allocation7 + $0x254] sm:$0xf]
    %v1988 = vld [vmem:[#allocation7 + $0x258] sm:$0xff]
    %v1989 = vld [vmem:[#allocation7 + $0x260] sm:$0xff]
    %v1990 = vld [vmem:[#allocation7 + $0x268] sm:$0xf]
    %v1991 = vld [vmem:[#allocation7 + $0x26c] sm:$0xff]
    %v1992 = vld [vmem:[#allocation7 + $0x274] sm:$0xff]
    %v1993 = vld [vmem:[#allocation7 + $0x27c] sm:$0xf]
    %v1994 = vld [vmem:[#allocation7 + $0x280] sm:$0xff]
    %v1995 = vld [vmem:[#allocation7 + $0x288] sm:$0xff]
    %v1996 = vld [vmem:[#allocation7 + $0x290] sm:$0xf]
    %v1997 = vld [vmem:[#allocation7 + $0x294] sm:$0xff]
    %v1998 = vld [vmem:[#allocation7 + $0x29c] sm:$0xff]
    %v1999 = vld [vmem:[#allocation7 + $0x2a4] sm:$0xf]
    %v2000 = vld [vmem:[#allocation7 + $0x2a8] sm:$0xff]
    %v2001 = vld [vmem:[#allocation7 + $0x2b0] sm:$0xff]
    %v2002 = vld [vmem:[#allocation7 + $0x2b8] sm:$0xf]
    %v2003 = vld [vmem:[#allocation7 + $0x2bc] sm:$0xff]
    %v2004 = vld [vmem:[#allocation7 + $0x2c4] sm:$0xff]
    %v2005 = vld [vmem:[#allocation7 + $0x2cc] sm:$0xf]
    %v2006 = vld [vmem:[#allocation7 + $0x2d0] sm:$0xff]
    %v2007 = vld [vmem:[#allocation7 + $0x2d8] sm:$0xff]
    %v2008 = vld [vmem:[#allocation7 + $0x2e0] sm:$0xf]
    %v2009 = vld [vmem:[#allocation7 + $0x2e4] sm:$0xff]
    %v2010 = vld [vmem:[#allocation7 + $0x2ec] sm:$0xff]
    %v2011 = vld [vmem:[#allocation7 + $0x2f4] sm:$0xf]
    %v2012 = vld [vmem:[#allocation7 + $0x2f8] sm:$0xff]
    %v2013 = vld [vmem:[#allocation7 + $0x300] sm:$0xff]
    %v2014 = vld [vmem:[#allocation7 + $0x308] sm:$0xf]
    %v2015 = vld [vmem:[#allocation7 + $0x30c] sm:$0xff]
    %v2016 = vld [vmem:[#allocation7 + $0x314] sm:$0xff]
    %v2017 = vld [vmem:[#allocation7 + $0x31c] sm:$0xf]
    %v2018 = vld [vmem:[#allocation7 + $0x320] sm:$0xff]
    %v2019 = vld [vmem:[#allocation7 + $0x328] sm:$0xff]
    %v2020 = vld [vmem:[#allocation7 + $0x330] sm:$0xf]
    %v2021 = vld [vmem:[#allocation7 + $0x334] sm:$0xff]
    %v2022 = vld [vmem:[#allocation7 + $0x33c] sm:$0xff]
    %v2023 = vld [vmem:[#allocation7 + $0x344] sm:$0xf]
    %v2024 = vld [vmem:[#allocation7 + $0x348] sm:$0xff]
    %v2025 = vld [vmem:[#allocation7 + $0x350] sm:$0xff]
    %v2026 = vld [vmem:[#allocation7 + $0x358] sm:$0xf]
    %v2027 = vld [vmem:[#allocation7 + $0x35c] sm:$0xff]
    %v2028 = vld [vmem:[#allocation7 + $0x364] sm:$0xff]
    %v2029 = vld [vmem:[#allocation7 + $0x36c] sm:$0xf]
    %v2030 = vld [vmem:[#allocation7 + $0x370] sm:$0xff]
    %v2031 = vld [vmem:[#allocation7 + $0x378] sm:$0xff]
    %v2032 = vld [vmem:[#allocation7 + $0x380] sm:$0xf]
    %v2033 = vld [vmem:[#allocation7 + $0x384] sm:$0xff]
    %v2034 = vld [vmem:[#allocation7 + $0x38c] sm:$0xff]
    %v2035 = vld [vmem:[#allocation7 + $0x394] sm:$0xf]
    %v2036 = vld [vmem:[#allocation7 + $0x398] sm:$0xff]
    %v2037 = vld [vmem:[#allocation7 + $0x3a0] sm:$0xff]
    %v2038 = vld [vmem:[#allocation7 + $0x3a8] sm:$0xf]
    %v2039 = vld [vmem:[#allocation7 + $0x3ac] sm:$0xff]
    %v2040 = vld [vmem:[#allocation7 + $0x3b4] sm:$0xff]
    %v2041 = vld [vmem:[#allocation7 + $0x3bc] sm:$0xf]
    %v2042 = vld [vmem:[#allocation7 + $0x3c0] sm:$0xff]
    %v2043 = vld [vmem:[#allocation7 + $0x3c8] sm:$0xff]
    %v2044 = vld [vmem:[#allocation7 + $0x3d0] sm:$0xf]
    %v2045 = vld [vmem:[#allocation7 + $0x3d4] sm:$0xff]
    %v2046 = vld [vmem:[#allocation7 + $0x3dc] sm:$0xff]
    %v2047 = vld [vmem:[#allocation7 + $0x3e4] sm:$0xf]
    %v2048 = vld [vmem:[#allocation7 + $0x3e8] sm:$0xff]
    %v2049 = vld [vmem:[#allocation7 + $0x3f0] sm:$0xff]
    %v2050 = vld [vmem:[#allocation7 + $0x3f8] sm:$0xf]
    %v2051 = vld [vmem:[#allocation7 + $0x3fc] sm:$0xff]
    %v2052 = vld [vmem:[#allocation7 + $0x404] sm:$0xff]
    %v2053 = vld [vmem:[#allocation7 + $0x40c] sm:$0xf]
    %v2054 = vld [vmem:[#allocation7 + $0x410] sm:$0xff]
    %v2055 = vld [vmem:[#allocation7 + $0x418] sm:$0xff]
    %v2056 = vld [vmem:[#allocation7 + $0x420] sm:$0xf]
    %v2057 = vld [vmem:[#allocation7 + $0x424] sm:$0xff]
    %v2058 = vld [vmem:[#allocation7 + $0x42c] sm:$0xff]
    %v2059 = vld [vmem:[#allocation7 + $0x434] sm:$0xf]
    %v2060 = vld [vmem:[#allocation7 + $0x438] sm:$0xff]
    %v2061 = vld [vmem:[#allocation7 + $0x440] sm:$0xff]
    %v2062 = vld [vmem:[#allocation7 + $0x448] sm:$0xf]
    %v2063 = vld [vmem:[#allocation7 + $0x44c] sm:$0xff]
    %v2064 = vld [vmem:[#allocation7 + $0x454] sm:$0xff]
    %v2065 = vld [vmem:[#allocation7 + $0x45c] sm:$0xf]
    %v2066 = vld [vmem:[#allocation7 + $0x460] sm:$0xff]
    %v2067 = vld [vmem:[#allocation7 + $0x468] sm:$0xff]
    %v2068 = vld [vmem:[#allocation7 + $0x470] sm:$0xf]
    %v2069 = vld [vmem:[#allocation7 + $0x474] sm:$0xff]
    %v2070 = vld [vmem:[#allocation7 + $0x47c] sm:$0xff]
    %v2071 = vld [vmem:[#allocation7 + $0x484] sm:$0xf]
    %v2072 = vld [vmem:[#allocation7 + $0x488] sm:$0xff]
    %v2073 = vld [vmem:[#allocation7 + $0x490] sm:$0xff]
    %v2074 = vld [vmem:[#allocation7 + $0x498] sm:$0xf]
    %v2075 = vld [vmem:[#allocation7 + $0x49c] sm:$0xff]
    %v2076 = vld [vmem:[#allocation7 + $0x4a4] sm:$0xff]
    %v2077 = vld [vmem:[#allocation7 + $0x4ac] sm:$0xf]
    %v2078 = vld [vmem:[#allocation7 + $0x4b0] sm:$0xff]
    %v2079 = vld [vmem:[#allocation7 + $0x4b8] sm:$0xff]
    %v2080 = vld [vmem:[#allocation7 + $0x4c0] sm:$0xf]
    %v2081 = vld [vmem:[#allocation7 + $0x4c4] sm:$0xff]
    %v2082 = vld [vmem:[#allocation7 + $0x4cc] sm:$0xff]
    %v2083 = vld [vmem:[#allocation7 + $0x4d4] sm:$0xf]
    %v2084 = vld [vmem:[#allocation7 + $0x4d8] sm:$0xff]
    %v2085 = vld [vmem:[#allocation7 + $0x4e0] sm:$0xff]
    %v2086 = vld [vmem:[#allocation7 + $0x4e8] sm:$0xf]
    %v2087 = vld [vmem:[#allocation7 + $0x4ec] sm:$0xff]
    %v2088 = vld [vmem:[#allocation7 + $0x4f4] sm:$0xff]
    %v2089 = vld [vmem:[#allocation7 + $0x4fc] sm:$0xf]
    %v2090 = vld [vmem:[#allocation7 + $0x500] sm:$0xff]
    %v2091 = vld [vmem:[#allocation7 + $0x508] sm:$0xff]
    %v2092 = vld [vmem:[#allocation7 + $0x510] sm:$0xf]
    %v2093 = vld [vmem:[#allocation7 + $0x514] sm:$0xff]
    %v2094 = vld [vmem:[#allocation7 + $0x51c] sm:$0xff]
    %v2095 = vld [vmem:[#allocation7 + $0x524] sm:$0xf]
    %v2096 = vld [vmem:[#allocation7 + $0x528] sm:$0xff]
    %v2097 = vld [vmem:[#allocation7 + $0x530] sm:$0xff]
    %v2098 = vld [vmem:[#allocation7 + $0x538] sm:$0xf]
    %v2099 = vld [vmem:[#allocation7 + $0x53c] sm:$0xff]
    %v2100 = vld [vmem:[#allocation7 + $0x544] sm:$0xff]
    %v2101 = vld [vmem:[#allocation7 + $0x54c] sm:$0xf]
    %v2102 = vld [vmem:[#allocation7 + $0x550] sm:$0xff]
    %v2103 = vld [vmem:[#allocation7 + $0x558] sm:$0xff]
    %v2104 = vld [vmem:[#allocation7 + $0x560] sm:$0xf]
    %v2105 = vld [vmem:[#allocation7 + $0x564] sm:$0xff]
    %v2106 = vld [vmem:[#allocation7 + $0x56c] sm:$0xff]
    %v2107 = vld [vmem:[#allocation7 + $0x574] sm:$0xf]
    %v2108 = vld [vmem:[#allocation7 + $0x578] sm:$0xff]
    %v2109 = vld [vmem:[#allocation7 + $0x580] sm:$0xff]
    %v2110 = vld [vmem:[#allocation7 + $0x588] sm:$0xf]
    %v2111 = vld [vmem:[#allocation7 + $0x58c] sm:$0xff]
    %v2112 = vld [vmem:[#allocation7 + $0x594] sm:$0xff]
    %v2113 = vld [vmem:[#allocation7 + $0x59c] sm:$0xf]
    %v2114 = vld [vmem:[#allocation7 + $0x5a0] sm:$0xff]
    %v2115 = vld [vmem:[#allocation7 + $0x5a8] sm:$0xff]
    %v2116 = vld [vmem:[#allocation7 + $0x5b0] sm:$0xf]
    %v2117 = vld [vmem:[#allocation7 + $0x5b4] sm:$0xff]
    %v2118 = vld [vmem:[#allocation7 + $0x5bc] sm:$0xff]
    %v2119 = vld [vmem:[#allocation7 + $0x5c4] sm:$0xf]
    %v2120 = vld [vmem:[#allocation7 + $0x5c8] sm:$0xff]
    %v2121 = vld [vmem:[#allocation7 + $0x5d0] sm:$0xff]
    %v2122 = vld [vmem:[#allocation7 + $0x5d8] sm:$0xf]
    %v2123 = vld [vmem:[#allocation7 + $0x5dc] sm:$0xff]
    %v2124 = vld [vmem:[#allocation7 + $0x5e4] sm:$0xff]
    %v2125 = vld [vmem:[#allocation7 + $0x5ec] sm:$0xf]
    %v2126 = vld [vmem:[#allocation7 + $0x5f0] sm:$0xff]
    %v2127 = vld [vmem:[#allocation7 + $0x5f8] sm:$0xff]
    %v2128 = vld [vmem:[#allocation7 + $0x600] sm:$0xf]
    %v2129 = vld [vmem:[#allocation7 + $0x604] sm:$0xff]
    %v2130 = vld [vmem:[#allocation7 + $0x60c] sm:$0xff]
    %v2131 = vld [vmem:[#allocation7 + $0x614] sm:$0xf]
    %v2132 = vld [vmem:[#allocation7 + $0x618] sm:$0xff]
    %v2133 = vld [vmem:[#allocation7 + $0x620] sm:$0xff]
    %v2134 = vld [vmem:[#allocation7 + $0x628] sm:$0xf]
    %v2135 = vld [vmem:[#allocation7 + $0x62c] sm:$0xff]
    %v2136 = vld [vmem:[#allocation7 + $0x634] sm:$0xff]
    %v2137 = vld [vmem:[#allocation7 + $0x63c] sm:$0xf]
    %v2138 = vld [vmem:[#allocation8] sm:$0x1f]
    %v2140 = vperm.slane %v2138, 0
    %v2141 = vperm.slane %v2138, 1
    %v2142 = vperm.slane %v2138, 2
    %v2143 = vperm.slane %v2138, 3
    %v2144 = vperm.slane %v2138, 4
    %v2153 = vunpack.c.l.b16 %v1895
    %v2154 = vunpack.c.h.b16 %v1895
    %v2155 = vunpack.c.l.b16 %v1896
    %v2156 = vunpack.c.h.b16 %v1896
    %v2157 = vunpack.c.l.b16 %v1897
    %v2158 = vpack.c.b16 %v2153, %v2153
    %v2159 = vpack.c.b16 %v2154, %v2154
    %v2160 = vpack.c.b16 %v2155, %v2155
    %v2161 = vpack.c.b16 %v2156, %v2156
    %v2162 = vpack.c.b16 %v2157, %v2157
    %v2408 = vunpack.c.l.b16 %v1898
    %v2409 = vunpack.c.h.b16 %v1898
    %v2410 = vunpack.c.l.b16 %v1899
    %v2411 = vunpack.c.h.b16 %v1899
    %v2412 = vunpack.c.l.b16 %v1900
    %v2413 = vunpack.c.l.b16 %v1901
    %v2414 = vunpack.c.h.b16 %v1901
    %v2415 = vunpack.c.l.b16 %v1902
    %v2416 = vunpack.c.h.b16 %v1902
    %v2417 = vunpack.c.l.b16 %v1903
    %v2418 = vunpack.c.l.b16 %v1904
    %v2419 = vunpack.c.h.b16 %v1904
    %v2420 = vunpack.c.l.b16 %v1905
    %v2421 = vunpack.c.h.b16 %v1905
    %v2422 = vunpack.c.l.b16 %v1906
    %v2423 = vunpack.c.l.b16 %v1907
    %v2424 = vunpack.c.h.b16 %v1907
    %v2425 = vunpack.c.l.b16 %v1908
    %v2426 = vunpack.c.h.b16 %v1908
    %v2427 = vunpack.c.l.b16 %v1909
    %v2428 = vunpack.c.l.b16 %v1910
    %v2429 = vunpack.c.h.b16 %v1910
    %v2430 = vunpack.c.l.b16 %v1911
    %v2431 = vunpack.c.h.b16 %v1911
    %v2432 = vunpack.c.l.b16 %v1912
    %v2433 = vunpack.c.l.b16 %v1913
    %v2434 = vunpack.c.h.b16 %v1913
    %v2435 = vunpack.c.l.b16 %v1914
    %v2436 = vunpack.c.h.b16 %v1914
    %v2437 = vunpack.c.l.b16 %v1915
    %v2438 = vunpack.c.l.b16 %v1916
    %v2439 = vunpack.c.h.b16 %v1916
    %v2440 = vunpack.c.l.b16 %v1917
    %v2441 = vunpack.c.h.b16 %v1917
    %v2442 = vunpack.c.l.b16 %v1918
    %v2443 = vunpack.c.l.b16 %v1919
    %v2444 = vunpack.c.h.b16 %v1919
    %v2445 = vunpack.c.l.b16 %v1920
    %v2446 = vunpack.c.h.b16 %v1920
    %v2447 = vunpack.c.l.b16 %v1921
    %v2448 = vunpack.c.l.b16 %v1922
    %v2449 = vunpack.c.h.b16 %v1922
    %v2450 = vunpack.c.l.b16 %v1923
    %v2451 = vunpack.c.h.b16 %v1923
    %v2452 = vunpack.c.l.b16 %v1924
    %v2453 = vunpack.c.l.b16 %v1925
    %v2454 = vunpack.c.h.b16 %v1925
    %v2455 = vunpack.c.l.b16 %v1926
    %v2456 = vunpack.c.h.b16 %v1926
    %v2457 = vunpack.c.l.b16 %v1927
    %v2458 = vunpack.c.l.b16 %v1928
    %v2459 = vunpack.c.h.b16 %v1928
    %v2460 = vunpack.c.l.b16 %v1929
    %v2461 = vunpack.c.h.b16 %v1929
    %v2462 = vunpack.c.l.b16 %v1930
    %v2463 = vunpack.c.l.b16 %v1931
    %v2464 = vunpack.c.h.b16 %v1931
    %v2465 = vunpack.c.l.b16 %v1932
    %v2466 = vunpack.c.h.b16 %v1932
    %v2467 = vunpack.c.l.b16 %v1933
    %v2468 = vunpack.c.l.b16 %v1934
    %v2469 = vunpack.c.h.b16 %v1934
    %v2470 = vunpack.c.l.b16 %v1935
    %v2471 = vunpack.c.h.b16 %v1935
    %v2472 = vunpack.c.l.b16 %v1936
    %v2473 = vunpack.c.l.b16 %v1937
    %v2474 = vunpack.c.h.b16 %v1937
    %v2475 = vunpack.c.l.b16 %v1938
    %v2476 = vunpack.c.h.b16 %v1938
    %v2477 = vunpack.c.l.b16 %v1939
    %v2478 = vunpack.c.l.b16 %v1940
    %v2479 = vunpack.c.h.b16 %v1940
    %v2480 = vunpack.c.l.b16 %v1941
    %v2481 = vunpack.c.h.b16 %v1941
    %v2482 = vunpack.c.l.b16 %v1942
    %v2483 = vunpack.c.l.b16 %v1943
    %v2484 = vunpack.c.h.b16 %v1943
    %v2485 = vunpack.c.l.b16 %v1944
    %v2486 = vunpack.c.h.b16 %v1944
    %v2487 = vunpack.c.l.b16 %v1945
    %v2488 = vunpack.c.l.b16 %v1946
    %v2489 = vunpack.c.h.b16 %v1946
    %v2490 = vunpack.c.l.b16 %v1947
    %v2491 = vunpack.c.h.b16 %v1947
    %v2492 = vunpack.c.l.b16 %v1948
    %v2493 = vunpack.c.l.b16 %v1949
    %v2494 = vunpack.c.h.b16 %v1949
    %v2495 = vunpack.c.l.b16 %v1950
    %v2496 = vunpack.c.h.b16 %v1950
    %v2497 = vunpack.c.l.b16 %v1951
    %v2498 = vunpack.c.l.b16 %v1952
    %v2499 = vunpack.c.h.b16 %v1952
    %v2500 = vunpack.c.l.b16 %v1953
    %v2501 = vunpack.c.h.b16 %v1953
    %v2502 = vunpack.c.l.b16 %v1954
    %v2503 = vunpack.c.l.b16 %v1955
    %v2504 = vunpack.c.h.b16 %v1955
    %v2505 = vunpack.c.l.b16 %v1956
    %v2506 = vunpack.c.h.b16 %v1956
    %v2507 = vunpack.c.l.b16 %v1957
    %v2508 = vunpack.c.l.b16 %v1958
    %v2509 = vunpack.c.h.b16 %v1958
    %v2510 = vunpack.c.l.b16 %v1959
    %v2511 = vunpack.c.h.b16 %v1959
    %v2512 = vunpack.c.l.b16 %v1960
    %v2513 = vunpack.c.l.b16 %v1961
    %v2514 = vunpack.c.h.b16 %v1961
    %v2515 = vunpack.c.l.b16 %v1962
    %v2516 = vunpack.c.h.b16 %v1962
    %v2517 = vunpack.c.l.b16 %v1963
    %v2518 = vunpack.c.l.b16 %v1964
    %v2519 = vunpack.c.h.b16 %v1964
    %v2520 = vunpack.c.l.b16 %v1965
    %v2521 = vunpack.c.h.b16 %v1965
    %v2522 = vunpack.c.l.b16 %v1966
    %v2523 = vunpack.c.l.b16 %v1967
    %v2524 = vunpack.c.h.b16 %v1967
    %v2525 = vunpack.c.l.b16 %v1968
    %v2526 = vunpack.c.h.b16 %v1968
    %v2527 = vunpack.c.l.b16 %v1969
    %v2528 = vunpack.c.l.b16 %v1970
    %v2529 = vunpack.c.h.b16 %v1970
    %v2530 = vunpack.c.l.b16 %v1971
    %v2531 = vunpack.c.h.b16 %v1971
    %v2532 = vunpack.c.l.b16 %v1972
    %v2533 = vunpack.c.l.b16 %v1973
    %v2534 = vunpack.c.h.b16 %v1973
    %v2535 = vunpack.c.l.b16 %v1974
    %v2536 = vunpack.c.h.b16 %v1974
    %v2537 = vunpack.c.l.b16 %v1975
    %v2538 = vunpack.c.l.b16 %v1976
    %v2539 = vunpack.c.h.b16 %v1976
    %v2540 = vunpack.c.l.b16 %v1977
    %v2541 = vunpack.c.h.b16 %v1977
    %v2542 = vunpack.c.l.b16 %v1978
    %v2543 = vunpack.c.l.b16 %v1979
    %v2544 = vunpack.c.h.b16 %v1979
    %v2545 = vunpack.c.l.b16 %v1980
    %v2546 = vunpack.c.h.b16 %v1980
    %v2547 = vunpack.c.l.b16 %v1981
    %v2548 = vunpack.c.l.b16 %v1982
    %v2549 = vunpack.c.h.b16 %v1982
    %v2550 = vunpack.c.l.b16 %v1983
    %v2551 = vunpack.c.h.b16 %v1983
    %v2552 = vunpack.c.l.b16 %v1984
    %v2553 = vunpack.c.l.b16 %v1985
    %v2554 = vunpack.c.h.b16 %v1985
    %v2555 = vunpack.c.l.b16 %v1986
    %v2556 = vunpack.c.h.b16 %v1986
    %v2557 = vunpack.c.l.b16 %v1987
    %v2558 = vunpack.c.l.b16 %v1988
    %v2559 = vunpack.c.h.b16 %v1988
    %v2560 = vunpack.c.l.b16 %v1989
    %v2561 = vunpack.c.h.b16 %v1989
    %v2562 = vunpack.c.l.b16 %v1990
    %v2563 = vunpack.c.l.b16 %v1991
    %v2564 = vunpack.c.h.b16 %v1991
    %v2565 = vunpack.c.l.b16 %v1992
    %v2566 = vunpack.c.h.b16 %v1992
    %v2567 = vunpack.c.l.b16 %v1993
    %v2568 = vunpack.c.l.b16 %v1994
    %v2569 = vunpack.c.h.b16 %v1994
    %v2570 = vunpack.c.l.b16 %v1995
    %v2571 = vunpack.c.h.b16 %v1995
    %v2572 = vunpack.c.l.b16 %v1996
    %v2573 = vunpack.c.l.b16 %v1997
    %v2574 = vunpack.c.h.b16 %v1997
    %v2575 = vunpack.c.l.b16 %v1998
    %v2576 = vunpack.c.h.b16 %v1998
    %v2577 = vunpack.c.l.b16 %v1999
    %v2578 = vunpack.c.l.b16 %v2000
    %v2579 = vunpack.c.h.b16 %v2000
    %v2580 = vunpack.c.l.b16 %v2001
    %v2581 = vunpack.c.h.b16 %v2001
    %v2582 = vunpack.c.l.b16 %v2002
    %v2583 = vunpack.c.l.b16 %v2003
    %v2584 = vunpack.c.h.b16 %v2003
    %v2585 = vunpack.c.l.b16 %v2004
    %v2586 = vunpack.c.h.b16 %v2004
    %v2587 = vunpack.c.l.b16 %v2005
    %v2588 = vunpack.c.l.b16 %v2006
    %v2589 = vunpack.c.h.b16 %v2006
    %v2590 = vunpack.c.l.b16 %v2007
    %v2591 = vunpack.c.h.b16 %v2007
    %v2592 = vunpack.c.l.b16 %v2008
    %v2593 = vunpack.c.l.b16 %v2009
    %v2594 = vunpack.c.h.b16 %v2009
    %v2595 = vunpack.c.l.b16 %v2010
    %v2596 = vunpack.c.h.b16 %v2010
    %v2597 = vunpack.c.l.b16 %v2011
    %v2598 = vunpack.c.l.b16 %v2012
    %v2599 = vunpack.c.h.b16 %v2012
    %v2600 = vunpack.c.l.b16 %v2013
    %v2601 = vunpack.c.h.b16 %v2013
    %v2602 = vunpack.c.l.b16 %v2014
    %v2603 = vunpack.c.l.b16 %v2015
    %v2604 = vunpack.c.h.b16 %v2015
    %v2605 = vunpack.c.l.b16 %v2016
    %v2606 = vunpack.c.h.b16 %v2016
    %v2607 = vunpack.c.l.b16 %v2017
    %v2608 = vunpack.c.l.b16 %v2018
    %v2609 = vunpack.c.h.b16 %v2018
    %v2610 = vunpack.c.l.b16 %v2019
    %v2611 = vunpack.c.h.b16 %v2019
    %v2612 = vunpack.c.l.b16 %v2020
    %v2613 = vunpack.c.l.b16 %v2021
    %v2614 = vunpack.c.h.b16 %v2021
    %v2615 = vunpack.c.l.b16 %v2022
    %v2616 = vunpack.c.h.b16 %v2022
    %v2617 = vunpack.c.l.b16 %v2023
    %v2618 = vunpack.c.l.b16 %v2024
    %v2619 = vunpack.c.h.b16 %v2024
    %v2620 = vunpack.c.l.b16 %v2025
    %v2621 = vunpack.c.h.b16 %v2025
    %v2622 = vunpack.c.l.b16 %v2026
    %v2623 = vunpack.c.l.b16 %v2027
    %v2624 = vunpack.c.h.b16 %v2027
    %v2625 = vunpack.c.l.b16 %v2028
    %v2626 = vunpack.c.h.b16 %v2028
    %v2627 = vunpack.c.l.b16 %v2029
    %v2628 = vunpack.c.l.b16 %v2030
    %v2629 = vunpack.c.h.b16 %v2030
    %v2630 = vunpack.c.l.b16 %v2031
    %v2631 = vunpack.c.h.b16 %v2031
    %v2632 = vunpack.c.l.b16 %v2032
    %v2633 = vunpack.c.l.b16 %v2033
    %v2634 = vunpack.c.h.b16 %v2033
    %v2635 = vunpack.c.l.b16 %v2034
    %v2636 = vunpack.c.h.b16 %v2034
    %v2637 = vunpack.c.l.b16 %v2035
    %v2638 = vunpack.c.l.b16 %v2036
    %v2639 = vunpack.c.h.b16 %v2036
    %v2640 = vunpack.c.l.b16 %v2037
    %v2641 = vunpack.c.h.b16 %v2037
    %v2642 = vunpack.c.l.b16 %v2038
    %v2643 = vunpack.c.l.b16 %v2039
    %v2644 = vunpack.c.h.b16 %v2039
    %v2645 = vunpack.c.l.b16 %v2040
    %v2646 = vunpack.c.h.b16 %v2040
    %v2647 = vunpack.c.l.b16 %v2041
    %v2648 = vunpack.c.l.b16 %v2042
    %v2649 = vunpack.c.h.b16 %v2042
    %v2650 = vunpack.c.l.b16 %v2043
    %v2651 = vunpack.c.h.b16 %v2043
    %v2652 = vunpack.c.l.b16 %v2044
    %v2653 = vunpack.c.l.b16 %v2045
    %v2654 = vunpack.c.h.b16 %v2045
    %v2655 = vunpack.c.l.b16 %v2046
    %v2656 = vunpack.c.h.b16 %v2046
    %v2657 = vunpack.c.l.b16 %v2047
    %v2658 = vunpack.c.l.b16 %v2048
    %v2659 = vunpack.c.h.b16 %v2048
    %v2660 = vunpack.c.l.b16 %v2049
    %v2661 = vunpack.c.h.b16 %v2049
    %v2662 = vunpack.c.l.b16 %v2050
    %v2663 = vunpack.c.l.b16 %v2051
    %v2664 = vunpack.c.h.b16 %v2051
    %v2665 = vunpack.c.l.b16 %v2052
    %v2666 = vunpack.c.h.b16 %v2052
    %v2667 = vunpack.c.l.b16 %v2053
    %v2668 = vunpack.c.l.b16 %v2054
    %v2669 = vunpack.c.h.b16 %v2054
    %v2670 = vunpack.c.l.b16 %v2055
    %v2671 = vunpack.c.h.b16 %v2055
    %v2672 = vunpack.c.l.b16 %v2056
    %v2673 = vunpack.c.l.b16 %v2057
    %v2674 = vunpack.c.h.b16 %v2057
    %v2675 = vunpack.c.l.b16 %v2058
    %v2676 = vunpack.c.h.b16 %v2058
    %v2677 = vunpack.c.l.b16 %v2059
    %v2678 = vunpack.c.l.b16 %v2060
    %v2679 = vunpack.c.h.b16 %v2060
    %v2680 = vunpack.c.l.b16 %v2061
    %v2681 = vunpack.c.h.b16 %v2061
    %v2682 = vunpack.c.l.b16 %v2062
    %v2683 = vunpack.c.l.b16 %v2063
    %v2684 = vunpack.c.h.b16 %v2063
    %v2685 = vunpack.c.l.b16 %v2064
    %v2686 = vunpack.c.h.b16 %v2064
    %v2687 = vunpack.c.l.b16 %v2065
    %v2688 = vunpack.c.l.b16 %v2066
    %v2689 = vunpack.c.h.b16 %v2066
    %v2690 = vunpack.c.l.b16 %v2067
    %v2691 = vunpack.c.h.b16 %v2067
    %v2692 = vunpack.c.l.b16 %v2068
    %v2693 = vunpack.c.l.b16 %v2069
    %v2694 = vunpack.c.h.b16 %v2069
    %v2695 = vunpack.c.l.b16 %v2070
    %v2696 = vunpack.c.h.b16 %v2070
    %v2697 = vunpack.c.l.b16 %v2071
    %v2698 = vunpack.c.l.b16 %v2072
    %v2699 = vunpack.c.h.b16 %v2072
    %v2700 = vunpack.c.l.b16 %v2073
    %v2701 = vunpack.c.h.b16 %v2073
    %v2702 = vunpack.c.l.b16 %v2074
    %v2703 = vunpack.c.l.b16 %v2075
    %v2704 = vunpack.c.h.b16 %v2075
    %v2705 = vunpack.c.l.b16 %v2076
    %v2706 = vunpack.c.h.b16 %v2076
    %v2707 = vunpack.c.l.b16 %v2077
    %v2708 = vunpack.c.l.b16 %v2078
    %v2709 = vunpack.c.h.b16 %v2078
    %v2710 = vunpack.c.l.b16 %v2079
    %v2711 = vunpack.c.h.b16 %v2079
    %v2712 = vunpack.c.l.b16 %v2080
    %v2713 = vunpack.c.l.b16 %v2081
    %v2714 = vunpack.c.h.b16 %v2081
    %v2715 = vunpack.c.l.b16 %v2082
    %v2716 = vunpack.c.h.b16 %v2082
    %v2717 = vunpack.c.l.b16 %v2083
    %v2718 = vunpack.c.l.b16 %v2084
    %v2719 = vunpack.c.h.b16 %v2084
    %v2720 = vunpack.c.l.b16 %v2085
    %v2721 = vunpack.c.h.b16 %v2085
    %v2722 = vunpack.c.l.b16 %v2086
    %v2723 = vunpack.c.l.b16 %v2087
    %v2724 = vunpack.c.h.b16 %v2087
    %v2725 = vunpack.c.l.b16 %v2088
    %v2726 = vunpack.c.h.b16 %v2088
    %v2727 = vunpack.c.l.b16 %v2089
    %v2728 = vunpack.c.l.b16 %v2090
    %v2729 = vunpack.c.h.b16 %v2090
    %v2730 = vunpack.c.l.b16 %v2091
    %v2731 = vunpack.c.h.b16 %v2091
    %v2732 = vunpack.c.l.b16 %v2092
    %v2733 = vunpack.c.l.b16 %v2093
    %v2734 = vunpack.c.h.b16 %v2093
    %v2735 = vunpack.c.l.b16 %v2094
    %v2736 = vunpack.c.h.b16 %v2094
    %v2737 = vunpack.c.l.b16 %v2095
    %v2738 = vunpack.c.l.b16 %v2096
    %v2739 = vunpack.c.h.b16 %v2096
    %v2740 = vunpack.c.l.b16 %v2097
    %v2741 = vunpack.c.h.b16 %v2097
    %v2742 = vunpack.c.l.b16 %v2098
    %v2743 = vunpack.c.l.b16 %v2099
    %v2744 = vunpack.c.h.b16 %v2099
    %v2745 = vunpack.c.l.b16 %v2100
    %v2746 = vunpack.c.h.b16 %v2100
    %v2747 = vunpack.c.l.b16 %v2101
    %v2748 = vunpack.c.l.b16 %v2102
    %v2749 = vunpack.c.h.b16 %v2102
    %v2750 = vunpack.c.l.b16 %v2103
    %v2751 = vunpack.c.h.b16 %v2103
    %v2752 = vunpack.c.l.b16 %v2104
    %v2753 = vunpack.c.l.b16 %v2105
    %v2754 = vunpack.c.h.b16 %v2105
    %v2755 = vunpack.c.l.b16 %v2106
    %v2756 = vunpack.c.h.b16 %v2106
    %v2757 = vunpack.c.l.b16 %v2107
    %v2758 = vunpack.c.l.b16 %v2108
    %v2759 = vunpack.c.h.b16 %v2108
    %v2760 = vunpack.c.l.b16 %v2109
    %v2761 = vunpack.c.h.b16 %v2109
    %v2762 = vunpack.c.l.b16 %v2110
    %v2763 = vunpack.c.l.b16 %v2111
    %v2764 = vunpack.c.h.b16 %v2111
    %v2765 = vunpack.c.l.b16 %v2112
    %v2766 = vunpack.c.h.b16 %v2112
    %v2767 = vunpack.c.l.b16 %v2113
    %v2768 = vunpack.c.l.b16 %v2114
    %v2769 = vunpack.c.h.b16 %v2114
    %v2770 = vunpack.c.l.b16 %v2115
    %v2771 = vunpack.c.h.b16 %v2115
    %v2772 = vunpack.c.l.b16 %v2116
    %v2773 = vunpack.c.l.b16 %v2117
    %v2774 = vunpack.c.h.b16 %v2117
    %v2775 = vunpack.c.l.b16 %v2118
    %v2776 = vunpack.c.h.b16 %v2118
    %v2777 = vunpack.c.l.b16 %v2119
    %v2778 = vunpack.c.l.b16 %v2120
    %v2779 = vunpack.c.h.b16 %v2120
    %v2780 = vunpack.c.l.b16 %v2121
    %v2781 = vunpack.c.h.b16 %v2121
    %v2782 = vunpack.c.l.b16 %v2122
    %v2783 = vunpack.c.l.b16 %v2123
    %v2784 = vunpack.c.h.b16 %v2123
    %v2785 = vunpack.c.l.b16 %v2124
    %v2786 = vunpack.c.h.b16 %v2124
    %v2787 = vunpack.c.l.b16 %v2125
    %v2788 = vunpack.c.l.b16 %v2126
    %v2789 = vunpack.c.h.b16 %v2126
    %v2790 = vunpack.c.l.b16 %v2127
    %v2791 = vunpack.c.h.b16 %v2127
    %v2792 = vunpack.c.l.b16 %v2128
    %v2793 = vunpack.c.l.b16 %v2129
    %v2794 = vunpack.c.h.b16 %v2129
    %v2795 = vunpack.c.l.b16 %v2130
    %v2796 = vunpack.c.h.b16 %v2130
    %v2797 = vunpack.c.l.b16 %v2131
    %v2798 = vunpack.c.l.b16 %v2132
    %v2799 = vunpack.c.h.b16 %v2132
    %v2800 = vunpack.c.l.b16 %v2133
    %v2801 = vunpack.c.h.b16 %v2133
    %v2802 = vunpack.c.l.b16 %v2134
    %v2803 = vunpack.c.l.b16 %v2135
    %v2804 = vunpack.c.h.b16 %v2135
    %v2805 = vunpack.c.l.b16 %v2136
    %v2806 = vunpack.c.h.b16 %v2136
    %v2807 = vunpack.c.l.b16 %v2137
    %v2808 = vpack.c.b16 %v2413, %v2408
    %v2809 = vpack.c.b16 %v2414, %v2409
    %v2810 = vpack.c.b16 %v2415, %v2410
    %v2811 = vpack.c.b16 %v2416, %v2411
    %v2812 = vpack.c.b16 %v2417, %v2412
    %v2813 = vpack.c.b16 %v2423, %v2418
    %v2814 = vpack.c.b16 %v2424, %v2419
    %v2815 = vpack.c.b16 %v2425, %v2420
    %v2816 = vpack.c.b16 %v2426, %v2421
    %v2817 = vpack.c.b16 %v2427, %v2422
    %v2818 = vpack.c.b16 %v2433, %v2428
    %v2819 = vpack.c.b16 %v2434, %v2429
    %v2820 = vpack.c.b16 %v2435, %v2430
    %v2821 = vpack.c.b16 %v2436, %v2431
    %v2822 = vpack.c.b16 %v2437, %v2432
    %v2823 = vpack.c.b16 %v2443, %v2438
    %v2824 = vpack.c.b16 %v2444, %v2439
    %v2825 = vpack.c.b16 %v2445, %v2440
    %v2826 = vpack.c.b16 %v2446, %v2441
    %v2827 = vpack.c.b16 %v2447, %v2442
    %v2828 = vpack.c.b16 %v2453, %v2448
    %v2829 = vpack.c.b16 %v2454, %v2449
    %v2830 = vpack.c.b16 %v2455, %v2450
    %v2831 = vpack.c.b16 %v2456, %v2451
    %v2832 = vpack.c.b16 %v2457, %v2452
    %v2833 = vpack.c.b16 %v2463, %v2458
    %v2834 = vpack.c.b16 %v2464, %v2459
    %v2835 = vpack.c.b16 %v2465, %v2460
    %v2836 = vpack.c.b16 %v2466, %v2461
    %v2837 = vpack.c.b16 %v2467, %v2462
    %v2838 = vpack.c.b16 %v2473, %v2468
    %v2839 = vpack.c.b16 %v2474, %v2469
    %v2840 = vpack.c.b16 %v2475, %v2470
    %v2841 = vpack.c.b16 %v2476, %v2471
    %v2842 = vpack.c.b16 %v2477, %v2472
    %v2843 = vpack.c.b16 %v2483, %v2478
    %v2844 = vpack.c.b16 %v2484, %v2479
    %v2845 = vpack.c.b16 %v2485, %v2480
    %v2846 = vpack.c.b16 %v2486, %v2481
    %v2847 = vpack.c.b16 %v2487, %v2482
    %v2848 = vpack.c.b16 %v2493, %v2488
    %v2849 = vpack.c.b16 %v2494, %v2489
    %v2850 = vpack.c.b16 %v2495, %v2490
    %v2851 = vpack.c.b16 %v2496, %v2491
    %v2852 = vpack.c.b16 %v2497, %v2492
    %v2853 = vpack.c.b16 %v2503, %v2498
    %v2854 = vpack.c.b16 %v2504, %v2499
    %v2855 = vpack.c.b16 %v2505, %v2500
    %v2856 = vpack.c.b16 %v2506, %v2501
    %v2857 = vpack.c.b16 %v2507, %v2502
    %v2858 = vpack.c.b16 %v2513, %v2508
    %v2859 = vpack.c.b16 %v2514, %v2509
    %v2860 = vpack.c.b16 %v2515, %v2510
    %v2861 = vpack.c.b16 %v2516, %v2511
    %v2862 = vpack.c.b16 %v2517, %v2512
    %v2863 = vpack.c.b16 %v2523, %v2518
    %v2864 = vpack.c.b16 %v2524, %v2519
    %v2865 = vpack.c.b16 %v2525, %v2520
    %v2866 = vpack.c.b16 %v2526, %v2521
    %v2867 = vpack.c.b16 %v2527, %v2522
    %v2868 = vpack.c.b16 %v2533, %v2528
    %v2869 = vpack.c.b16 %v2534, %v2529
    %v2870 = vpack.c.b16 %v2535, %v2530
    %v2871 = vpack.c.b16 %v2536, %v2531
    %v2872 = vpack.c.b16 %v2537, %v2532
    %v2873 = vpack.c.b16 %v2543, %v2538
    %v2874 = vpack.c.b16 %v2544, %v2539
    %v2875 = vpack.c.b16 %v2545, %v2540
    %v2876 = vpack.c.b16 %v2546, %v2541
    %v2877 = vpack.c.b16 %v2547, %v2542
    %v2878 = vpack.c.b16 %v2553, %v2548
    %v2879 = vpack.c.b16 %v2554, %v2549
    %v2880 = vpack.c.b16 %v2555, %v2550
    %v2881 = vpack.c.b16 %v2556, %v2551
    %v2882 = vpack.c.b16 %v2557, %v2552
    %v2883 = vpack.c.b16 %v2563, %v2558
    %v2884 = vpack.c.b16 %v2564, %v2559
    %v2885 = vpack.c.b16 %v2565, %v2560
    %v2886 = vpack.c.b16 %v2566, %v2561
    %v2887 = vpack.c.b16 %v2567, %v2562
    %v2888 = vpack.c.b16 %v2573, %v2568
    %v2889 = vpack.c.b16 %v2574, %v2569
    %v2890 = vpack.c.b16 %v2575, %v2570
    %v2891 = vpack.c.b16 %v2576, %v2571
    %v2892 = vpack.c.b16 %v2577, %v2572
    %v2893 = vpack.c.b16 %v2583, %v2578
    %v2894 = vpack.c.b16 %v2584, %v2579
    %v2895 = vpack.c.b16 %v2585, %v2580
    %v2896 = vpack.c.b16 %v2586, %v2581
    %v2897 = vpack.c.b16 %v2587, %v2582
    %v2898 = vpack.c.b16 %v2593, %v2588
    %v2899 = vpack.c.b16 %v2594, %v2589
    %v2900 = vpack.c.b16 %v2595, %v2590
    %v2901 = vpack.c.b16 %v2596, %v2591
    %v2902 = vpack.c.b16 %v2597, %v2592
    %v2903 = vpack.c.b16 %v2603, %v2598
    %v2904 = vpack.c.b16 %v2604, %v2599
    %v2905 = vpack.c.b16 %v2605, %v2600
    %v2906 = vpack.c.b16 %v2606, %v2601
    %v2907 = vpack.c.b16 %v2607, %v2602
    %v2908 = vpack.c.b16 %v2613, %v2608
    %v2909 = vpack.c.b16 %v2614, %v2609
    %v2910 = vpack.c.b16 %v2615, %v2610
    %v2911 = vpack.c.b16 %v2616, %v2611
    %v2912 = vpack.c.b16 %v2617, %v2612
    %v2913 = vpack.c.b16 %v2623, %v2618
    %v2914 = vpack.c.b16 %v2624, %v2619
    %v2915 = vpack.c.b16 %v2625, %v2620
    %v2916 = vpack.c.b16 %v2626, %v2621
    %v2917 = vpack.c.b16 %v2627, %v2622
    %v2918 = vpack.c.b16 %v2633, %v2628
    %v2919 = vpack.c.b16 %v2634, %v2629
    %v2920 = vpack.c.b16 %v2635, %v2630
    %v2921 = vpack.c.b16 %v2636, %v2631
    %v2922 = vpack.c.b16 %v2637, %v2632
    %v2923 = vpack.c.b16 %v2643, %v2638
    %v2924 = vpack.c.b16 %v2644, %v2639
    %v2925 = vpack.c.b16 %v2645, %v2640
    %v2926 = vpack.c.b16 %v2646, %v2641
    %v2927 = vpack.c.b16 %v2647, %v2642
    %v2928 = vpack.c.b16 %v2653, %v2648
    %v2929 = vpack.c.b16 %v2654, %v2649
    %v2930 = vpack.c.b16 %v2655, %v2650
    %v2931 = vpack.c.b16 %v2656, %v2651
    %v2932 = vpack.c.b16 %v2657, %v2652
    %v2933 = vpack.c.b16 %v2663, %v2658
    %v2934 = vpack.c.b16 %v2664, %v2659
    %v2935 = vpack.c.b16 %v2665, %v2660
    %v2936 = vpack.c.b16 %v2666, %v2661
    %v2937 = vpack.c.b16 %v2667, %v2662
    %v2938 = vpack.c.b16 %v2673, %v2668
    %v2939 = vpack.c.b16 %v2674, %v2669
    %v2940 = vpack.c.b16 %v2675, %v2670
    %v2941 = vpack.c.b16 %v2676, %v2671
    %v2942 = vpack.c.b16 %v2677, %v2672
    %v2943 = vpack.c.b16 %v2683, %v2678
    %v2944 = vpack.c.b16 %v2684, %v2679
    %v2945 = vpack.c.b16 %v2685, %v2680
    %v2946 = vpack.c.b16 %v2686, %v2681
    %v2947 = vpack.c.b16 %v2687, %v2682
    %v2948 = vpack.c.b16 %v2693, %v2688
    %v2949 = vpack.c.b16 %v2694, %v2689
    %v2950 = vpack.c.b16 %v2695, %v2690
    %v2951 = vpack.c.b16 %v2696, %v2691
    %v2952 = vpack.c.b16 %v2697, %v2692
    %v2953 = vpack.c.b16 %v2703, %v2698
    %v2954 = vpack.c.b16 %v2704, %v2699
    %v2955 = vpack.c.b16 %v2705, %v2700
    %v2956 = vpack.c.b16 %v2706, %v2701
    %v2957 = vpack.c.b16 %v2707, %v2702
    %v2958 = vpack.c.b16 %v2713, %v2708
    %v2959 = vpack.c.b16 %v2714, %v2709
    %v2960 = vpack.c.b16 %v2715, %v2710
    %v2961 = vpack.c.b16 %v2716, %v2711
    %v2962 = vpack.c.b16 %v2717, %v2712
    %v2963 = vpack.c.b16 %v2723, %v2718
    %v2964 = vpack.c.b16 %v2724, %v2719
    %v2965 = vpack.c.b16 %v2725, %v2720
    %v2966 = vpack.c.b16 %v2726, %v2721
    %v2967 = vpack.c.b16 %v2727, %v2722
    %v2968 = vpack.c.b16 %v2733, %v2728
    %v2969 = vpack.c.b16 %v2734, %v2729
    %v2970 = vpack.c.b16 %v2735, %v2730
    %v2971 = vpack.c.b16 %v2736, %v2731
    %v2972 = vpack.c.b16 %v2737, %v2732
    %v2973 = vpack.c.b16 %v2743, %v2738
    %v2974 = vpack.c.b16 %v2744, %v2739
    %v2975 = vpack.c.b16 %v2745, %v2740
    %v2976 = vpack.c.b16 %v2746, %v2741
    %v2977 = vpack.c.b16 %v2747, %v2742
    %v2978 = vpack.c.b16 %v2753, %v2748
    %v2979 = vpack.c.b16 %v2754, %v2749
    %v2980 = vpack.c.b16 %v2755, %v2750
    %v2981 = vpack.c.b16 %v2756, %v2751
    %v2982 = vpack.c.b16 %v2757, %v2752
    %v2983 = vpack.c.b16 %v2763, %v2758
    %v2984 = vpack.c.b16 %v2764, %v2759
    %v2985 = vpack.c.b16 %v2765, %v2760
    %v2986 = vpack.c.b16 %v2766, %v2761
    %v2987 = vpack.c.b16 %v2767, %v2762
    %v2988 = vpack.c.b16 %v2773, %v2768
    %v2989 = vpack.c.b16 %v2774, %v2769
    %v2990 = vpack.c.b16 %v2775, %v2770
    %v2991 = vpack.c.b16 %v2776, %v2771
    %v2992 = vpack.c.b16 %v2777, %v2772
    %v2993 = vpack.c.b16 %v2783, %v2778
    %v2994 = vpack.c.b16 %v2784, %v2779
    %v2995 = vpack.c.b16 %v2785, %v2780
    %v2996 = vpack.c.b16 %v2786, %v2781
    %v2997 = vpack.c.b16 %v2787, %v2782
    %v2998 = vpack.c.b16 %v2793, %v2788
    %v2999 = vpack.c.b16 %v2794, %v2789
    %v3000 = vpack.c.b16 %v2795, %v2790
    %v3001 = vpack.c.b16 %v2796, %v2791
    %v3002 = vpack.c.b16 %v2797, %v2792
    %v3003 = vpack.c.b16 %v2803, %v2798
    %v3004 = vpack.c.b16 %v2804, %v2799
    %v3005 = vpack.c.b16 %v2805, %v2800
    %v3006 = vpack.c.b16 %v2806, %v2801
    %v3007 = vpack.c.b16 %v2807, %v2802
    %3208 = vmatpush.bf16.msra.mxu0 %v2843
    %3209 = vmatpush.bf16.msra.mxu0 %v2838
    %3210 = vmatpush.bf16.msra.mxu0 %v2833
    %3211 = vmatpush.bf16.msra.mxu0 %v2828
    %3212 = vmatpush.bf16.msra.mxu0 %v2823
    %3213 = vmatpush.bf16.msra.mxu0 %v2818
    %3214 = vmatpush.bf16.msra.mxu0 %v2813
    %3215 = vmatpush.bf16.msra.mxu0 %v2808
    %3216 = vmatmul.bf16.gmra.mxu0 %v2158
    %v3217 = vpop.f32.mrf.mxu0
    %v3218 = vadd.f32 %v2140, %v3217
    %v3219 = vpop.f32.mrf.mxu0
    %3220 = vdwg.mxu0
    %3221 = vmatpush.bf16.msra.mxu0 %v2883
    %3222 = vmatpush.bf16.msra.mxu0 %v2878
    %3223 = vmatpush.bf16.msra.mxu0 %v2873
    %3224 = vmatpush.bf16.msra.mxu0 %v2868
    %3225 = vmatpush.bf16.msra.mxu0 %v2863
    %3226 = vmatpush.bf16.msra.mxu0 %v2858
    %3227 = vmatpush.bf16.msra.mxu0 %v2853
    %3228 = vmatpush.bf16.msra.mxu0 %v2848
    %3229 = vmatmul.bf16.gmra.mxu0 %v2159
    %v3230 = vpop.f32.mrf.mxu0
    %v3231 = vadd.f32 %v3218, %v3230
    %v3232 = vpop.f32.mrf.mxu0
    %3233 = vdwg.mxu0
    %3234 = vmatpush.bf16.msra.mxu0 %v2923
    %3235 = vmatpush.bf16.msra.mxu0 %v2918
    %3236 = vmatpush.bf16.msra.mxu0 %v2913
    %3237 = vmatpush.bf16.msra.mxu0 %v2908
    %3238 = vmatpush.bf16.msra.mxu0 %v2903
    %3239 = vmatpush.bf16.msra.mxu0 %v2898
    %3240 = vmatpush.bf16.msra.mxu0 %v2893
    %3241 = vmatpush.bf16.msra.mxu0 %v2888
    %3242 = vmatmul.bf16.gmra.mxu0 %v2160
    %v3243 = vpop.f32.mrf.mxu0
    %v3244 = vadd.f32 %v3231, %v3243
    %v3245 = vpop.f32.mrf.mxu0
    %3246 = vdwg.mxu0
    %3247 = vmatpush.bf16.msra.mxu0 %v2963
    %3248 = vmatpush.bf16.msra.mxu0 %v2958
    %3249 = vmatpush.bf16.msra.mxu0 %v2953
    %3250 = vmatpush.bf16.msra.mxu0 %v2948
    %3251 = vmatpush.bf16.msra.mxu0 %v2943
    %3252 = vmatpush.bf16.msra.mxu0 %v2938
    %3253 = vmatpush.bf16.msra.mxu0 %v2933
    %3254 = vmatpush.bf16.msra.mxu0 %v2928
    %3255 = vmatmul.bf16.gmra.mxu0 %v2161
    %v3256 = vpop.f32.mrf.mxu0
    %v3257 = vadd.f32 %v3244, %v3256
    %v3258 = vpop.f32.mrf.mxu0
    %3259 = vdwg.mxu0
    %3260 = vmatpush.bf16.msra.mxu0 %v3003
    %3261 = vmatpush.bf16.msra.mxu0 %v2998
    %3262 = vmatpush.bf16.msra.mxu0 %v2993
    %3263 = vmatpush.bf16.msra.mxu0 %v2988
    %3264 = vmatpush.bf16.msra.mxu0 %v2983
    %3265 = vmatpush.bf16.msra.mxu0 %v2978
    %3266 = vmatpush.bf16.msra.mxu0 %v2973
    %3267 = vmatpush.bf16.msra.mxu0 %v2968
    %3268 = vmatmul.bf16.gmra.mxu0 %v2162
    %v3269 = vpop.f32.mrf.mxu0
    %v3270 = vadd.f32 %v3257, %v3269
    %v3271 = vpop.f32.mrf.mxu0
    %3272 = vdwg.mxu0
    %3273 = vmatpush.bf16.msra.mxu0 %v2844
    %3274 = vmatpush.bf16.msra.mxu0 %v2839
    %3275 = vmatpush.bf16.msra.mxu0 %v2834
    %3276 = vmatpush.bf16.msra.mxu0 %v2829
    %3277 = vmatpush.bf16.msra.mxu0 %v2824
    %3278 = vmatpush.bf16.msra.mxu0 %v2819
    %3279 = vmatpush.bf16.msra.mxu0 %v2814
    %3280 = vmatpush.bf16.msra.mxu0 %v2809
    %3281 = vmatmul.bf16.gmra.mxu0 %v2158
    %v3282 = vpop.f32.mrf.mxu0
    %v3283 = vadd.f32 %v2141, %v3282
    %v3284 = vpop.f32.mrf.mxu0
    %3285 = vdwg.mxu0
    %3286 = vmatpush.bf16.msra.mxu0 %v2884
    %3287 = vmatpush.bf16.msra.mxu0 %v2879
    %3288 = vmatpush.bf16.msra.mxu0 %v2874
    %3289 = vmatpush.bf16.msra.mxu0 %v2869
    %3290 = vmatpush.bf16.msra.mxu0 %v2864
    %3291 = vmatpush.bf16.msra.mxu0 %v2859
    %3292 = vmatpush.bf16.msra.mxu0 %v2854
    %3293 = vmatpush.bf16.msra.mxu0 %v2849
    %3294 = vmatmul.bf16.gmra.mxu0 %v2159
    %v3295 = vpop.f32.mrf.mxu0
    %v3296 = vadd.f32 %v3283, %v3295
    %v3297 = vpop.f32.mrf.mxu0
    %3298 = vdwg.mxu0
    %3299 = vmatpush.bf16.msra.mxu0 %v2924
    %3300 = vmatpush.bf16.msra.mxu0 %v2919
    %3301 = vmatpush.bf16.msra.mxu0 %v2914
    %3302 = vmatpush.bf16.msra.mxu0 %v2909
    %3303 = vmatpush.bf16.msra.mxu0 %v2904
    %3304 = vmatpush.bf16.msra.mxu0 %v2899
    %3305 = vmatpush.bf16.msra.mxu0 %v2894
    %3306 = vmatpush.bf16.msra.mxu0 %v2889
    %3307 = vmatmul.bf16.gmra.mxu0 %v2160
    %v3308 = vpop.f32.mrf.mxu0
    %v3309 = vadd.f32 %v3296, %v3308
    %v3310 = vpop.f32.mrf.mxu0
    %3311 = vdwg.mxu0
    %3312 = vmatpush.bf16.msra.mxu0 %v2964
    %3313 = vmatpush.bf16.msra.mxu0 %v2959
    %3314 = vmatpush.bf16.msra.mxu0 %v2954
    %3315 = vmatpush.bf16.msra.mxu0 %v2949
    %3316 = vmatpush.bf16.msra.mxu0 %v2944
    %3317 = vmatpush.bf16.msra.mxu0 %v2939
    %3318 = vmatpush.bf16.msra.mxu0 %v2934
    %3319 = vmatpush.bf16.msra.mxu0 %v2929
    %3320 = vmatmul.bf16.gmra.mxu0 %v2161
    %v3321 = vpop.f32.mrf.mxu0
    %v3322 = vadd.f32 %v3309, %v3321
    %v3323 = vpop.f32.mrf.mxu0
    %3324 = vdwg.mxu0
    %3325 = vmatpush.bf16.msra.mxu0 %v3004
    %3326 = vmatpush.bf16.msra.mxu0 %v2999
    %3327 = vmatpush.bf16.msra.mxu0 %v2994
    %3328 = vmatpush.bf16.msra.mxu0 %v2989
    %3329 = vmatpush.bf16.msra.mxu0 %v2984
    %3330 = vmatpush.bf16.msra.mxu0 %v2979
    %3331 = vmatpush.bf16.msra.mxu0 %v2974
    %3332 = vmatpush.bf16.msra.mxu0 %v2969
    %3333 = vmatmul.bf16.gmra.mxu0 %v2162
    %v3334 = vpop.f32.mrf.mxu0
    %v3335 = vadd.f32 %v3322, %v3334
    %v3336 = vpop.f32.mrf.mxu0
    %3337 = vdwg.mxu0
    %3338 = vmatpush.bf16.msra.mxu0 %v2845
    %3339 = vmatpush.bf16.msra.mxu0 %v2840
    %3340 = vmatpush.bf16.msra.mxu0 %v2835
    %3341 = vmatpush.bf16.msra.mxu0 %v2830
    %3342 = vmatpush.bf16.msra.mxu0 %v2825
    %3343 = vmatpush.bf16.msra.mxu0 %v2820
    %3344 = vmatpush.bf16.msra.mxu0 %v2815
    %3345 = vmatpush.bf16.msra.mxu0 %v2810
    %3346 = vmatmul.bf16.gmra.mxu0 %v2158
    %v3347 = vpop.f32.mrf.mxu0
    %v3348 = vadd.f32 %v2142, %v3347
    %v3349 = vpop.f32.mrf.mxu0
    %3350 = vdwg.mxu0
    %3351 = vmatpush.bf16.msra.mxu0 %v2885
    %3352 = vmatpush.bf16.msra.mxu0 %v2880
    %3353 = vmatpush.bf16.msra.mxu0 %v2875
    %3354 = vmatpush.bf16.msra.mxu0 %v2870
    %3355 = vmatpush.bf16.msra.mxu0 %v2865
    %3356 = vmatpush.bf16.msra.mxu0 %v2860
    %3357 = vmatpush.bf16.msra.mxu0 %v2855
    %3358 = vmatpush.bf16.msra.mxu0 %v2850
    %3359 = vmatmul.bf16.gmra.mxu0 %v2159
    %v3360 = vpop.f32.mrf.mxu0
    %v3361 = vadd.f32 %v3348, %v3360
    %v3362 = vpop.f32.mrf.mxu0
    %3363 = vdwg.mxu0
    %3364 = vmatpush.bf16.msra.mxu0 %v2925
    %3365 = vmatpush.bf16.msra.mxu0 %v2920
    %3366 = vmatpush.bf16.msra.mxu0 %v2915
    %3367 = vmatpush.bf16.msra.mxu0 %v2910
    %3368 = vmatpush.bf16.msra.mxu0 %v2905
    %3369 = vmatpush.bf16.msra.mxu0 %v2900
    %3370 = vmatpush.bf16.msra.mxu0 %v2895
    %3371 = vmatpush.bf16.msra.mxu0 %v2890
    %3372 = vmatmul.bf16.gmra.mxu0 %v2160
    %v3373 = vpop.f32.mrf.mxu0
    %v3374 = vadd.f32 %v3361, %v3373
    %v3375 = vpop.f32.mrf.mxu0
    %3376 = vdwg.mxu0
    %3377 = vmatpush.bf16.msra.mxu0 %v2965
    %3378 = vmatpush.bf16.msra.mxu0 %v2960
    %3379 = vmatpush.bf16.msra.mxu0 %v2955
    %3380 = vmatpush.bf16.msra.mxu0 %v2950
    %3381 = vmatpush.bf16.msra.mxu0 %v2945
    %3382 = vmatpush.bf16.msra.mxu0 %v2940
    %3383 = vmatpush.bf16.msra.mxu0 %v2935
    %3384 = vmatpush.bf16.msra.mxu0 %v2930
    %3385 = vmatmul.bf16.gmra.mxu0 %v2161
    %v3386 = vpop.f32.mrf.mxu0
    %v3387 = vadd.f32 %v3374, %v3386
    %v3388 = vpop.f32.mrf.mxu0
    %3389 = vdwg.mxu0
    %3390 = vmatpush.bf16.msra.mxu0 %v3005
    %3391 = vmatpush.bf16.msra.mxu0 %v3000
    %3392 = vmatpush.bf16.msra.mxu0 %v2995
    %3393 = vmatpush.bf16.msra.mxu0 %v2990
    %3394 = vmatpush.bf16.msra.mxu0 %v2985
    %3395 = vmatpush.bf16.msra.mxu0 %v2980
    %3396 = vmatpush.bf16.msra.mxu0 %v2975
    %3397 = vmatpush.bf16.msra.mxu0 %v2970
    %3398 = vmatmul.bf16.gmra.mxu0 %v2162
    %v3399 = vpop.f32.mrf.mxu0
    %v3400 = vadd.f32 %v3387, %v3399
    %v3401 = vpop.f32.mrf.mxu0
    %3402 = vdwg.mxu0
    %3403 = vmatpush.bf16.msra.mxu0 %v2846
    %3404 = vmatpush.bf16.msra.mxu0 %v2841
    %3405 = vmatpush.bf16.msra.mxu0 %v2836
    %3406 = vmatpush.bf16.msra.mxu0 %v2831
    %3407 = vmatpush.bf16.msra.mxu0 %v2826
    %3408 = vmatpush.bf16.msra.mxu0 %v2821
    %3409 = vmatpush.bf16.msra.mxu0 %v2816
    %3410 = vmatpush.bf16.msra.mxu0 %v2811
    %3411 = vmatmul.bf16.gmra.mxu0 %v2158
    %v3412 = vpop.f32.mrf.mxu0
    %v3413 = vadd.f32 %v2143, %v3412
    %v3414 = vpop.f32.mrf.mxu0
    %3415 = vdwg.mxu0
    %3416 = vmatpush.bf16.msra.mxu0 %v2886
    %3417 = vmatpush.bf16.msra.mxu0 %v2881
    %3418 = vmatpush.bf16.msra.mxu0 %v2876
    %3419 = vmatpush.bf16.msra.mxu0 %v2871
    %3420 = vmatpush.bf16.msra.mxu0 %v2866
    %3421 = vmatpush.bf16.msra.mxu0 %v2861
    %3422 = vmatpush.bf16.msra.mxu0 %v2856
    %3423 = vmatpush.bf16.msra.mxu0 %v2851
    %3424 = vmatmul.bf16.gmra.mxu0 %v2159
    %v3425 = vpop.f32.mrf.mxu0
    %v3426 = vadd.f32 %v3413, %v3425
    %v3427 = vpop.f32.mrf.mxu0
    %3428 = vdwg.mxu0
    %3429 = vmatpush.bf16.msra.mxu0 %v2926
    %3430 = vmatpush.bf16.msra.mxu0 %v2921
    %3431 = vmatpush.bf16.msra.mxu0 %v2916
    %3432 = vmatpush.bf16.msra.mxu0 %v2911
    %3433 = vmatpush.bf16.msra.mxu0 %v2906
    %3434 = vmatpush.bf16.msra.mxu0 %v2901
    %3435 = vmatpush.bf16.msra.mxu0 %v2896
    %3436 = vmatpush.bf16.msra.mxu0 %v2891
    %3437 = vmatmul.bf16.gmra.mxu0 %v2160
    %v3438 = vpop.f32.mrf.mxu0
    %v3439 = vadd.f32 %v3426, %v3438
    %v3440 = vpop.f32.mrf.mxu0
    %3441 = vdwg.mxu0
    %3442 = vmatpush.bf16.msra.mxu0 %v2966
    %3443 = vmatpush.bf16.msra.mxu0 %v2961
    %3444 = vmatpush.bf16.msra.mxu0 %v2956
    %3445 = vmatpush.bf16.msra.mxu0 %v2951
    %3446 = vmatpush.bf16.msra.mxu0 %v2946
    %3447 = vmatpush.bf16.msra.mxu0 %v2941
    %3448 = vmatpush.bf16.msra.mxu0 %v2936
    %3449 = vmatpush.bf16.msra.mxu0 %v2931
    %3450 = vmatmul.bf16.gmra.mxu0 %v2161
    %v3451 = vpop.f32.mrf.mxu0
    %v3452 = vadd.f32 %v3439, %v3451
    %v3453 = vpop.f32.mrf.mxu0
    %3454 = vdwg.mxu0
    %3455 = vmatpush.bf16.msra.mxu0 %v3006
    %3456 = vmatpush.bf16.msra.mxu0 %v3001
    %3457 = vmatpush.bf16.msra.mxu0 %v2996
    %3458 = vmatpush.bf16.msra.mxu0 %v2991
    %3459 = vmatpush.bf16.msra.mxu0 %v2986
    %3460 = vmatpush.bf16.msra.mxu0 %v2981
    %3461 = vmatpush.bf16.msra.mxu0 %v2976
    %3462 = vmatpush.bf16.msra.mxu0 %v2971
    %3463 = vmatmul.bf16.gmra.mxu0 %v2162
    %v3464 = vpop.f32.mrf.mxu0
    %v3465 = vadd.f32 %v3452, %v3464
    %v3466 = vpop.f32.mrf.mxu0
    %3467 = vdwg.mxu0
    %3468 = vmatpush.bf16.msra.mxu0 %v2847
    %3469 = vmatpush.bf16.msra.mxu0 %v2842
    %3470 = vmatpush.bf16.msra.mxu0 %v2837
    %3471 = vmatpush.bf16.msra.mxu0 %v2832
    %3472 = vmatpush.bf16.msra.mxu0 %v2827
    %3473 = vmatpush.bf16.msra.mxu0 %v2822
    %3474 = vmatpush.bf16.msra.mxu0 %v2817
    %3475 = vmatpush.bf16.msra.mxu0 %v2812
    %3476 = vmatmul.bf16.gmra.mxu0 %v2158
    %v3477 = vpop.f32.mrf.mxu0
    %v3478 = vadd.f32 %v2144, %v3477
    %v3479 = vpop.f32.mrf.mxu0
    %3480 = vdwg.mxu0
    %3481 = vmatpush.bf16.msra.mxu0 %v2887
    %3482 = vmatpush.bf16.msra.mxu0 %v2882
    %3483 = vmatpush.bf16.msra.mxu0 %v2877
    %3484 = vmatpush.bf16.msra.mxu0 %v2872
    %3485 = vmatpush.bf16.msra.mxu0 %v2867
    %3486 = vmatpush.bf16.msra.mxu0 %v2862
    %3487 = vmatpush.bf16.msra.mxu0 %v2857
    %3488 = vmatpush.bf16.msra.mxu0 %v2852
    %3489 = vmatmul.bf16.gmra.mxu0 %v2159
    %v3490 = vpop.f32.mrf.mxu0
    %v3491 = vadd.f32 %v3478, %v3490
    %v3492 = vpop.f32.mrf.mxu0
    %3493 = vdwg.mxu0
    %3494 = vmatpush.bf16.msra.mxu0 %v2927
    %3495 = vmatpush.bf16.msra.mxu0 %v2922
    %3496 = vmatpush.bf16.msra.mxu0 %v2917
    %3497 = vmatpush.bf16.msra.mxu0 %v2912
    %3498 = vmatpush.bf16.msra.mxu0 %v2907
    %3499 = vmatpush.bf16.msra.mxu0 %v2902
    %3500 = vmatpush.bf16.msra.mxu0 %v2897
    %3501 = vmatpush.bf16.msra.mxu0 %v2892
    %3502 = vmatmul.bf16.gmra.mxu0 %v2160
    %v3503 = vpop.f32.mrf.mxu0
    %v3504 = vadd.f32 %v3491, %v3503
    %v3505 = vpop.f32.mrf.mxu0
    %3506 = vdwg.mxu0
    %3507 = vmatpush.bf16.msra.mxu0 %v2967
    %3508 = vmatpush.bf16.msra.mxu0 %v2962
    %3509 = vmatpush.bf16.msra.mxu0 %v2957
    %3510 = vmatpush.bf16.msra.mxu0 %v2952
    %3511 = vmatpush.bf16.msra.mxu0 %v2947
    %3512 = vmatpush.bf16.msra.mxu0 %v2942
    %3513 = vmatpush.bf16.msra.mxu0 %v2937
    %3514 = vmatpush.bf16.msra.mxu0 %v2932
    %3515 = vmatmul.bf16.gmra.mxu0 %v2161
    %v3516 = vpop.f32.mrf.mxu0
    %v3517 = vadd.f32 %v3504, %v3516
    %v3518 = vpop.f32.mrf.mxu0
    %3519 = vdwg.mxu0
    %3520 = vmatpush.bf16.msra.mxu0 %v3007
    %3521 = vmatpush.bf16.msra.mxu0 %v3002
    %3522 = vmatpush.bf16.msra.mxu0 %v2997
    %3523 = vmatpush.bf16.msra.mxu0 %v2992
    %3524 = vmatpush.bf16.msra.mxu0 %v2987
    %3525 = vmatpush.bf16.msra.mxu0 %v2982
    %3526 = vmatpush.bf16.msra.mxu0 %v2977
    %3527 = vmatpush.bf16.msra.mxu0 %v2972
    %3528 = vmatmul.bf16.gmra.mxu0 %v2162
    %v3529 = vpop.f32.mrf.mxu0
    %v3530 = vadd.f32 %v3517, %v3529
    %v3531 = vpop.f32.mrf.mxu0
    %3532 = vdwg.mxu0
    %v3533 = vpack.c.bf16 %v3335, %v3270
    %v3534 = vpack.c.bf16 %v3465, %v3400
    %v3535 = vpack.c.bf16 %v3530, %v3530
    %v3536 = vunpack.c.l.bf16 %v3533
    %v3537 = vunpack.c.h.bf16 %v3533
    %v3538 = vunpack.c.l.bf16 %v3534
    %v3539 = vunpack.c.h.bf16 %v3534
    %v3540 = vunpack.c.l.bf16 %v3535
    %v3541 = vmin.f32 %v3536, 20.0
    %v3542 = vmin.f32 %v3537, 20.0
    %v3543 = vmin.f32 %v3538, 20.0
    %v3544 = vmin.f32 %v3539, 20.0
    %v3545 = vmin.f32 %v3540, 20.0
    %v3546 = vpack.c.bf16 %v3542, %v3541
    %v3547 = vpack.c.bf16 %v3544, %v3543
    %v3548 = vpack.c.bf16 %v3545, %v3545
    %v3549 = vunpack.c.l.bf16 %v3546
    %v3550 = vunpack.c.h.bf16 %v3546
    %v3551 = vunpack.c.l.bf16 %v3547
    %v3552 = vunpack.c.h.bf16 %v3547
    %v3553 = vunpack.c.l.bf16 %v3548
    %v3554 = vmul.f32 %v3549, 1.442695
    %v3555 = vpow.pop %v3554
    %v3556 = vmul.f32 %v3550, 1.442695
    %v3557 = vpow.pop %v3556
    %v3558 = vmul.f32 %v3551, 1.442695
    %v3559 = vpow.pop %v3558
    %v3560 = vmul.f32 %v3552, 1.442695
    %v3561 = vpow.pop %v3560
    %v3562 = vmul.f32 %v3553, 1.442695
    %v3563 = vpow.pop %v3562
    %v3564 = vpack.c.bf16 %v3557, %v3555
    %v3565 = vpack.c.bf16 %v3561, %v3559
    %v3566 = vpack.c.bf16 %v3563, %v3563
    %v3567 = vunpack.c.l.bf16 %v3564
    %v3568 = vunpack.c.h.bf16 %v3564
    %v3569 = vunpack.c.l.bf16 %v3565
    %v3570 = vunpack.c.h.bf16 %v3565
    %v3571 = vunpack.c.l.bf16 %v3566
    %v3572 = vadd.f32 %v3567, 1.0
    %v3573 = vadd.f32 %v3568, 1.0
    %v3574 = vadd.f32 %v3569, 1.0
    %v3575 = vadd.f32 %v3570, 1.0
    %v3576 = vadd.f32 %v3571, 1.0
    %v3577 = vpack.c.bf16 %v3573, %v3572
    %v3578 = vpack.c.bf16 %v3575, %v3574
    %v3579 = vpack.c.bf16 %v3576, %v3576
    %v3580 = vunpack.c.l.bf16 %v3577
    %v3581 = vunpack.c.h.bf16 %v3577
    %v3582 = vunpack.c.l.bf16 %v3578
    %v3583 = vunpack.c.h.bf16 %v3578
    %v3584 = vunpack.c.l.bf16 %v3579
    %v3585 = vlog2.pop %v3580
    %v3586 = vmul.f32 %v3585, 0.6931472
    %v3587 = vlog2.pop %v3581
    %v3588 = vmul.f32 %v3587, 0.6931472
    %v3589 = vlog2.pop %v3582
    %v3590 = vmul.f32 %v3589, 0.6931472
    %v3591 = vlog2.pop %v3583
    %v3592 = vmul.f32 %v3591, 0.6931472
    %v3593 = vlog2.pop %v3584
    %v3594 = vmul.f32 %v3593, 0.6931472
    %v3595 = vpack.c.bf16 %v3588, %v3586
    %v3596 = vpack.c.bf16 %v3592, %v3590
    %v3597 = vpack.c.bf16 %v3594, %v3594
    %vm3598 = vcmp.gt.f32.partialorder %v3536, 20.0
    %vm3599 = vcmp.gt.f32.partialorder %v3537, 20.0
    %vm3600 = vcmp.gt.f32.partialorder %v3538, 20.0
    %vm3601 = vcmp.gt.f32.partialorder %v3539, 20.0
    %vm3602 = vcmp.gt.f32.partialorder %v3540, 20.0
    %vm3603 = vmpackc.low %vm3599, %vm3598
    %vm3604 = vmpackc.low %vm3601, %vm3600
    %vm3605 = vmpackc.low %vm3602, %vm3602
    %v3606 = vsel %vm3603, %v3533, %v3595
    %v3607 = vsel %vm3604, %v3534, %v3596
    %v3608 = vsel %vm3605, %v3535, %v3597
    %v3609 = vunpack.c.l.bf16 %v3606
    %v3610 = vunpack.c.h.bf16 %v3606
    %v3611 = vunpack.c.l.bf16 %v3607
    %v3612 = vunpack.c.h.bf16 %v3607
    %v3613 = vunpack.c.l.bf16 %v3608
    %v3614 = vld [vmem:[%s7] sm:$0x1f]
    %v3616 = vperm.slane %v3614, 0
    %v3617 = vperm.slane %v3614, 1
    %v3618 = vperm.slane %v3614, 2
    %v3619 = vperm.slane %v3614, 3
    %v3620 = vperm.slane %v3614, 4
    %v3626 = vmul.f32 %v3609, %v3616
    %v3627 = vmul.f32 %v3610, %v3617
    %v3628 = vmul.f32 %v3611, %v3618
    %v3629 = vmul.f32 %v3612, %v3619
    %v3630 = vmul.f32 %v3613, %v3620
    %v3631 = vadd.f32 %v3626, %v3627
    %v3632 = vadd.f32 %v3631, %v3628
    %v3633 = vadd.f32 %v3632, %v3629
    %v3634 = vadd.f32 %v3633, %v3630
    %3635 = vadd.xlane.f32.xlu0 %v3634
    %v3636 = vpop.xlane.xlu0 %3635
    %v3637 = vld [vmem:[#allocation2] sm:$0x1]
    %v3639 = vperm.slane %v3637, 0
    %v3641 = vadd.f32 %v3636, %v3639
    %vm3642 = vcmask 7168
    %3643 = vst.msk [vmem:[%s9] sm:$0xff] %vm3642, %v3641
    // Predicated region
    $region54: #{tpu_custom_call.1} parent=1 // pred_check
      _
    $region55: #{tpu_custom_call.1} parent=1 // pred_check_branch
      %3645 = sbr.rel (0) target = $region57
    $region56: #{tpu_custom_call.1} parent=1 // pred_region
      _
    $region57: #{tpu_custom_call.1} parent=1 // pred_fallthru
      _
    // Predicated region
    $region58: #{tpu_custom_call.1} parent=1 // pred_check
      _
    $region59: #{tpu_custom_call.1} parent=1 // pred_check_branch
      %3647 = sbr.rel (0) target = $region61
    $region60: #{tpu_custom_call.1} parent=1 // pred_region
      _
    $region61: #{tpu_custom_call.1} parent=1 // pred_fallthru
      _
    %3648 = vsyncpa [#allocation4], 1
    %3649 = vsyncpa [#allocation6], 1
    %3650 = vsyncpa [#allocation9], 1

</llo_original>
